<compile_context>
chip_gen: v7x
topology: tpu7x:2x2x1
jax: 0.10.0
libtpu: 0.0.40
codegen_flags: <defaults>
</compile_context>

<pallas_src>
import functools

import jax
import jax.numpy as jnp
from jax.experimental import pallas as pl
from jax.experimental.pallas import tpu as pltpu

# ---------------------------------------------------------------------------
# Model constants (fixed by the PyTorch module: Linear(1632, hidden))
# ---------------------------------------------------------------------------
K = 3          # conv kernel size
STRIDE = 2     # conv stride
C1 = 64        # pconv1 out channels
C2 = 32        # pconv2 out channels
LOUT2 = 17     # pconv2 output length  (3 * 32 * 17 = 1632)
LOUT1 = 2 * (LOUT2 - 1) + K        # 35
L_IN = 2 * (LOUT1 - 1) + K + 1     # 72 (last sample unused by the convs, as in PyTorch)
FEAT = 3 * C2 * LOUT2              # 1632

_VMEM = pl.BlockSpec(memory_space=pltpu.MemorySpace.VMEM)


# ---------------------------------------------------------------------------
# Pallas kernels
# ---------------------------------------------------------------------------

def _fused_pconv_kernel(xta_ref, mta_ref, w1_ref, b1_ref, w2_ref, b2_ref, h2_ref):
    """Fused pconv1 + ReLU + pconv2 + ReLU for all three branches.

    xta_ref: (9, R, 1)   signal taps; slot s = t*3+u holds x[b, branch, 4*i + 2*t + u]
    mta_ref: (9, R, 1)   observation-mask taps (same layout, branch-broadcast)
    w1_ref:  (3, 1, 64)  pconv1 weight, [u, cin, cout]
    b1_ref:  (1, 64)
    w2_ref:  (3, 64, 32) pconv2 weight, [t, cin, cout]
    b2_ref:  (1, 32)
    h2_ref:  (R, 32)     ReLU(pconv2 output), channels-last; rows = (b, branch, i)
    """
    R = h2_ref.shape[0]
    b1 = b1_ref[...]
    acc2 = jnp.zeros((R, C2), jnp.float32)
    cnt2 = jnp.zeros((R, 1), jnp.float32)

    for t in range(K):                       # conv2 tap == conv1 output sub-position
        raw1 = jnp.zeros((R, C1), jnp.float32)
        msum1 = jnp.zeros((R, 1), jnp.float32)
        for u in range(K):                   # conv1 tap (VPU broadcast-FMA, no MXU)
            s = t * K + u
            m = mta_ref[s]                                   # (R, 1)
            raw1 = raw1 + (xta_ref[s] * m) * w1_ref[u]       # (R,1)*(1,64) -> (R,64)
            msum1 = msum1 + m
        valid1 = (msum1 > 0.0).astype(jnp.float32)           # (R, 1)
        ratio1 = (jnp.float32(K) * valid1) / jnp.maximum(msum1, 1.0)
        # partial-conv renorm + bias + ReLU, zeroed at holes
        h1 = jnp.maximum(raw1 * ratio1 + b1, 0.0) * valid1   # (R, 64)

        # pconv2 accumulation: h1 is already zero at holes, so no extra mask mult.
        acc2 = acc2 + jnp.dot(h1, w2_ref[t], preferred_element_type=jnp.float32)
        cnt2 = cnt2 + valid1

    valid2 = (cnt2 > 0.0).astype(jnp.float32)
    # pconv2 winsize / masksum = (64*3) / (64*cnt2) = 3 / cnt2
    ratio2 = (jnp.float32(K) * valid2) / jnp.maximum(cnt2, 1.0)
    h2_ref[...] = jnp.maximum(acc2 * ratio2 + b2_ref[...], 0.0) * valid2


def _mlp_kernel(f_ref, wh_ref, bh_ref, wo_ref, bo_ref, out_ref):
    """tanh(feat @ W_h + b_h) @ W_out + b_out  (W_out/b_out lane-padded to 128)."""
    h = jnp.tanh(
        jnp.dot(f_ref[...], wh_ref[...], preferred_element_type=jnp.float32)
        + bh_ref[...]
    )
    out_ref[...] = (
        jnp.dot(h, wo_ref[...], preferred_element_type=jnp.float32) + bo_ref[...]
    )


# ---------------------------------------------------------------------------
# Host-side layout glue (static strided slices only)
# ---------------------------------------------------------------------------

def _conv_taps(a):
    """a: (B, C, L) -> (9, B*C*LOUT2, 1) tap slots.

    Slot s = t*3 + u holds a[b, c, 4*i + 2*t + u]; rows ordered (b, c, i) so the
    fused kernel's output reshapes for free into the (B, 1632) feature matrix.
    """
    B, C, _ = a.shape
    step = STRIDE * STRIDE                       # 4
    slots = []
    for t in range(K):
        for u in range(K):
            off = STRIDE * t + u
            sl = a[:, :, off: off + (LOUT2 - 1) * step + 1: step]   # (B, C, 17)
            slots.append(sl.reshape(B * C * LOUT2))
    return jnp.stack(slots, axis=0)[:, :, None]


def init_params(key, hidden_dim=32, num_classes=5):
    """PyTorch-layout parameters, uniform +-1/sqrt(fan_in) init."""
    ks = jax.random.split(key, 8)

    def uni(k, shape, fan_in):
        bound = 1.0 / jnp.sqrt(jnp.float32(fan_in))
        return jax.random.uniform(k, shape, jnp.float32, -bound, bound)

    return dict(
        conv1_w=uni(ks[0], (C1, 1, K), 1 * K),        # (64, 1, 3)
        conv1_b=uni(ks[1], (C1,), 1 * K),
        conv2_w=uni(ks[2], (C2, C1, K), C1 * K),      # (32, 64, 3)
        conv2_b=uni(ks[3], (C2,), C1 * K),
        hidden_w=uni(ks[4], (hidden_dim, FEAT), FEAT),    # Linear(1632, H)
        hidden_b=uni(ks[5], (hidden_dim,), FEAT),
        out_w=uni(ks[6], (num_classes, hidden_dim), hidden_dim),
        out_b=uni(ks[7], (num_classes,), hidden_dim),
    )


def prepare_params(params, lanes=128):
    """One-time conversion from PyTorch layout to the kernel-friendly layout."""
    H = params["hidden_w"].shape[0]
    C = params["out_w"].shape[0]
    cp = ((C + lanes - 1) // lanes) * lanes

    # hidden1 weight: PyTorch flatten order per branch is (channel, position);
    # the kernel produces features in (position, channel) order -> permute rows.
    wh = params["hidden_w"].T.reshape(3, C2, LOUT2, H)       # (branch, chan, pos, H)
    wh = wh.transpose(0, 2, 1, 3).reshape(3 * LOUT2 * C2, H)  # (branch, pos, chan, H)

    return dict(
        w1=jnp.transpose(params["conv1_w"], (2, 1, 0)),      # (3, 1, 64)
        b1=params["conv1_b"].reshape(1, C1),
        w2=jnp.transpose(params["conv2_w"], (2, 1, 0)),      # (3, 64, 32)
        b2=params["conv2_b"].reshape(1, C2),
        w_h=wh,
        b_h=params["hidden_b"].reshape(1, H),
        w_out=jnp.pad(params["out_w"].T, ((0, 0), (0, cp - C))),             # (H, 128)
        b_out=jnp.pad(params["out_b"].reshape(1, C), ((0, 0), (0, cp - C))),  # (1, 128)
    )


def encoder_classifier_forward(prep, x, *, num_classes):
    """x: (B, 4, L) float32 (time, mag, magErr, mask) -> logits (B, num_classes)."""
    B = x.shape[0]
    sig = x[:, 0:3, :]                                  # (B, 3, L)
    msk = jnp.broadcast_to(x[:, 3:4, :], sig.shape)     # shared observation mask
    xta = _conv_taps(sig)                               # (9, R, 1), R = B*3*17
    mta = _conv_taps(msk)
    R = xta.shape[1]

    conv_cost = pl.CostEstimate(
        flops=2 * R * (K * K * C1 + K * C1 * C2),
        transcendentals=0,
        bytes_accessed=4 * (2 * 9 * R + K * C1 + C1 + K * C1 * C2 + C2 + R * C2),
    )
    h2 = pl.pallas_call(
        _fused_pconv_kernel,
        out_shape=jax.ShapeDtypeStruct((R, C2), jnp.float32),
        in_specs=[_VMEM] * 6,
        out_specs=_VMEM,
        cost_estimate=conv_cost,
    )(xta, mta, prep["w1"], prep["b1"], prep["w2"], prep["b2"])

    # Rows are (b, branch, i), channels last -> a free reshape yields the
    # (B, 1632) feature matrix in (branch, pos, channel) order; the matching
    # permutation is already baked into prep["w_h"].
    feat = h2.reshape(B, FEAT)

    H = prep["w_h"].shape[1]
    CP = prep["w_out"].shape[1]          # lane-padded class count (128)
    mlp_cost = pl.CostEstimate(
        flops=2 * B * (FEAT * H + H * CP),
        transcendentals=B * H,
        bytes_accessed=4 * (B * FEAT + FEAT * H + H + H * CP + CP + B * CP),
    )
    out = pl.pallas_call(
        _mlp_kernel,
        out_shape=jax.ShapeDtypeStruct((B, CP), jnp.float32),
        in_specs=[_VMEM] * 5,
        out_specs=_VMEM,
        cost_estimate=mlp_cost,
    )(feat, prep["w_h"], prep["b_h"], prep["w_out"], prep["b_out"])

    return out[:, :num_classes]


# ---------------------------------------------------------------------------
# Main
# ---------------------------------------------------------------------------

if __name__ == "__main__":
    # L = 72 so that two stride-2 k=3 convs give 3 * 32 * 17 = 1632 features,
    # matching Linear(1632, hidden_dim) in the PyTorch module.
    B, L = 2, L_IN
    hidden_dim, num_classes = 32, 5

    key = jax.random.PRNGKey(0)
    k_data, k_mask, k_params = jax.random.split(key, 3)

    signal = jax.random.normal(k_data, (B, 3, L), jnp.float32)
    obs_mask = (jax.random.uniform(k_mask, (B, 1, L)) > 0.2).astype(jnp.float32)
    x = jnp.concatenate([signal, obs_mask], axis=1)      # (B, 4, L)

    params = init_params(k_params, hidden_dim=hidden_dim, num_classes=num_classes)
    prep = prepare_params(params)

    fwd = jax.jit(functools.partial(encoder_classifier_forward,
                                    num_classes=num_classes))
    logits = fwd(prep, x)
    jax.block_until_ready(logits)

    assert logits.shape == (B, num_classes), logits.shape
    assert jnp.all(jnp.isfinite(logits))
    print("KERNEL_OK")
</pallas_src>

<mosaic_0001>
module attributes {stable_mosaic.version = 11 : i64} {
  func.func @_mlp_kernel(%arg0: memref<2x1632xf32, #tpu.memory_space<vmem>>, %arg1: memref<1632x32xf32, #tpu.memory_space<vmem>>, %arg2: memref<1x32xf32, #tpu.memory_space<vmem>>, %arg3: memref<32x128xf32, #tpu.memory_space<vmem>>, %arg4: memref<1x128xf32, #tpu.memory_space<vmem>>, %arg5: memref<2x128xf32, #tpu.memory_space<vmem>>) attributes {dimension_semantics = [], scalar_prefetch = 0 : i64, scratch_operands = 0 : i64, tpu.core_type = #tpu.core_type<tc>} {
    %c0 = arith.constant 0 : index
    %c0_0 = arith.constant 0 : index
    %0 = vector.load %arg0[%c0, %c0_0] : memref<2x1632xf32, #tpu.memory_space<vmem>>, vector<2x1632xf32>
    %c0_1 = arith.constant 0 : index
    %c0_2 = arith.constant 0 : index
    %1 = vector.load %arg1[%c0_1, %c0_2] : memref<1632x32xf32, #tpu.memory_space<vmem>>, vector<1632x32xf32>
    %cst = arith.constant dense<0.000000e+00> : vector<2x32xf32>
    %2 = tpu.matmul %0, %1, %cst {dimension_numbers = #tpu.dot_dimension_numbers<[1], [0], [0], [1], [0, 0, 1, 1], [], []>} : vector<2x1632xf32>, vector<1632x32xf32>, vector<2x32xf32> -> vector<2x32xf32>
    %c0_3 = arith.constant 0 : index
    %c0_4 = arith.constant 0 : index
    %3 = vector.load %arg2[%c0_3, %c0_4] : memref<1x32xf32, #tpu.memory_space<vmem>>, vector<1x32xf32>
    %4 = vector.broadcast %3 : vector<1x32xf32> to vector<2x32xf32>
    %5 = arith.addf %2, %4 : vector<2x32xf32>
    %6 = math.tanh %5 : vector<2x32xf32>
    %c0_5 = arith.constant 0 : index
    %c0_6 = arith.constant 0 : index
    %7 = vector.load %arg3[%c0_5, %c0_6] : memref<32x128xf32, #tpu.memory_space<vmem>>, vector<32x128xf32>
    %cst_7 = arith.constant dense<0.000000e+00> : vector<2x128xf32>
    %8 = tpu.matmul %6, %7, %cst_7 {dimension_numbers = #tpu.dot_dimension_numbers<[1], [0], [0], [1], [0, 0, 1, 1], [], []>} : vector<2x32xf32>, vector<32x128xf32>, vector<2x128xf32> -> vector<2x128xf32>
    %c0_8 = arith.constant 0 : index
    %c0_9 = arith.constant 0 : index
    %9 = vector.load %arg4[%c0_8, %c0_9] : memref<1x128xf32, #tpu.memory_space<vmem>>, vector<1x128xf32>
    %10 = vector.broadcast %9 : vector<1x128xf32> to vector<2x128xf32>
    %11 = arith.addf %8, %10 : vector<2x128xf32>
    %c0_10 = arith.constant 0 : index
    %c0_11 = arith.constant 0 : index
    %12 = vector.load %arg5[%c0_10, %c0_11] : memref<2x128xf32, #tpu.memory_space<vmem>>, vector<2x128xf32>
    tpu.vector_store %arg5[%c0_10, %c0_11], %11 {strides = array<i32>} : memref<2x128xf32, #tpu.memory_space<vmem>>, vector<2x128xf32>,
    return
  }
}

module attributes {stable_mosaic.version = 11 : i64} {
  func.func @_fused_pconv_kernel(%arg0: memref<9x102x1xf32, #tpu.memory_space<vmem>>, %arg1: memref<9x102x1xf32, #tpu.memory_space<vmem>>, %arg2: memref<3x1x64xf32, #tpu.memory_space<vmem>>, %arg3: memref<1x64xf32, #tpu.memory_space<vmem>>, %arg4: memref<3x64x32xf32, #tpu.memory_space<vmem>>, %arg5: memref<1x32xf32, #tpu.memory_space<vmem>>, %arg6: memref<102x32xf32, #tpu.memory_space<vmem>>) attributes {dimension_semantics = [], scalar_prefetch = 0 : i64, scratch_operands = 0 : i64, tpu.core_type = #tpu.core_type<tc>} {
    %c0 = arith.constant 0 : index
    %c0_0 = arith.constant 0 : index
    %0 = vector.load %arg3[%c0, %c0_0] : memref<1x64xf32, #tpu.memory_space<vmem>>, vector<1x64xf32>
    %cst = arith.constant 0.000000e+00 : f32
    %1 = vector.broadcast %cst : f32 to vector<102x32xf32>
    %cst_1 = arith.constant 0.000000e+00 : f32
    %2 = vector.broadcast %cst_1 : f32 to vector<102x1xf32>
    %cst_2 = arith.constant 0.000000e+00 : f32
    %3 = vector.broadcast %cst_2 : f32 to vector<102x64xf32>
    %cst_3 = arith.constant 0.000000e+00 : f32
    %4 = vector.broadcast %cst_3 : f32 to vector<102x1xf32>
    %c0_4 = arith.constant 0 : index
    %c0_5 = arith.constant 0 : index
    %c0_6 = arith.constant 0 : index
    %5 = vector.load %arg1[%c0_4, %c0_5, %c0_6] : memref<9x102x1xf32, #tpu.memory_space<vmem>>, vector<1x102x1xf32>
    %6 = vector.shape_cast %5 : vector<1x102x1xf32> to vector<102x1xf32>
    %c0_7 = arith.constant 0 : index
    %c0_8 = arith.constant 0 : index
    %c0_9 = arith.constant 0 : index
    %7 = vector.load %arg0[%c0_7, %c0_8, %c0_9] : memref<9x102x1xf32, #tpu.memory_space<vmem>>, vector<1x102x1xf32>
    %8 = vector.shape_cast %7 : vector<1x102x1xf32> to vector<102x1xf32>
    %9 = arith.mulf %8, %6 : vector<102x1xf32>
    %c0_10 = arith.constant 0 : index
    %c0_11 = arith.constant 0 : index
    %c0_12 = arith.constant 0 : index
    %10 = vector.load %arg2[%c0_10, %c0_11, %c0_12] : memref<3x1x64xf32, #tpu.memory_space<vmem>>, vector<1x1x64xf32>
    %11 = vector.shape_cast %10 : vector<1x1x64xf32> to vector<1x64xf32>
    %12 = vector.broadcast %9 : vector<102x1xf32> to vector<102x64xf32>
    %13 = vector.broadcast %11 : vector<1x64xf32> to vector<102x64xf32>
    %14 = arith.mulf %12, %13 : vector<102x64xf32>
    %15 = arith.addf %3, %14 : vector<102x64xf32>
    %16 = arith.addf %4, %6 : vector<102x1xf32>
    %c1 = arith.constant 1 : index
    %c0_13 = arith.constant 0 : index
    %c0_14 = arith.constant 0 : index
    %17 = vector.load %arg1[%c1, %c0_13, %c0_14] : memref<9x102x1xf32, #tpu.memory_space<vmem>>, vector<1x102x1xf32>
    %18 = vector.shape_cast %17 : vector<1x102x1xf32> to vector<102x1xf32>
    %c1_15 = arith.constant 1 : index
    %c0_16 = arith.constant 0 : index
    %c0_17 = arith.constant 0 : index
    %19 = vector.load %arg0[%c1_15, %c0_16, %c0_17] : memref<9x102x1xf32, #tpu.memory_space<vmem>>, vector<1x102x1xf32>
    %20 = vector.shape_cast %19 : vector<1x102x1xf32> to vector<102x1xf32>
    %21 = arith.mulf %20, %18 : vector<102x1xf32>
    %c1_18 = arith.constant 1 : index
    %c0_19 = arith.constant 0 : index
    %c0_20 = arith.constant 0 : index
    %22 = vector.load %arg2[%c1_18, %c0_19, %c0_20] : memref<3x1x64xf32, #tpu.memory_space<vmem>>, vector<1x1x64xf32>
    %23 = vector.shape_cast %22 : vector<1x1x64xf32> to vector<1x64xf32>
    %24 = vector.broadcast %21 : vector<102x1xf32> to vector<102x64xf32>
    %25 = vector.broadcast %23 : vector<1x64xf32> to vector<102x64xf32>
    %26 = arith.mulf %24, %25 : vector<102x64xf32>
    %27 = arith.addf %15, %26 : vector<102x64xf32>
    %28 = arith.addf %16, %18 : vector<102x1xf32>
    %c2 = arith.constant 2 : index
    %c0_21 = arith.constant 0 : index
    %c0_22 = arith.constant 0 : index
    %29 = vector.load %arg1[%c2, %c0_21, %c0_22] : memref<9x102x1xf32, #tpu.memory_space<vmem>>, vector<1x102x1xf32>
    %30 = vector.shape_cast %29 : vector<1x102x1xf32> to vector<102x1xf32>
    %c2_23 = arith.constant 2 : index
    %c0_24 = arith.constant 0 : index
    %c0_25 = arith.constant 0 : index
    %31 = vector.load %arg0[%c2_23, %c0_24, %c0_25] : memref<9x102x1xf32, #tpu.memory_space<vmem>>, vector<1x102x1xf32>
    %32 = vector.shape_cast %31 : vector<1x102x1xf32> to vector<102x1xf32>
    %33 = arith.mulf %32, %30 : vector<102x1xf32>
    %c2_26 = arith.constant 2 : index
    %c0_27 = arith.constant 0 : index
    %c0_28 = arith.constant 0 : index
    %34 = vector.load %arg2[%c2_26, %c0_27, %c0_28] : memref<3x1x64xf32, #tpu.memory_space<vmem>>, vector<1x1x64xf32>
    %35 = vector.shape_cast %34 : vector<1x1x64xf32> to vector<1x64xf32>
    %36 = vector.broadcast %33 : vector<102x1xf32> to vector<102x64xf32>
    %37 = vector.broadcast %35 : vector<1x64xf32> to vector<102x64xf32>
    %38 = arith.mulf %36, %37 : vector<102x64xf32>
    %39 = arith.addf %27, %38 : vector<102x64xf32>
    %40 = arith.addf %28, %30 : vector<102x1xf32>
    %cst_29 = arith.constant 0.000000e+00 : f32
    %41 = vector.broadcast %cst_29 : f32 to vector<102x1xf32>
    %42 = arith.cmpf ogt, %40, %41 : vector<102x1xf32>
    %43 = arith.extui %42 : vector<102x1xi1> to vector<102x1xi32>
    %44 = arith.sitofp %43 : vector<102x1xi32> to vector<102x1xf32>
    %cst_30 = arith.constant 3.000000e+00 : f32
    %45 = vector.broadcast %cst_30 : f32 to vector<102x1xf32>
    %46 = arith.mulf %45, %44 : vector<102x1xf32>
    %cst_31 = arith.constant 1.000000e+00 : f32
    %47 = vector.broadcast %cst_31 : f32 to vector<102x1xf32>
    %48 = arith.maximumf %40, %47 : vector<102x1xf32>
    %49 = arith.divf %46, %48 : vector<102x1xf32>
    %50 = vector.broadcast %49 : vector<102x1xf32> to vector<102x64xf32>
    %51 = arith.mulf %39, %50 : vector<102x64xf32>
    %52 = vector.broadcast %0 : vector<1x64xf32> to vector<102x64xf32>
    %53 = arith.addf %51, %52 : vector<102x64xf32>
    %cst_32 = arith.constant 0.000000e+00 : f32
    %54 = vector.broadcast %cst_32 : f32 to vector<102x64xf32>
    %55 = arith.maximumf %53, %54 : vector<102x64xf32>
    %56 = vector.broadcast %44 : vector<102x1xf32> to vector<102x64xf32>
    %57 = arith.mulf %55, %56 : vector<102x64xf32>
    %c0_33 = arith.constant 0 : index
    %c0_34 = arith.constant 0 : index
    %c0_35 = arith.constant 0 : index
    %58 = vector.load %arg4[%c0_33, %c0_34, %c0_35] : memref<3x64x32xf32, #tpu.memory_space<vmem>>, vector<1x64x32xf32>
    %59 = vector.shape_cast %58 : vector<1x64x32xf32> to vector<64x32xf32>
    %cst_36 = arith.constant dense<0.000000e+00> : vector<102x32xf32>
    %60 = tpu.matmul %57, %59, %cst_36 {dimension_numbers = #tpu.dot_dimension_numbers<[1], [0], [0], [1], [0, 0, 1, 1], [], []>} : vector<102x64xf32>, vector<64x32xf32>, vector<102x32xf32> -> vector<102x32xf32>
    %61 = arith.addf %1, %60 : vector<102x32xf32>
    %62 = arith.addf %2, %44 : vector<102x1xf32>
    %cst_37 = arith.constant 0.000000e+00 : f32
    %63 = vector.broadcast %cst_37 : f32 to vector<102x64xf32>
    %cst_38 = arith.constant 0.000000e+00 : f32
    %64 = vector.broadcast %cst_38 : f32 to vector<102x1xf32>
    %c3 = arith.constant 3 : index
    %c0_39 = arith.constant 0 : index
    %c0_40 = arith.constant 0 : index
    %65 = vector.load %arg1[%c3, %c0_39, %c0_40] : memref<9x102x1xf32, #tpu.memory_space<vmem>>, vector<1x102x1xf32>
    %66 = vector.shape_cast %65 : vector<1x102x1xf32> to vector<102x1xf32>
    %c3_41 = arith.constant 3 : index
    %c0_42 = arith.constant 0 : index
    %c0_43 = arith.constant 0 : index
    %67 = vector.load %arg0[%c3_41, %c0_42, %c0_43] : memref<9x102x1xf32, #tpu.memory_space<vmem>>, vector<1x102x1xf32>
    %68 = vector.shape_cast %67 : vector<1x102x1xf32> to vector<102x1xf32>
    %69 = arith.mulf %68, %66 : vector<102x1xf32>
    %c0_44 = arith.constant 0 : index
    %c0_45 = arith.constant 0 : index
    %c0_46 = arith.constant 0 : index
    %70 = vector.load %arg2[%c0_44, %c0_45, %c0_46] : memref<3x1x64xf32, #tpu.memory_space<vmem>>, vector<1x1x64xf32>
    %71 = vector.shape_cast %70 : vector<1x1x64xf32> to vector<1x64xf32>
    %72 = vector.broadcast %69 : vector<102x1xf32> to vector<102x64xf32>
    %73 = vector.broadcast %71 : vector<1x64xf32> to vector<102x64xf32>
    %74 = arith.mulf %72, %73 : vector<102x64xf32>
    %75 = arith.addf %63, %74 : vector<102x64xf32>
    %76 = arith.addf %64, %66 : vector<102x1xf32>
    %c4 = arith.constant 4 : index
    %c0_47 = arith.constant 0 : index
    %c0_48 = arith.constant 0 : index
    %77 = vector.load %arg1[%c4, %c0_47, %c0_48] : memref<9x102x1xf32, #tpu.memory_space<vmem>>, vector<1x102x1xf32>
    %78 = vector.shape_cast %77 : vector<1x102x1xf32> to vector<102x1xf32>
    %c4_49 = arith.constant 4 : index
    %c0_50 = arith.constant 0 : index
    %c0_51 = arith.constant 0 : index
    %79 = vector.load %arg0[%c4_49, %c0_50, %c0_51] : memref<9x102x1xf32, #tpu.memory_space<vmem>>, vector<1x102x1xf32>
    %80 = vector.shape_cast %79 : vector<1x102x1xf32> to vector<102x1xf32>
    %81 = arith.mulf %80, %78 : vector<102x1xf32>
    %c1_52 = arith.constant 1 : index
    %c0_53 = arith.constant 0 : index
    %c0_54 = arith.constant 0 : index
    %82 = vector.load %arg2[%c1_52, %c0_53, %c0_54] : memref<3x1x64xf32, #tpu.memory_space<vmem>>, vector<1x1x64xf32>
    %83 = vector.shape_cast %82 : vector<1x1x64xf32> to vector<1x64xf32>
    %84 = vector.broadcast %81 : vector<102x1xf32> to vector<102x64xf32>
    %85 = vector.broadcast %83 : vector<1x64xf32> to vector<102x64xf32>
    %86 = arith.mulf %84, %85 : vector<102x64xf32>
    %87 = arith.addf %75, %86 : vector<102x64xf32>
    %88 = arith.addf %76, %78 : vector<102x1xf32>
    %c5 = arith.constant 5 : index
    %c0_55 = arith.constant 0 : index
    %c0_56 = arith.constant 0 : index
    %89 = vector.load %arg1[%c5, %c0_55, %c0_56] : memref<9x102x1xf32, #tpu.memory_space<vmem>>, vector<1x102x1xf32>
    %90 = vector.shape_cast %89 : vector<1x102x1xf32> to vector<102x1xf32>
    %c5_57 = arith.constant 5 : index
    %c0_58 = arith.constant 0 : index
    %c0_59 = arith.constant 0 : index
    %91 = vector.load %arg0[%c5_57, %c0_58, %c0_59] : memref<9x102x1xf32, #tpu.memory_space<vmem>>, vector<1x102x1xf32>
    %92 = vector.shape_cast %91 : vector<1x102x1xf32> to vector<102x1xf32>
    %93 = arith.mulf %92, %90 : vector<102x1xf32>
    %c2_60 = arith.constant 2 : index
    %c0_61 = arith.constant 0 : index
    %c0_62 = arith.constant 0 : index
    %94 = vector.load %arg2[%c2_60, %c0_61, %c0_62] : memref<3x1x64xf32, #tpu.memory_space<vmem>>, vector<1x1x64xf32>
    %95 = vector.shape_cast %94 : vector<1x1x64xf32> to vector<1x64xf32>
    %96 = vector.broadcast %93 : vector<102x1xf32> to vector<102x64xf32>
    %97 = vector.broadcast %95 : vector<1x64xf32> to vector<102x64xf32>
    %98 = arith.mulf %96, %97 : vector<102x64xf32>
    %99 = arith.addf %87, %98 : vector<102x64xf32>
    %100 = arith.addf %88, %90 : vector<102x1xf32>
    %cst_63 = arith.constant 0.000000e+00 : f32
    %101 = vector.broadcast %cst_63 : f32 to vector<102x1xf32>
    %102 = arith.cmpf ogt, %100, %101 : vector<102x1xf32>
    %103 = arith.extui %102 : vector<102x1xi1> to vector<102x1xi32>
    %104 = arith.sitofp %103 : vector<102x1xi32> to vector<102x1xf32>
    %cst_64 = arith.constant 3.000000e+00 : f32
    %105 = vector.broadcast %cst_64 : f32 to vector<102x1xf32>
    %106 = arith.mulf %105, %104 : vector<102x1xf32>
    %cst_65 = arith.constant 1.000000e+00 : f32
    %107 = vector.broadcast %cst_65 : f32 to vector<102x1xf32>
    %108 = arith.maximumf %100, %107 : vector<102x1xf32>
    %109 = arith.divf %106, %108 : vector<102x1xf32>
    %110 = vector.broadcast %109 : vector<102x1xf32> to vector<102x64xf32>
    %111 = arith.mulf %99, %110 : vector<102x64xf32>
    %112 = vector.broadcast %0 : vector<1x64xf32> to vector<102x64xf32>
    %113 = arith.addf %111, %112 : vector<102x64xf32>
    %cst_66 = arith.constant 0.000000e+00 : f32
    %114 = vector.broadcast %cst_66 : f32 to vector<102x64xf32>
    %115 = arith.maximumf %113, %114 : vector<102x64xf32>
    %116 = vector.broadcast %104 : vector<102x1xf32> to vector<102x64xf32>
    %117 = arith.mulf %115, %116 : vector<102x64xf32>
    %c1_67 = arith.constant 1 : index
    %c0_68 = arith.constant 0 : index
    %c0_69 = arith.constant 0 : index
    %118 = vector.load %arg4[%c1_67, %c0_68, %c0_69] : memref<3x64x32xf32, #tpu.memory_space<vmem>>, vector<1x64x32xf32>
    %119 = vector.shape_cast %118 : vector<1x64x32xf32> to vector<64x32xf32>
    %cst_70 = arith.constant dense<0.000000e+00> : vector<102x32xf32>
    %120 = tpu.matmul %117, %119, %cst_70 {dimension_numbers = #tpu.dot_dimension_numbers<[1], [0], [0], [1], [0, 0, 1, 1], [], []>} : vector<102x64xf32>, vector<64x32xf32>, vector<102x32xf32> -> vector<102x32xf32>
    %121 = arith.addf %61, %120 : vector<102x32xf32>
    %122 = arith.addf %62, %104 : vector<102x1xf32>
    %cst_71 = arith.constant 0.000000e+00 : f32
    %123 = vector.broadcast %cst_71 : f32 to vector<102x64xf32>
    %cst_72 = arith.constant 0.000000e+00 : f32
    %124 = vector.broadcast %cst_72 : f32 to vector<102x1xf32>
    %c6 = arith.constant 6 : index
    %c0_73 = arith.constant 0 : index
    %c0_74 = arith.constant 0 : index
    %125 = vector.load %arg1[%c6, %c0_73, %c0_74] : memref<9x102x1xf32, #tpu.memory_space<vmem>>, vector<1x102x1xf32>
    %126 = vector.shape_cast %125 : vector<1x102x1xf32> to vector<102x1xf32>
    %c6_75 = arith.constant 6 : index
    %c0_76 = arith.constant 0 : index
    %c0_77 = arith.constant 0 : index
    %127 = vector.load %arg0[%c6_75, %c0_76, %c0_77] : memref<9x102x1xf32, #tpu.memory_space<vmem>>, vector<1x102x1xf32>
    %128 = vector.shape_cast %127 : vector<1x102x1xf32> to vector<102x1xf32>
    %129 = arith.mulf %128, %126 : vector<102x1xf32>
    %c0_78 = arith.constant 0 : index
    %c0_79 = arith.constant 0 : index
    %c0_80 = arith.constant 0 : index
    %130 = vector.load %arg2[%c0_78, %c0_79, %c0_80] : memref<3x1x64xf32, #tpu.memory_space<vmem>>, vector<1x1x64xf32>
    %131 = vector.shape_cast %130 : vector<1x1x64xf32> to vector<1x64xf32>
    %132 = vector.broadcast %129 : vector<102x1xf32> to vector<102x64xf32>
    %133 = vector.broadcast %131 : vector<1x64xf32> to vector<102x64xf32>
    %134 = arith.mulf %132, %133 : vector<102x64xf32>
    %135 = arith.addf %123, %134 : vector<102x64xf32>
    %136 = arith.addf %124, %126 : vector<102x1xf32>
    %c7 = arith.constant 7 : index
    %c0_81 = arith.constant 0 : index
    %c0_82 = arith.constant 0 : index
    %137 = vector.load %arg1[%c7, %c0_81, %c0_82] : memref<9x102x1xf32, #tpu.memory_space<vmem>>, vector<1x102x1xf32>
    %138 = vector.shape_cast %137 : vector<1x102x1xf32> to vector<102x1xf32>
    %c7_83 = arith.constant 7 : index
    %c0_84 = arith.constant 0 : index
    %c0_85 = arith.constant 0 : index
    %139 = vector.load %arg0[%c7_83, %c0_84, %c0_85] : memref<9x102x1xf32, #tpu.memory_space<vmem>>, vector<1x102x1xf32>
    %140 = vector.shape_cast %139 : vector<1x102x1xf32> to vector<102x1xf32>
    %141 = arith.mulf %140, %138 : vector<102x1xf32>
    %c1_86 = arith.constant 1 : index
    %c0_87 = arith.constant 0 : index
    %c0_88 = arith.constant 0 : index
    %142 = vector.load %arg2[%c1_86, %c0_87, %c0_88] : memref<3x1x64xf32, #tpu.memory_space<vmem>>, vector<1x1x64xf32>
    %143 = vector.shape_cast %142 : vector<1x1x64xf32> to vector<1x64xf32>
    %144 = vector.broadcast %141 : vector<102x1xf32> to vector<102x64xf32>
    %145 = vector.broadcast %143 : vector<1x64xf32> to vector<102x64xf32>
    %146 = arith.mulf %144, %145 : vector<102x64xf32>
    %147 = arith.addf %135, %146 : vector<102x64xf32>
    %148 = arith.addf %136, %138 : vector<102x1xf32>
    %c8 = arith.constant 8 : index
    %c0_89 = arith.constant 0 : index
    %c0_90 = arith.constant 0 : index
    %149 = vector.load %arg1[%c8, %c0_89, %c0_90] : memref<9x102x1xf32, #tpu.memory_space<vmem>>, vector<1x102x1xf32>
    %150 = vector.shape_cast %149 : vector<1x102x1xf32> to vector<102x1xf32>
    %c8_91 = arith.constant 8 : index
    %c0_92 = arith.constant 0 : index
    %c0_93 = arith.constant 0 : index
    %151 = vector.load %arg0[%c8_91, %c0_92, %c0_93] : memref<9x102x1xf32, #tpu.memory_space<vmem>>, vector<1x102x1xf32>
    %152 = vector.shape_cast %151 : vector<1x102x1xf32> to vector<102x1xf32>
    %153 = arith.mulf %152, %150 : vector<102x1xf32>
    %c2_94 = arith.constant 2 : index
    %c0_95 = arith.constant 0 : index
    %c0_96 = arith.constant 0 : index
    %154 = vector.load %arg2[%c2_94, %c0_95, %c0_96] : memref<3x1x64xf32, #tpu.memory_space<vmem>>, vector<1x1x64xf32>
    %155 = vector.shape_cast %154 : vector<1x1x64xf32> to vector<1x64xf32>
    %156 = vector.broadcast %153 : vector<102x1xf32> to vector<102x64xf32>
    %157 = vector.broadcast %155 : vector<1x64xf32> to vector<102x64xf32>
    %158 = arith.mulf %156, %157 : vector<102x64xf32>
    %159 = arith.addf %147, %158 : vector<102x64xf32>
    %160 = arith.addf %148, %150 : vector<102x1xf32>
    %cst_97 = arith.constant 0.000000e+00 : f32
    %161 = vector.broadcast %cst_97 : f32 to vector<102x1xf32>
    %162 = arith.cmpf ogt, %160, %161 : vector<102x1xf32>
    %163 = arith.extui %162 : vector<102x1xi1> to vector<102x1xi32>
    %164 = arith.sitofp %163 : vector<102x1xi32> to vector<102x1xf32>
    %cst_98 = arith.constant 3.000000e+00 : f32
    %165 = vector.broadcast %cst_98 : f32 to vector<102x1xf32>
    %166 = arith.mulf %165, %164 : vector<102x1xf32>
    %cst_99 = arith.constant 1.000000e+00 : f32
    %167 = vector.broadcast %cst_99 : f32 to vector<102x1xf32>
    %168 = arith.maximumf %160, %167 : vector<102x1xf32>
    %169 = arith.divf %166, %168 : vector<102x1xf32>
    %170 = vector.broadcast %169 : vector<102x1xf32> to vector<102x64xf32>
    %171 = arith.mulf %159, %170 : vector<102x64xf32>
    %172 = vector.broadcast %0 : vector<1x64xf32> to vector<102x64xf32>
    %173 = arith.addf %171, %172 : vector<102x64xf32>
    %cst_100 = arith.constant 0.000000e+00 : f32
    %174 = vector.broadcast %cst_100 : f32 to vector<102x64xf32>
    %175 = arith.maximumf %173, %174 : vector<102x64xf32>
    %176 = vector.broadcast %164 : vector<102x1xf32> to vector<102x64xf32>
    %177 = arith.mulf %175, %176 : vector<102x64xf32>
    %c2_101 = arith.constant 2 : index
    %c0_102 = arith.constant 0 : index
    %c0_103 = arith.constant 0 : index
    %178 = vector.load %arg4[%c2_101, %c0_102, %c0_103] : memref<3x64x32xf32, #tpu.memory_space<vmem>>, vector<1x64x32xf32>
    %179 = vector.shape_cast %178 : vector<1x64x32xf32> to vector<64x32xf32>
    %cst_104 = arith.constant dense<0.000000e+00> : vector<102x32xf32>
    %180 = tpu.matmul %177, %179, %cst_104 {dimension_numbers = #tpu.dot_dimension_numbers<[1], [0], [0], [1], [0, 0, 1, 1], [], []>} : vector<102x64xf32>, vector<64x32xf32>, vector<102x32xf32> -> vector<102x32xf32>
    %181 = arith.addf %121, %180 : vector<102x32xf32>
    %182 = arith.addf %122, %164 : vector<102x1xf32>
    %cst_105 = arith.constant 0.000000e+00 : f32
    %183 = vector.broadcast %cst_105 : f32 to vector<102x1xf32>
    %184 = arith.cmpf ogt, %182, %183 : vector<102x1xf32>
    %185 = arith.extui %184 : vector<102x1xi1> to vector<102x1xi32>
    %186 = arith.sitofp %185 : vector<102x1xi32> to vector<102x1xf32>
    %cst_106 = arith.constant 3.000000e+00 : f32
    %187 = vector.broadcast %cst_106 : f32 to vector<102x1xf32>
    %188 = arith.mulf %187, %186 : vector<102x1xf32>
    %cst_107 = arith.constant 1.000000e+00 : f32
    %189 = vector.broadcast %cst_107 : f32 to vector<102x1xf32>
    %190 = arith.maximumf %182, %189 : vector<102x1xf32>
    %191 = arith.divf %188, %190 : vector<102x1xf32>
    %192 = vector.broadcast %191 : vector<102x1xf32> to vector<102x32xf32>
    %193 = arith.mulf %181, %192 : vector<102x32xf32>
    %c0_108 = arith.constant 0 : index
    %c0_109 = arith.constant 0 : index
    %194 = vector.load %arg5[%c0_108, %c0_109] : memref<1x32xf32, #tpu.memory_space<vmem>>, vector<1x32xf32>
    %195 = vector.broadcast %194 : vector<1x32xf32> to vector<102x32xf32>
    %196 = arith.addf %193, %195 : vector<102x32xf32>
    %cst_110 = arith.constant 0.000000e+00 : f32
    %197 = vector.broadcast %cst_110 : f32 to vector<102x32xf32>
    %198 = arith.maximumf %196, %197 : vector<102x32xf32>
    %199 = vector.broadcast %186 : vector<102x1xf32> to vector<102x32xf32>
    %200 = arith.mulf %198, %199 : vector<102x32xf32>
    %c0_111 = arith.constant 0 : index
    %c0_112 = arith.constant 0 : index
    %201 = vector.load %arg6[%c0_111, %c0_112] : memref<102x32xf32, #tpu.memory_space<vmem>>, vector<102x32xf32>
    tpu.vector_store %arg6[%c0_111, %c0_112], %200 {strides = array<i32>} : memref<102x32xf32, #tpu.memory_space<vmem>>, vector<102x32xf32>,
    return
  }
}

</mosaic_0001>

<llo_original>
// kernel: encoder_classifier_forward.3
$region0: #{encoder_classifier_forward.3}
  #allocation0 [shape = 'u32[]', space=smem, size = 0x4, offset = 0x4, fixed_abs, tag = 'smem constant byte address 0x4 - core index']
  #allocation1 [shape = 'u32[144,128]{1,0:T(1,128)}', space=vmem, size = 0x12000, scoped, tag = 'internal scratch']
  %s0 = inlined_call_operand.vmem [shape: f32[2,1632], index: 0, kind: input, shape index: {}]
  %s1 = inlined_call_operand.vmem [shape: f32[1632,32], index: 1, kind: input, shape index: {}]
  %s2 = inlined_call_operand.vmem [shape: f32[1,32], index: 2, kind: input, shape index: {}]
  %s3 = inlined_call_operand.vmem [shape: f32[32,128], index: 3, kind: input, shape index: {}]
  %s4 = inlined_call_operand.vmem [shape: f32[1,128], index: 4, kind: input, shape index: {}]
  %s5 = inlined_call_operand.hbm [shape: f32[2,128], index: 5, kind: output, shape index: {}]
  %s6 = sld [smem:[#allocation0]]
  $region30: #{encoder_classifier_forward.3} parent=0
    _
  %s8 = ssub.s32 1, %s6
  %s9 = scalar_select 0, %s8, %s6
  $region1: #{encoder_classifier_forward.3} parent=0
    #allocation2 [shape = 'u8[1024]{0}', space=vmem, size = 0x400, scoped, tag = 'output window, operand 0, single buffered']
    #allocation3 [shape = 's32[1]{0}', space=sflag, size = 0x4, scoped, tag = 'scoped memory for encoder_classifier_forward.3']
    %10 = vsyncpa [#allocation3], 0
    // Predicated region
    $region2: #{encoder_classifier_forward.3} parent=1 // pred_check
      _
    $region3: #{encoder_classifier_forward.3} parent=1 // pred_check_branch
      %12 = sbr.rel (0) target = $region5
    $region4: #{encoder_classifier_forward.3} parent=1 // pred_region
      _
    $region5: #{encoder_classifier_forward.3} parent=1 // pred_fallthru
      _
    // Predicated region
    $region6: #{encoder_classifier_forward.3} parent=1 // pred_check
      _
    $region7: #{encoder_classifier_forward.3} parent=1 // pred_check_branch
      %14 = sbr.rel (0) target = $region9
    $region8: #{encoder_classifier_forward.3} parent=1 // pred_region
      _
    $region9: #{encoder_classifier_forward.3} parent=1 // pred_fallthru
      _
    // Predicated region
    $region10: #{encoder_classifier_forward.3} parent=1 // pred_check
      _
    $region11: #{encoder_classifier_forward.3} parent=1 // pred_check_branch
      %16 = sbr.rel (0) target = $region13
    $region12: #{encoder_classifier_forward.3} parent=1 // pred_region
      _
    $region13: #{encoder_classifier_forward.3} parent=1 // pred_fallthru
      _
    // Predicated region
    $region14: #{encoder_classifier_forward.3} parent=1 // pred_check
      _
    $region15: #{encoder_classifier_forward.3} parent=1 // pred_check_branch
      %18 = sbr.rel (0) target = $region17
    $region16: #{encoder_classifier_forward.3} parent=1 // pred_region
      _
    $region17: #{encoder_classifier_forward.3} parent=1 // pred_fallthru
      _
    // Predicated region
    $region18: #{encoder_classifier_forward.3} parent=1 // pred_check
      _
    $region19: #{encoder_classifier_forward.3} parent=1 // pred_check_branch
      %20 = sbr.rel (0) target = $region21
    $region20: #{encoder_classifier_forward.3} parent=1 // pred_region
      _
    $region21: #{encoder_classifier_forward.3} parent=1 // pred_fallthru
      _
    %v21 = vld [vmem:[%s0] sm:$0xff]
    %v22 = vld [vmem:[%s0 + $0x8] sm:$0xff]
    %v23 = vld [vmem:[%s0 + $0x10] sm:$0xff]
    %v24 = vld [vmem:[%s0 + $0x18] sm:$0x3]
    %v25 = vld [vmem:[%s1] sm:$0xff]
    %v26 = vld [vmem:[%s1 + $0x8] sm:$0xff]
    %v27 = vld [vmem:[%s1 + $0x10] sm:$0xff]
    %v28 = vld [vmem:[%s1 + $0x18] sm:$0xff]
    %v29 = vld [vmem:[%s1 + $0x20] sm:$0xff]
    %v30 = vld [vmem:[%s1 + $0x28] sm:$0xff]
    %v31 = vld [vmem:[%s1 + $0x30] sm:$0xff]
    %v32 = vld [vmem:[%s1 + $0x38] sm:$0xff]
    %v33 = vld [vmem:[%s1 + $0x40] sm:$0xff]
    %v34 = vld [vmem:[%s1 + $0x48] sm:$0xff]
    %v35 = vld [vmem:[%s1 + $0x50] sm:$0xff]
    %v36 = vld [vmem:[%s1 + $0x58] sm:$0xff]
    %v37 = vld [vmem:[%s1 + $0x60] sm:$0xff]
    %v38 = vld [vmem:[%s1 + $0x68] sm:$0xff]
    %v39 = vld [vmem:[%s1 + $0x70] sm:$0xff]
    %v40 = vld [vmem:[%s1 + $0x78] sm:$0xff]
    %v41 = vld [vmem:[%s1 + $0x80] sm:$0xff]
    %v42 = vld [vmem:[%s1 + $0x88] sm:$0xff]
    %v43 = vld [vmem:[%s1 + $0x90] sm:$0xff]
    %v44 = vld [vmem:[%s1 + $0x98] sm:$0xff]
    %v45 = vld [vmem:[%s1 + $0xa0] sm:$0xff]
    %v46 = vld [vmem:[%s1 + $0xa8] sm:$0xff]
    %v47 = vld [vmem:[%s1 + $0xb0] sm:$0xff]
    %v48 = vld [vmem:[%s1 + $0xb8] sm:$0xff]
    %v49 = vld [vmem:[%s1 + $0xc0] sm:$0xff]
    %v50 = vld [vmem:[%s1 + $0xc8] sm:$0xff]
    %v51 = vld [vmem:[%s1 + $0xd0] sm:$0xff]
    %v52 = vld [vmem:[%s1 + $0xd8] sm:$0xff]
    %v53 = vld [vmem:[%s1 + $0xe0] sm:$0xff]
    %v54 = vld [vmem:[%s1 + $0xe8] sm:$0xff]
    %v55 = vld [vmem:[%s1 + $0xf0] sm:$0xff]
    %v56 = vld [vmem:[%s1 + $0xf8] sm:$0xff]
    %v57 = vld [vmem:[%s1 + $0x100] sm:$0xff]
    %v58 = vld [vmem:[%s1 + $0x108] sm:$0xff]
    %v59 = vld [vmem:[%s1 + $0x110] sm:$0xff]
    %v60 = vld [vmem:[%s1 + $0x118] sm:$0xff]
    %v61 = vld [vmem:[%s1 + $0x120] sm:$0xff]
    %v62 = vld [vmem:[%s1 + $0x128] sm:$0xff]
    %v63 = vld [vmem:[%s1 + $0x130] sm:$0xff]
    %v64 = vld [vmem:[%s1 + $0x138] sm:$0xff]
    %v65 = vld [vmem:[%s1 + $0x140] sm:$0xff]
    %v66 = vld [vmem:[%s1 + $0x148] sm:$0xff]
    %v67 = vld [vmem:[%s1 + $0x150] sm:$0xff]
    %v68 = vld [vmem:[%s1 + $0x158] sm:$0xff]
    %v69 = vld [vmem:[%s1 + $0x160] sm:$0xff]
    %v70 = vld [vmem:[%s1 + $0x168] sm:$0xff]
    %v71 = vld [vmem:[%s1 + $0x170] sm:$0xff]
    %v72 = vld [vmem:[%s1 + $0x178] sm:$0xff]
    %v73 = vld [vmem:[%s1 + $0x180] sm:$0xff]
    %v74 = vld [vmem:[%s1 + $0x188] sm:$0xff]
    %v75 = vld [vmem:[%s1 + $0x190] sm:$0xff]
    %v76 = vld [vmem:[%s1 + $0x198] sm:$0xff]
    %v77 = vld [vmem:[%s1 + $0x1a0] sm:$0xff]
    %v78 = vld [vmem:[%s1 + $0x1a8] sm:$0xff]
    %v79 = vld [vmem:[%s1 + $0x1b0] sm:$0xff]
    %v80 = vld [vmem:[%s1 + $0x1b8] sm:$0xff]
    %v81 = vld [vmem:[%s1 + $0x1c0] sm:$0xff]
    %v82 = vld [vmem:[%s1 + $0x1c8] sm:$0xff]
    %v83 = vld [vmem:[%s1 + $0x1d0] sm:$0xff]
    %v84 = vld [vmem:[%s1 + $0x1d8] sm:$0xff]
    %v85 = vld [vmem:[%s1 + $0x1e0] sm:$0xff]
    %v86 = vld [vmem:[%s1 + $0x1e8] sm:$0xff]
    %v87 = vld [vmem:[%s1 + $0x1f0] sm:$0xff]
    %v88 = vld [vmem:[%s1 + $0x1f8] sm:$0xff]
    %v89 = vld [vmem:[%s1 + $0x200] sm:$0xff]
    %v90 = vld [vmem:[%s1 + $0x208] sm:$0xff]
    %v91 = vld [vmem:[%s1 + $0x210] sm:$0xff]
    %v92 = vld [vmem:[%s1 + $0x218] sm:$0xff]
    %v93 = vld [vmem:[%s1 + $0x220] sm:$0xff]
    %v94 = vld [vmem:[%s1 + $0x228] sm:$0xff]
    %v95 = vld [vmem:[%s1 + $0x230] sm:$0xff]
    %v96 = vld [vmem:[%s1 + $0x238] sm:$0xff]
    %v97 = vld [vmem:[%s1 + $0x240] sm:$0xff]
    %v98 = vld [vmem:[%s1 + $0x248] sm:$0xff]
    %v99 = vld [vmem:[%s1 + $0x250] sm:$0xff]
    %v100 = vld [vmem:[%s1 + $0x258] sm:$0xff]
    %v101 = vld [vmem:[%s1 + $0x260] sm:$0xff]
    %v102 = vld [vmem:[%s1 + $0x268] sm:$0xff]
    %v103 = vld [vmem:[%s1 + $0x270] sm:$0xff]
    %v104 = vld [vmem:[%s1 + $0x278] sm:$0xff]
    %v105 = vld [vmem:[%s1 + $0x280] sm:$0xff]
    %v106 = vld [vmem:[%s1 + $0x288] sm:$0xff]
    %v107 = vld [vmem:[%s1 + $0x290] sm:$0xff]
    %v108 = vld [vmem:[%s1 + $0x298] sm:$0xff]
    %v109 = vld [vmem:[%s1 + $0x2a0] sm:$0xff]
    %v110 = vld [vmem:[%s1 + $0x2a8] sm:$0xff]
    %v111 = vld [vmem:[%s1 + $0x2b0] sm:$0xff]
    %v112 = vld [vmem:[%s1 + $0x2b8] sm:$0xff]
    %v113 = vld [vmem:[%s1 + $0x2c0] sm:$0xff]
    %v114 = vld [vmem:[%s1 + $0x2c8] sm:$0xff]
    %v115 = vld [vmem:[%s1 + $0x2d0] sm:$0xff]
    %v116 = vld [vmem:[%s1 + $0x2d8] sm:$0xff]
    %v117 = vld [vmem:[%s1 + $0x2e0] sm:$0xff]
    %v118 = vld [vmem:[%s1 + $0x2e8] sm:$0xff]
    %v119 = vld [vmem:[%s1 + $0x2f0] sm:$0xff]
    %v120 = vld [vmem:[%s1 + $0x2f8] sm:$0xff]
    %v121 = vld [vmem:[%s1 + $0x300] sm:$0xff]
    %v122 = vld [vmem:[%s1 + $0x308] sm:$0xff]
    %v123 = vld [vmem:[%s1 + $0x310] sm:$0xff]
    %v124 = vld [vmem:[%s1 + $0x318] sm:$0xff]
    %v125 = vld [vmem:[%s1 + $0x320] sm:$0xff]
    %v126 = vld [vmem:[%s1 + $0x328] sm:$0xff]
    %v127 = vld [vmem:[%s1 + $0x330] sm:$0xff]
    %v128 = vld [vmem:[%s1 + $0x338] sm:$0xff]
    %v129 = vld [vmem:[%s1 + $0x340] sm:$0xff]
    %v130 = vld [vmem:[%s1 + $0x348] sm:$0xff]
    %v131 = vld [vmem:[%s1 + $0x350] sm:$0xff]
    %v132 = vld [vmem:[%s1 + $0x358] sm:$0xff]
    %v133 = vld [vmem:[%s1 + $0x360] sm:$0xff]
    %v134 = vld [vmem:[%s1 + $0x368] sm:$0xff]
    %v135 = vld [vmem:[%s1 + $0x370] sm:$0xff]
    %v136 = vld [vmem:[%s1 + $0x378] sm:$0xff]
    %v137 = vld [vmem:[%s1 + $0x380] sm:$0xff]
    %v138 = vld [vmem:[%s1 + $0x388] sm:$0xff]
    %v139 = vld [vmem:[%s1 + $0x390] sm:$0xff]
    %v140 = vld [vmem:[%s1 + $0x398] sm:$0xff]
    %v141 = vld [vmem:[%s1 + $0x3a0] sm:$0xff]
    %v142 = vld [vmem:[%s1 + $0x3a8] sm:$0xff]
    %v143 = vld [vmem:[%s1 + $0x3b0] sm:$0xff]
    %v144 = vld [vmem:[%s1 + $0x3b8] sm:$0xff]
    %v145 = vld [vmem:[%s1 + $0x3c0] sm:$0xff]
    %v146 = vld [vmem:[%s1 + $0x3c8] sm:$0xff]
    %v147 = vld [vmem:[%s1 + $0x3d0] sm:$0xff]
    %v148 = vld [vmem:[%s1 + $0x3d8] sm:$0xff]
    %v149 = vld [vmem:[%s1 + $0x3e0] sm:$0xff]
    %v150 = vld [vmem:[%s1 + $0x3e8] sm:$0xff]
    %v151 = vld [vmem:[%s1 + $0x3f0] sm:$0xff]
    %v152 = vld [vmem:[%s1 + $0x3f8] sm:$0xff]
    %v153 = vld [vmem:[%s1 + $0x400] sm:$0xff]
    %v154 = vld [vmem:[%s1 + $0x408] sm:$0xff]
    %v155 = vld [vmem:[%s1 + $0x410] sm:$0xff]
    %v156 = vld [vmem:[%s1 + $0x418] sm:$0xff]
    %v157 = vld [vmem:[%s1 + $0x420] sm:$0xff]
    %v158 = vld [vmem:[%s1 + $0x428] sm:$0xff]
    %v159 = vld [vmem:[%s1 + $0x430] sm:$0xff]
    %v160 = vld [vmem:[%s1 + $0x438] sm:$0xff]
    %v161 = vld [vmem:[%s1 + $0x440] sm:$0xff]
    %v162 = vld [vmem:[%s1 + $0x448] sm:$0xff]
    %v163 = vld [vmem:[%s1 + $0x450] sm:$0xff]
    %v164 = vld [vmem:[%s1 + $0x458] sm:$0xff]
    %v165 = vld [vmem:[%s1 + $0x460] sm:$0xff]
    %v166 = vld [vmem:[%s1 + $0x468] sm:$0xff]
    %v167 = vld [vmem:[%s1 + $0x470] sm:$0xff]
    %v168 = vld [vmem:[%s1 + $0x478] sm:$0xff]
    %v169 = vld [vmem:[%s1 + $0x480] sm:$0xff]
    %v170 = vld [vmem:[%s1 + $0x488] sm:$0xff]
    %v171 = vld [vmem:[%s1 + $0x490] sm:$0xff]
    %v172 = vld [vmem:[%s1 + $0x498] sm:$0xff]
    %v173 = vld [vmem:[%s1 + $0x4a0] sm:$0xff]
    %v174 = vld [vmem:[%s1 + $0x4a8] sm:$0xff]
    %v175 = vld [vmem:[%s1 + $0x4b0] sm:$0xff]
    %v176 = vld [vmem:[%s1 + $0x4b8] sm:$0xff]
    %v177 = vld [vmem:[%s1 + $0x4c0] sm:$0xff]
    %v178 = vld [vmem:[%s1 + $0x4c8] sm:$0xff]
    %v179 = vld [vmem:[%s1 + $0x4d0] sm:$0xff]
    %v180 = vld [vmem:[%s1 + $0x4d8] sm:$0xff]
    %v181 = vld [vmem:[%s1 + $0x4e0] sm:$0xff]
    %v182 = vld [vmem:[%s1 + $0x4e8] sm:$0xff]
    %v183 = vld [vmem:[%s1 + $0x4f0] sm:$0xff]
    %v184 = vld [vmem:[%s1 + $0x4f8] sm:$0xff]
    %v185 = vld [vmem:[%s1 + $0x500] sm:$0xff]
    %v186 = vld [vmem:[%s1 + $0x508] sm:$0xff]
    %v187 = vld [vmem:[%s1 + $0x510] sm:$0xff]
    %v188 = vld [vmem:[%s1 + $0x518] sm:$0xff]
    %v189 = vld [vmem:[%s1 + $0x520] sm:$0xff]
    %v190 = vld [vmem:[%s1 + $0x528] sm:$0xff]
    %v191 = vld [vmem:[%s1 + $0x530] sm:$0xff]
    %v192 = vld [vmem:[%s1 + $0x538] sm:$0xff]
    %v193 = vld [vmem:[%s1 + $0x540] sm:$0xff]
    %v194 = vld [vmem:[%s1 + $0x548] sm:$0xff]
    %v195 = vld [vmem:[%s1 + $0x550] sm:$0xff]
    %v196 = vld [vmem:[%s1 + $0x558] sm:$0xff]
    %v197 = vld [vmem:[%s1 + $0x560] sm:$0xff]
    %v198 = vld [vmem:[%s1 + $0x568] sm:$0xff]
    %v199 = vld [vmem:[%s1 + $0x570] sm:$0xff]
    %v200 = vld [vmem:[%s1 + $0x578] sm:$0xff]
    %v201 = vld [vmem:[%s1 + $0x580] sm:$0xff]
    %v202 = vld [vmem:[%s1 + $0x588] sm:$0xff]
    %v203 = vld [vmem:[%s1 + $0x590] sm:$0xff]
    %v204 = vld [vmem:[%s1 + $0x598] sm:$0xff]
    %v205 = vld [vmem:[%s1 + $0x5a0] sm:$0xff]
    %v206 = vld [vmem:[%s1 + $0x5a8] sm:$0xff]
    %v207 = vld [vmem:[%s1 + $0x5b0] sm:$0xff]
    %v208 = vld [vmem:[%s1 + $0x5b8] sm:$0xff]
    %v209 = vld [vmem:[%s1 + $0x5c0] sm:$0xff]
    %v210 = vld [vmem:[%s1 + $0x5c8] sm:$0xff]
    %v211 = vld [vmem:[%s1 + $0x5d0] sm:$0xff]
    %v212 = vld [vmem:[%s1 + $0x5d8] sm:$0xff]
    %v213 = vld [vmem:[%s1 + $0x5e0] sm:$0xff]
    %v214 = vld [vmem:[%s1 + $0x5e8] sm:$0xff]
    %v215 = vld [vmem:[%s1 + $0x5f0] sm:$0xff]
    %v216 = vld [vmem:[%s1 + $0x5f8] sm:$0xff]
    %v217 = vld [vmem:[%s1 + $0x600] sm:$0xff]
    %v218 = vld [vmem:[%s1 + $0x608] sm:$0xff]
    %v219 = vld [vmem:[%s1 + $0x610] sm:$0xff]
    %v220 = vld [vmem:[%s1 + $0x618] sm:$0xff]
    %v221 = vld [vmem:[%s1 + $0x620] sm:$0xff]
    %v222 = vld [vmem:[%s1 + $0x628] sm:$0xff]
    %v223 = vld [vmem:[%s1 + $0x630] sm:$0xff]
    %v224 = vld [vmem:[%s1 + $0x638] sm:$0xff]
    %v225 = vld [vmem:[%s1 + $0x640] sm:$0xff]
    %v226 = vld [vmem:[%s1 + $0x648] sm:$0xff]
    %v227 = vld [vmem:[%s1 + $0x650] sm:$0xff]
    %v228 = vld [vmem:[%s1 + $0x658] sm:$0xff]
    %v229 = vld [vmem:[%s2] sm:$0x1]
    %v231 = vlaneseq
    %v232 = vshrl.u32 %v231, 7
    %v233 = vsub.s32 0, %v232
    %v234 = vrot.slane %v229, %v233
    %v240 = vcombine.high %v21, %v21
    %v242 = vunpack.c.l.s4 1983009808
    %v243 = vunpack.c.0.s8 %v242
    %v244 = vlaneseq
    %v245 = vshrl.u32 %v244, 7
    %v246 = vsub.s32 %v243, %v245
    %v247 = vrot.slane %v21, %v246
    %v249 = vunpack.c.l.s4 1983009808
    %v250 = vunpack.c.0.s8 %v249
    %v251 = vlaneseq
    %v252 = vshrl.u32 %v251, 7
    %v253 = vsub.s32 %v250, %v252
    %v254 = vrot.slane %v240, %v253
    %v255 = vcombine.high %v247, %v247
    %v256 = vcombine.high %v254, %v254
    %v257 = vcombine.high %v22, %v22
    %v259 = vunpack.c.l.s4 1983009808
    %v260 = vunpack.c.0.s8 %v259
    %v261 = vlaneseq
    %v262 = vshrl.u32 %v261, 7
    %v263 = vsub.s32 %v260, %v262
    %v264 = vrot.slane %v22, %v263
    %v266 = vunpack.c.l.s4 1983009808
    %v267 = vunpack.c.0.s8 %v266
    %v268 = vlaneseq
    %v269 = vshrl.u32 %v268, 7
    %v270 = vsub.s32 %v267, %v269
    %v271 = vrot.slane %v257, %v270
    %v272 = vcombine.high %v264, %v264
    %v273 = vcombine.high %v271, %v271
    %v274 = vcombine.high %v23, %v23
    %v276 = vunpack.c.l.s4 1983009808
    %v277 = vunpack.c.0.s8 %v276
    %v278 = vlaneseq
    %v279 = vshrl.u32 %v278, 7
    %v280 = vsub.s32 %v277, %v279
    %v281 = vrot.slane %v23, %v280
    %v283 = vunpack.c.l.s4 1983009808
    %v284 = vunpack.c.0.s8 %v283
    %v285 = vlaneseq
    %v286 = vshrl.u32 %v285, 7
    %v287 = vsub.s32 %v284, %v286
    %v288 = vrot.slane %v274, %v287
    %v289 = vcombine.high %v281, %v281
    %v290 = vcombine.high %v288, %v288
    %v292 = vunpack.c.l.s4 1983009808
    %v293 = vunpack.c.0.s8 %v292
    %v294 = vlaneseq
    %v295 = vshrl.u32 %v294, 7
    %v296 = vsub.s32 %v293, %v295
    %v297 = vrot.slane %v24, %v296
    %vm310 = vcmask 785408
    %v311 = vsel %vm310, %v297, 0
    %313 = vmatprep.subr.mxu0 0.0
    %314 = vmatpush1.msra.mxu0 %v25
    %315 = vmatprep.subr.mxu0 0.0
    %316 = vmatpush1.msra.mxu0 %v26
    %317 = vmatprep.subr.mxu0 0.0
    %318 = vmatpush1.msra.mxu0 %v27
    %319 = vmatprep.subr.mxu0 0.0
    %320 = vmatpush1.msra.mxu0 %v28
    %321 = vmatprep.subr.mxu0 0.0
    %322 = vmatpush1.msra.mxu0 %v29
    %323 = vmatprep.subr.mxu0 0.0
    %324 = vmatpush1.msra.mxu0 %v30
    %325 = vmatprep.subr.mxu0 0.0
    %326 = vmatpush1.msra.mxu0 %v31
    %327 = vmatprep.subr.mxu0 0.0
    %328 = vmatpush1.msra.mxu0 %v32
    %329 = vmatprep.subr.mxu0 0.0
    %330 = vmatpush1.msra.mxu0 %v33
    %331 = vmatprep.subr.mxu0 0.0
    %332 = vmatpush1.msra.mxu0 %v34
    %333 = vmatprep.subr.mxu0 0.0
    %334 = vmatpush1.msra.mxu0 %v35
    %335 = vmatprep.subr.mxu0 0.0
    %336 = vmatpush1.msra.mxu0 %v36
    %337 = vmatprep.subr.mxu0 0.0
    %338 = vmatpush1.msra.mxu0 %v37
    %339 = vmatprep.subr.mxu0 0.0
    %340 = vmatpush1.msra.mxu0 %v38
    %341 = vmatprep.subr.mxu0 0.0
    %342 = vmatpush1.msra.mxu0 %v39
    %343 = vmatprep.subr.mxu0 0.0
    %344 = vmatpush1.msra.mxu0 %v40
    %345 = vmatprep.subr.mxu0 0.0
    %346 = vmatpush1.msra.mxu0 %v41
    %347 = vmatprep.subr.mxu0 0.0
    %348 = vmatpush1.msra.mxu0 %v42
    %349 = vmatprep.subr.mxu0 0.0
    %350 = vmatpush1.msra.mxu0 %v43
    %351 = vmatprep.subr.mxu0 0.0
    %352 = vmatpush1.msra.mxu0 %v44
    %353 = vmatprep.subr.mxu0 0.0
    %354 = vmatpush1.msra.mxu0 %v45
    %355 = vmatprep.subr.mxu0 0.0
    %356 = vmatpush1.msra.mxu0 %v46
    %357 = vmatprep.subr.mxu0 0.0
    %358 = vmatpush1.msra.mxu0 %v47
    %359 = vmatprep.subr.mxu0 0.0
    %360 = vmatpush1.msra.mxu0 %v48
    %361 = vmatprep.subr.mxu0 0.0
    %362 = vmatpush1.msra.mxu0 %v49
    %363 = vmatprep.subr.mxu0 0.0
    %364 = vmatpush1.msra.mxu0 %v50
    %365 = vmatprep.subr.mxu0 0.0
    %366 = vmatpush1.msra.mxu0 %v51
    %367 = vmatprep.subr.mxu0 0.0
    %368 = vmatpush1.msra.mxu0 %v52
    %369 = vmatprep.subr.mxu0 0.0
    %370 = vmatpush1.msra.mxu0 %v53
    %371 = vmatprep.subr.mxu0 0.0
    %372 = vmatpush1.msra.mxu0 %v54
    %373 = vmatprep.subr.mxu0 0.0
    %374 = vmatpush1.msra.mxu0 %v55
    %375 = vmatprep.subr.mxu0 0.0
    %376 = vmatpush1.msra.mxu0 %v56
    %377 = vmatprep.mubr.f32.mxu0 %v255
    %378 = vmatmul.mubr.f32.gmra.mrb[0].mxu0 %v247
    %v379 = vpop.f32.mrb[0].mxu0
    %v380 = vadd.f32 %v234, %v379
    %v381 = vpop.f32.mrb[0].mxu0
    %382 = vdwg.mxu0
    %383 = vmatprep.subr.mxu0 0.0
    %384 = vmatpush1.msra.mxu0 %v57
    %385 = vmatprep.subr.mxu0 0.0
    %386 = vmatpush1.msra.mxu0 %v58
    %387 = vmatprep.subr.mxu0 0.0
    %388 = vmatpush1.msra.mxu0 %v59
    %389 = vmatprep.subr.mxu0 0.0
    %390 = vmatpush1.msra.mxu0 %v60
    %391 = vmatprep.subr.mxu0 0.0
    %392 = vmatpush1.msra.mxu0 %v61
    %393 = vmatprep.subr.mxu0 0.0
    %394 = vmatpush1.msra.mxu0 %v62
    %395 = vmatprep.subr.mxu0 0.0
    %396 = vmatpush1.msra.mxu0 %v63
    %397 = vmatprep.subr.mxu0 0.0
    %398 = vmatpush1.msra.mxu0 %v64
    %399 = vmatprep.subr.mxu0 0.0
    %400 = vmatpush1.msra.mxu0 %v65
    %401 = vmatprep.subr.mxu0 0.0
    %402 = vmatpush1.msra.mxu0 %v66
    %403 = vmatprep.subr.mxu0 0.0
    %404 = vmatpush1.msra.mxu0 %v67
    %405 = vmatprep.subr.mxu0 0.0
    %406 = vmatpush1.msra.mxu0 %v68
    %407 = vmatprep.subr.mxu0 0.0
    %408 = vmatpush1.msra.mxu0 %v69
    %409 = vmatprep.subr.mxu0 0.0
    %410 = vmatpush1.msra.mxu0 %v70
    %411 = vmatprep.subr.mxu0 0.0
    %412 = vmatpush1.msra.mxu0 %v71
    %413 = vmatprep.subr.mxu0 0.0
    %414 = vmatpush1.msra.mxu0 %v72
    %415 = vmatprep.subr.mxu0 0.0
    %416 = vmatpush1.msra.mxu0 %v73
    %417 = vmatprep.subr.mxu0 0.0
    %418 = vmatpush1.msra.mxu0 %v74
    %419 = vmatprep.subr.mxu0 0.0
    %420 = vmatpush1.msra.mxu0 %v75
    %421 = vmatprep.subr.mxu0 0.0
    %422 = vmatpush1.msra.mxu0 %v76
    %423 = vmatprep.subr.mxu0 0.0
    %424 = vmatpush1.msra.mxu0 %v77
    %425 = vmatprep.subr.mxu0 0.0
    %426 = vmatpush1.msra.mxu0 %v78
    %427 = vmatprep.subr.mxu0 0.0
    %428 = vmatpush1.msra.mxu0 %v79
    %429 = vmatprep.subr.mxu0 0.0
    %430 = vmatpush1.msra.mxu0 %v80
    %431 = vmatprep.subr.mxu0 0.0
    %432 = vmatpush1.msra.mxu0 %v81
    %433 = vmatprep.subr.mxu0 0.0
    %434 = vmatpush1.msra.mxu0 %v82
    %435 = vmatprep.subr.mxu0 0.0
    %436 = vmatpush1.msra.mxu0 %v83
    %437 = vmatprep.subr.mxu0 0.0
    %438 = vmatpush1.msra.mxu0 %v84
    %439 = vmatprep.subr.mxu0 0.0
    %440 = vmatpush1.msra.mxu0 %v85
    %441 = vmatprep.subr.mxu0 0.0
    %442 = vmatpush1.msra.mxu0 %v86
    %443 = vmatprep.subr.mxu0 0.0
    %444 = vmatpush1.msra.mxu0 %v87
    %445 = vmatprep.subr.mxu0 0.0
    %446 = vmatpush1.msra.mxu0 %v88
    %447 = vmatprep.mubr.f32.mxu0 %v256
    %448 = vmatmul.mubr.f32.gmra.mrb[0].mxu0 %v254
    %v449 = vpop.f32.mrb[0].mxu0
    %v450 = vadd.f32 %v380, %v449
    %v451 = vpop.f32.mrb[0].mxu0
    %452 = vdwg.mxu0
    %453 = vmatprep.subr.mxu0 0.0
    %454 = vmatpush1.msra.mxu0 %v89
    %455 = vmatprep.subr.mxu0 0.0
    %456 = vmatpush1.msra.mxu0 %v90
    %457 = vmatprep.subr.mxu0 0.0
    %458 = vmatpush1.msra.mxu0 %v91
    %459 = vmatprep.subr.mxu0 0.0
    %460 = vmatpush1.msra.mxu0 %v92
    %461 = vmatprep.subr.mxu0 0.0
    %462 = vmatpush1.msra.mxu0 %v93
    %463 = vmatprep.subr.mxu0 0.0
    %464 = vmatpush1.msra.mxu0 %v94
    %465 = vmatprep.subr.mxu0 0.0
    %466 = vmatpush1.msra.mxu0 %v95
    %467 = vmatprep.subr.mxu0 0.0
    %468 = vmatpush1.msra.mxu0 %v96
    %469 = vmatprep.subr.mxu0 0.0
    %470 = vmatpush1.msra.mxu0 %v97
    %471 = vmatprep.subr.mxu0 0.0
    %472 = vmatpush1.msra.mxu0 %v98
    %473 = vmatprep.subr.mxu0 0.0
    %474 = vmatpush1.msra.mxu0 %v99
    %475 = vmatprep.subr.mxu0 0.0
    %476 = vmatpush1.msra.mxu0 %v100
    %477 = vmatprep.subr.mxu0 0.0
    %478 = vmatpush1.msra.mxu0 %v101
    %479 = vmatprep.subr.mxu0 0.0
    %480 = vmatpush1.msra.mxu0 %v102
    %481 = vmatprep.subr.mxu0 0.0
    %482 = vmatpush1.msra.mxu0 %v103
    %483 = vmatprep.subr.mxu0 0.0
    %484 = vmatpush1.msra.mxu0 %v104
    %485 = vmatprep.subr.mxu0 0.0
    %486 = vmatpush1.msra.mxu0 %v105
    %487 = vmatprep.subr.mxu0 0.0
    %488 = vmatpush1.msra.mxu0 %v106
    %489 = vmatprep.subr.mxu0 0.0
    %490 = vmatpush1.msra.mxu0 %v107
    %491 = vmatprep.subr.mxu0 0.0
    %492 = vmatpush1.msra.mxu0 %v108
    %493 = vmatprep.subr.mxu0 0.0
    %494 = vmatpush1.msra.mxu0 %v109
    %495 = vmatprep.subr.mxu0 0.0
    %496 = vmatpush1.msra.mxu0 %v110
    %497 = vmatprep.subr.mxu0 0.0
    %498 = vmatpush1.msra.mxu0 %v111
    %499 = vmatprep.subr.mxu0 0.0
    %500 = vmatpush1.msra.mxu0 %v112
    %501 = vmatprep.subr.mxu0 0.0
    %502 = vmatpush1.msra.mxu0 %v113
    %503 = vmatprep.subr.mxu0 0.0
    %504 = vmatpush1.msra.mxu0 %v114
    %505 = vmatprep.subr.mxu0 0.0
    %506 = vmatpush1.msra.mxu0 %v115
    %507 = vmatprep.subr.mxu0 0.0
    %508 = vmatpush1.msra.mxu0 %v116
    %509 = vmatprep.subr.mxu0 0.0
    %510 = vmatpush1.msra.mxu0 %v117
    %511 = vmatprep.subr.mxu0 0.0
    %512 = vmatpush1.msra.mxu0 %v118
    %513 = vmatprep.subr.mxu0 0.0
    %514 = vmatpush1.msra.mxu0 %v119
    %515 = vmatprep.subr.mxu0 0.0
    %516 = vmatpush1.msra.mxu0 %v120
    %517 = vmatprep.mubr.f32.mxu0 %v272
    %518 = vmatmul.mubr.f32.gmra.mrb[0].mxu0 %v264
    %v519 = vpop.f32.mrb[0].mxu0
    %v520 = vadd.f32 %v450, %v519
    %v521 = vpop.f32.mrb[0].mxu0
    %522 = vdwg.mxu0
    %523 = vmatprep.subr.mxu0 0.0
    %524 = vmatpush1.msra.mxu0 %v121
    %525 = vmatprep.subr.mxu0 0.0
    %526 = vmatpush1.msra.mxu0 %v122
    %527 = vmatprep.subr.mxu0 0.0
    %528 = vmatpush1.msra.mxu0 %v123
    %529 = vmatprep.subr.mxu0 0.0
    %530 = vmatpush1.msra.mxu0 %v124
    %531 = vmatprep.subr.mxu0 0.0
    %532 = vmatpush1.msra.mxu0 %v125
    %533 = vmatprep.subr.mxu0 0.0
    %534 = vmatpush1.msra.mxu0 %v126
    %535 = vmatprep.subr.mxu0 0.0
    %536 = vmatpush1.msra.mxu0 %v127
    %537 = vmatprep.subr.mxu0 0.0
    %538 = vmatpush1.msra.mxu0 %v128
    %539 = vmatprep.subr.mxu0 0.0
    %540 = vmatpush1.msra.mxu0 %v129
    %541 = vmatprep.subr.mxu0 0.0
    %542 = vmatpush1.msra.mxu0 %v130
    %543 = vmatprep.subr.mxu0 0.0
    %544 = vmatpush1.msra.mxu0 %v131
    %545 = vmatprep.subr.mxu0 0.0
    %546 = vmatpush1.msra.mxu0 %v132
    %547 = vmatprep.subr.mxu0 0.0
    %548 = vmatpush1.msra.mxu0 %v133
    %549 = vmatprep.subr.mxu0 0.0
    %550 = vmatpush1.msra.mxu0 %v134
    %551 = vmatprep.subr.mxu0 0.0
    %552 = vmatpush1.msra.mxu0 %v135
    %553 = vmatprep.subr.mxu0 0.0
    %554 = vmatpush1.msra.mxu0 %v136
    %555 = vmatprep.subr.mxu0 0.0
    %556 = vmatpush1.msra.mxu0 %v137
    %557 = vmatprep.subr.mxu0 0.0
    %558 = vmatpush1.msra.mxu0 %v138
    %559 = vmatprep.subr.mxu0 0.0
    %560 = vmatpush1.msra.mxu0 %v139
    %561 = vmatprep.subr.mxu0 0.0
    %562 = vmatpush1.msra.mxu0 %v140
    %563 = vmatprep.subr.mxu0 0.0
    %564 = vmatpush1.msra.mxu0 %v141
    %565 = vmatprep.subr.mxu0 0.0
    %566 = vmatpush1.msra.mxu0 %v142
    %567 = vmatprep.subr.mxu0 0.0
    %568 = vmatpush1.msra.mxu0 %v143
    %569 = vmatprep.subr.mxu0 0.0
    %570 = vmatpush1.msra.mxu0 %v144
    %571 = vmatprep.subr.mxu0 0.0
    %572 = vmatpush1.msra.mxu0 %v145
    %573 = vmatprep.subr.mxu0 0.0
    %574 = vmatpush1.msra.mxu0 %v146
    %575 = vmatprep.subr.mxu0 0.0
    %576 = vmatpush1.msra.mxu0 %v147
    %577 = vmatprep.subr.mxu0 0.0
    %578 = vmatpush1.msra.mxu0 %v148
    %579 = vmatprep.subr.mxu0 0.0
    %580 = vmatpush1.msra.mxu0 %v149
    %581 = vmatprep.subr.mxu0 0.0
    %582 = vmatpush1.msra.mxu0 %v150
    %583 = vmatprep.subr.mxu0 0.0
    %584 = vmatpush1.msra.mxu0 %v151
    %585 = vmatprep.subr.mxu0 0.0
    %586 = vmatpush1.msra.mxu0 %v152
    %587 = vmatprep.mubr.f32.mxu0 %v273
    %588 = vmatmul.mubr.f32.gmra.mrb[0].mxu0 %v271
    %v589 = vpop.f32.mrb[0].mxu0
    %v590 = vadd.f32 %v520, %v589
    %v591 = vpop.f32.mrb[0].mxu0
    %592 = vdwg.mxu0
    %593 = vmatprep.subr.mxu0 0.0
    %594 = vmatpush1.msra.mxu0 %v153
    %595 = vmatprep.subr.mxu0 0.0
    %596 = vmatpush1.msra.mxu0 %v154
    %597 = vmatprep.subr.mxu0 0.0
    %598 = vmatpush1.msra.mxu0 %v155
    %599 = vmatprep.subr.mxu0 0.0
    %600 = vmatpush1.msra.mxu0 %v156
    %601 = vmatprep.subr.mxu0 0.0
    %602 = vmatpush1.msra.mxu0 %v157
    %603 = vmatprep.subr.mxu0 0.0
    %604 = vmatpush1.msra.mxu0 %v158
    %605 = vmatprep.subr.mxu0 0.0
    %606 = vmatpush1.msra.mxu0 %v159
    %607 = vmatprep.subr.mxu0 0.0
    %608 = vmatpush1.msra.mxu0 %v160
    %609 = vmatprep.subr.mxu0 0.0
    %610 = vmatpush1.msra.mxu0 %v161
    %611 = vmatprep.subr.mxu0 0.0
    %612 = vmatpush1.msra.mxu0 %v162
    %613 = vmatprep.subr.mxu0 0.0
    %614 = vmatpush1.msra.mxu0 %v163
    %615 = vmatprep.subr.mxu0 0.0
    %616 = vmatpush1.msra.mxu0 %v164
    %617 = vmatprep.subr.mxu0 0.0
    %618 = vmatpush1.msra.mxu0 %v165
    %619 = vmatprep.subr.mxu0 0.0
    %620 = vmatpush1.msra.mxu0 %v166
    %621 = vmatprep.subr.mxu0 0.0
    %622 = vmatpush1.msra.mxu0 %v167
    %623 = vmatprep.subr.mxu0 0.0
    %624 = vmatpush1.msra.mxu0 %v168
    %625 = vmatprep.subr.mxu0 0.0
    %626 = vmatpush1.msra.mxu0 %v169
    %627 = vmatprep.subr.mxu0 0.0
    %628 = vmatpush1.msra.mxu0 %v170
    %629 = vmatprep.subr.mxu0 0.0
    %630 = vmatpush1.msra.mxu0 %v171
    %631 = vmatprep.subr.mxu0 0.0
    %632 = vmatpush1.msra.mxu0 %v172
    %633 = vmatprep.subr.mxu0 0.0
    %634 = vmatpush1.msra.mxu0 %v173
    %635 = vmatprep.subr.mxu0 0.0
    %636 = vmatpush1.msra.mxu0 %v174
    %637 = vmatprep.subr.mxu0 0.0
    %638 = vmatpush1.msra.mxu0 %v175
    %639 = vmatprep.subr.mxu0 0.0
    %640 = vmatpush1.msra.mxu0 %v176
    %641 = vmatprep.subr.mxu0 0.0
    %642 = vmatpush1.msra.mxu0 %v177
    %643 = vmatprep.subr.mxu0 0.0
    %644 = vmatpush1.msra.mxu0 %v178
    %645 = vmatprep.subr.mxu0 0.0
    %646 = vmatpush1.msra.mxu0 %v179
    %647 = vmatprep.subr.mxu0 0.0
    %648 = vmatpush1.msra.mxu0 %v180
    %649 = vmatprep.subr.mxu0 0.0
    %650 = vmatpush1.msra.mxu0 %v181
    %651 = vmatprep.subr.mxu0 0.0
    %652 = vmatpush1.msra.mxu0 %v182
    %653 = vmatprep.subr.mxu0 0.0
    %654 = vmatpush1.msra.mxu0 %v183
    %655 = vmatprep.subr.mxu0 0.0
    %656 = vmatpush1.msra.mxu0 %v184
    %657 = vmatprep.mubr.f32.mxu0 %v289
    %658 = vmatmul.mubr.f32.gmra.mrb[0].mxu0 %v281
    %v659 = vpop.f32.mrb[0].mxu0
    %v660 = vadd.f32 %v590, %v659
    %v661 = vpop.f32.mrb[0].mxu0
    %662 = vdwg.mxu0
    %663 = vmatprep.subr.mxu0 0.0
    %664 = vmatpush1.msra.mxu0 %v185
    %665 = vmatprep.subr.mxu0 0.0
    %666 = vmatpush1.msra.mxu0 %v186
    %667 = vmatprep.subr.mxu0 0.0
    %668 = vmatpush1.msra.mxu0 %v187
    %669 = vmatprep.subr.mxu0 0.0
    %670 = vmatpush1.msra.mxu0 %v188
    %671 = vmatprep.subr.mxu0 0.0
    %672 = vmatpush1.msra.mxu0 %v189
    %673 = vmatprep.subr.mxu0 0.0
    %674 = vmatpush1.msra.mxu0 %v190
    %675 = vmatprep.subr.mxu0 0.0
    %676 = vmatpush1.msra.mxu0 %v191
    %677 = vmatprep.subr.mxu0 0.0
    %678 = vmatpush1.msra.mxu0 %v192
    %679 = vmatprep.subr.mxu0 0.0
    %680 = vmatpush1.msra.mxu0 %v193
    %681 = vmatprep.subr.mxu0 0.0
    %682 = vmatpush1.msra.mxu0 %v194
    %683 = vmatprep.subr.mxu0 0.0
    %684 = vmatpush1.msra.mxu0 %v195
    %685 = vmatprep.subr.mxu0 0.0
    %686 = vmatpush1.msra.mxu0 %v196
    %687 = vmatprep.subr.mxu0 0.0
    %688 = vmatpush1.msra.mxu0 %v197
    %689 = vmatprep.subr.mxu0 0.0
    %690 = vmatpush1.msra.mxu0 %v198
    %691 = vmatprep.subr.mxu0 0.0
    %692 = vmatpush1.msra.mxu0 %v199
    %693 = vmatprep.subr.mxu0 0.0
    %694 = vmatpush1.msra.mxu0 %v200
    %695 = vmatprep.subr.mxu0 0.0
    %696 = vmatpush1.msra.mxu0 %v201
    %697 = vmatprep.subr.mxu0 0.0
    %698 = vmatpush1.msra.mxu0 %v202
    %699 = vmatprep.subr.mxu0 0.0
    %700 = vmatpush1.msra.mxu0 %v203
    %701 = vmatprep.subr.mxu0 0.0
    %702 = vmatpush1.msra.mxu0 %v204
    %703 = vmatprep.subr.mxu0 0.0
    %704 = vmatpush1.msra.mxu0 %v205
    %705 = vmatprep.subr.mxu0 0.0
    %706 = vmatpush1.msra.mxu0 %v206
    %707 = vmatprep.subr.mxu0 0.0
    %708 = vmatpush1.msra.mxu0 %v207
    %709 = vmatprep.subr.mxu0 0.0
    %710 = vmatpush1.msra.mxu0 %v208
    %711 = vmatprep.subr.mxu0 0.0
    %712 = vmatpush1.msra.mxu0 %v209
    %713 = vmatprep.subr.mxu0 0.0
    %714 = vmatpush1.msra.mxu0 %v210
    %715 = vmatprep.subr.mxu0 0.0
    %716 = vmatpush1.msra.mxu0 %v211
    %717 = vmatprep.subr.mxu0 0.0
    %718 = vmatpush1.msra.mxu0 %v212
    %719 = vmatprep.subr.mxu0 0.0
    %720 = vmatpush1.msra.mxu0 %v213
    %721 = vmatprep.subr.mxu0 0.0
    %722 = vmatpush1.msra.mxu0 %v214
    %723 = vmatprep.subr.mxu0 0.0
    %724 = vmatpush1.msra.mxu0 %v215
    %725 = vmatprep.subr.mxu0 0.0
    %726 = vmatpush1.msra.mxu0 %v216
    %727 = vmatprep.mubr.f32.mxu0 %v290
    %728 = vmatmul.mubr.f32.gmra.mrb[0].mxu0 %v288
    %v729 = vpop.f32.mrb[0].mxu0
    %v730 = vadd.f32 %v660, %v729
    %v731 = vpop.f32.mrb[0].mxu0
    %732 = vdwg.mxu0
    %733 = vmatprep.subr.mxu0 0.0
    %734 = vmatpush1.msra.mxu0 %v217
    %735 = vmatprep.subr.mxu0 0.0
    %736 = vmatpush1.msra.mxu0 %v218
    %737 = vmatprep.subr.mxu0 0.0
    %738 = vmatpush1.msra.mxu0 %v219
    %739 = vmatprep.subr.mxu0 0.0
    %740 = vmatpush1.msra.mxu0 %v220
    %741 = vmatprep.subr.mxu0 0.0
    %742 = vmatpush1.msra.mxu0 %v221
    %743 = vmatprep.subr.mxu0 0.0
    %744 = vmatpush1.msra.mxu0 %v222
    %745 = vmatprep.subr.mxu0 0.0
    %746 = vmatpush1.msra.mxu0 %v223
    %747 = vmatprep.subr.mxu0 0.0
    %748 = vmatpush1.msra.mxu0 %v224
    %749 = vmatprep.subr.mxu0 0.0
    %750 = vmatpush1.msra.mxu0 %v225
    %751 = vmatprep.subr.mxu0 0.0
    %752 = vmatpush1.msra.mxu0 %v226
    %753 = vmatprep.subr.mxu0 0.0
    %754 = vmatpush1.msra.mxu0 %v227
    %755 = vmatprep.subr.mxu0 0.0
    %756 = vmatpush1.msra.mxu0 %v228
    %757 = vmatprep.subr.mxu0 0.0
    %758 = vmatpush1.msra.mxu0 0.0
    %759 = vmatprep.subr.mxu0 0.0
    %760 = vmatpush1.msra.mxu0 0.0
    %761 = vmatprep.subr.mxu0 0.0
    %762 = vmatpush1.msra.mxu0 0.0
    %763 = vmatprep.subr.mxu0 0.0
    %764 = vmatpush1.msra.mxu0 0.0
    %765 = vmatprep.subr.mxu0 0.0
    %766 = vmatpush1.msra.mxu0 0.0
    %767 = vmatprep.subr.mxu0 0.0
    %768 = vmatpush1.msra.mxu0 0.0
    %769 = vmatprep.subr.mxu0 0.0
    %770 = vmatpush1.msra.mxu0 0.0
    %771 = vmatprep.subr.mxu0 0.0
    %772 = vmatpush1.msra.mxu0 0.0
    %773 = vmatprep.subr.mxu0 0.0
    %774 = vmatpush1.msra.mxu0 0.0
    %775 = vmatprep.subr.mxu0 0.0
    %776 = vmatpush1.msra.mxu0 0.0
    %777 = vmatprep.subr.mxu0 0.0
    %778 = vmatpush1.msra.mxu0 0.0
    %779 = vmatprep.subr.mxu0 0.0
    %780 = vmatpush1.msra.mxu0 0.0
    %781 = vmatprep.subr.mxu0 0.0
    %782 = vmatpush1.msra.mxu0 0.0
    %783 = vmatprep.subr.mxu0 0.0
    %784 = vmatpush1.msra.mxu0 0.0
    %785 = vmatprep.subr.mxu0 0.0
    %786 = vmatpush1.msra.mxu0 0.0
    %787 = vmatprep.subr.mxu0 0.0
    %788 = vmatpush1.msra.mxu0 0.0
    %789 = vmatprep.subr.mxu0 0.0
    %790 = vmatpush1.msra.mxu0 0.0
    %791 = vmatprep.subr.mxu0 0.0
    %792 = vmatpush1.msra.mxu0 0.0
    %793 = vmatprep.subr.mxu0 0.0
    %794 = vmatpush1.msra.mxu0 0.0
    %795 = vmatprep.subr.mxu0 0.0
    %796 = vmatpush1.msra.mxu0 0.0
    %797 = vmatprep.mubr.f32.mxu0 0.0
    %798 = vmatmul.mubr.f32.gmra.mrb[0].mxu0 %v311
    %v799 = vpop.f32.mrb[0].mxu0
    %v800 = vadd.f32 %v730, %v799
    %v801 = vpop.f32.mrb[0].mxu0
    %802 = vdwg.mxu0
    %v803 = vtanh.pop %v800
    %v804 = vld [vmem:[%s3] sm:$0xff]
    %v805 = vld [vmem:[%s3 + $0x8] sm:$0xff]
    %v806 = vld [vmem:[%s3 + $0x10] sm:$0xff]
    %v807 = vld [vmem:[%s3 + $0x18] sm:$0xff]
    %v808 = vld [vmem:[%s4] sm:$0x1]
    %v810 = vlaneseq
    %v811 = vshrl.u32 %v810, 7
    %v812 = vsub.s32 0, %v811
    %v813 = vrot.slane %v808, %v812
    %vm815 = vcmask 261120
    %v817 = vsel %vm815, %v803, 0
    %819 = vmatprep.subr.mxu0 0.0
    %820 = vmatpush1.msra.mxu0 %v804
    %821 = vmatprep.subr.mxu0 0.0
    %822 = vmatpush1.msra.mxu0 %v805
    %823 = vmatprep.subr.mxu0 0.0
    %824 = vmatpush1.msra.mxu0 %v806
    %825 = vmatprep.subr.mxu0 0.0
    %826 = vmatpush1.msra.mxu0 %v807
    %827 = vmatprep.subr.mxu0 0.0
    %828 = vmatpush1.msra.mxu0 0.0
    %829 = vmatprep.subr.mxu0 0.0
    %830 = vmatpush1.msra.mxu0 0.0
    %831 = vmatprep.subr.mxu0 0.0
    %832 = vmatpush1.msra.mxu0 0.0
    %833 = vmatprep.subr.mxu0 0.0
    %834 = vmatpush1.msra.mxu0 0.0
    %835 = vmatprep.subr.mxu0 0.0
    %836 = vmatpush1.msra.mxu0 0.0
    %837 = vmatprep.subr.mxu0 0.0
    %838 = vmatpush1.msra.mxu0 0.0
    %839 = vmatprep.subr.mxu0 0.0
    %840 = vmatpush1.msra.mxu0 0.0
    %841 = vmatprep.subr.mxu0 0.0
    %842 = vmatpush1.msra.mxu0 0.0
    %843 = vmatprep.subr.mxu0 0.0
    %844 = vmatpush1.msra.mxu0 0.0
    %845 = vmatprep.subr.mxu0 0.0
    %846 = vmatpush1.msra.mxu0 0.0
    %847 = vmatprep.subr.mxu0 0.0
    %848 = vmatpush1.msra.mxu0 0.0
    %849 = vmatprep.subr.mxu0 0.0
    %850 = vmatpush1.msra.mxu0 0.0
    %851 = vmatprep.subr.mxu0 0.0
    %852 = vmatpush1.msra.mxu0 0.0
    %853 = vmatprep.subr.mxu0 0.0
    %854 = vmatpush1.msra.mxu0 0.0
    %855 = vmatprep.subr.mxu0 0.0
    %856 = vmatpush1.msra.mxu0 0.0
    %857 = vmatprep.subr.mxu0 0.0
    %858 = vmatpush1.msra.mxu0 0.0
    %859 = vmatprep.subr.mxu0 0.0
    %860 = vmatpush1.msra.mxu0 0.0
    %861 = vmatprep.subr.mxu0 0.0
    %862 = vmatpush1.msra.mxu0 0.0
    %863 = vmatprep.subr.mxu0 0.0
    %864 = vmatpush1.msra.mxu0 0.0
    %865 = vmatprep.subr.mxu0 0.0
    %866 = vmatpush1.msra.mxu0 0.0
    %867 = vmatprep.subr.mxu0 0.0
    %868 = vmatpush1.msra.mxu0 0.0
    %869 = vmatprep.subr.mxu0 0.0
    %870 = vmatpush1.msra.mxu0 0.0
    %871 = vmatprep.subr.mxu0 0.0
    %872 = vmatpush1.msra.mxu0 0.0
    %873 = vmatprep.subr.mxu0 0.0
    %874 = vmatpush1.msra.mxu0 0.0
    %875 = vmatprep.subr.mxu0 0.0
    %876 = vmatpush1.msra.mxu0 0.0
    %877 = vmatprep.subr.mxu0 0.0
    %878 = vmatpush1.msra.mxu0 0.0
    %879 = vmatprep.subr.mxu0 0.0
    %880 = vmatpush1.msra.mxu0 0.0
    %881 = vmatprep.subr.mxu0 0.0
    %882 = vmatpush1.msra.mxu0 0.0
    %883 = vmatprep.mubr.f32.mxu0 0.0
    %884 = vmatmul.mubr.f32.gmra.mrb[0].mxu0 %v817
    %v885 = vpop.f32.mrb[0].mxu0
    %v886 = vadd.f32 %v813, %v885
    %v887 = vpop.f32.mrb[0].mxu0
    %888 = vdwg.mxu0
    %889 = vst [vmem:[#allocation2] sm:$0x3] %v886
    // Predicated region
    $region22: #{encoder_classifier_forward.3} parent=1 // pred_check
      _
    $region23: #{encoder_classifier_forward.3} parent=1 // pred_check_branch
      %891 = sbr.rel (0) target = $region25
    $region24: #{encoder_classifier_forward.3} parent=1 // pred_region
      %s893 = ssub.s32 32, 32
      %894 = vsyncadd [#allocation3], %s893
      %s896 = sshll.u32 [#allocation2], 4
      %s897 = int_to_ptr.vmem [resolvable:$true] %s896
      %899 = dma.vmem_to_hbm [thread:$0]  %s897, 32, %s5, [#allocation3]
    $region25: #{encoder_classifier_forward.3} parent=1 // pred_fallthru
      _
    // Predicated region
    $region26: #{encoder_classifier_forward.3} parent=1 // pred_check
      _
    $region27: #{encoder_classifier_forward.3} parent=1 // pred_check_branch
      %901 = sbr.rel (0) target = $region29
    $region28: #{encoder_classifier_forward.3} parent=1 // pred_region
      %902 = dma.done [#allocation3], 32
    $region29: #{encoder_classifier_forward.3} parent=1 // pred_fallthru
      _
    %903 = vsyncpa [#allocation3], 1

// kernel: encoder_classifier_forward.2
$region0: #{encoder_classifier_forward.2}
  #allocation0 [shape = 'u32[]', space=smem, size = 0x4, offset = 0x4, fixed_abs, tag = 'smem constant byte address 0x4 - core index']
  #allocation1 [shape = 'u32[144,128]{1,0:T(1,128)}', space=vmem, size = 0x12000, scoped, tag = 'internal scratch']
  %s0 = inlined_call_operand.vmem [shape: f32[9,102,1], index: 0, kind: input, shape index: {}]
  %s1 = inlined_call_operand.vmem [shape: f32[9,102,1], index: 1, kind: input, shape index: {}]
  %s2 = inlined_call_operand.vmem [shape: f32[3,1,64], index: 2, kind: input, shape index: {}]
  %s3 = inlined_call_operand.vmem [shape: f32[1,64], index: 3, kind: input, shape index: {}]
  %s4 = inlined_call_operand.vmem [shape: f32[3,64,32], index: 4, kind: input, shape index: {}]
  %s5 = inlined_call_operand.vmem [shape: f32[1,32], index: 5, kind: input, shape index: {}]
  %s6 = inlined_call_operand.vmem [shape: f32[102,32], index: 6, kind: output, shape index: {}]
  %s7 = sld [smem:[#allocation0]]
  $region34: #{encoder_classifier_forward.2} parent=0
    _
  %s9 = ssub.s32 1, %s7
  %s10 = scalar_select 0, %s9, %s7
  // Predicated region
  $region2: #{encoder_classifier_forward.2} parent=0 // pred_check
    _
  $region3: #{encoder_classifier_forward.2} parent=0 // pred_check_branch
    %12 = sbr.rel (0) target = $region5
  $region4: #{encoder_classifier_forward.2} parent=0 // pred_region
    _
  $region5: #{encoder_classifier_forward.2} parent=0 // pred_fallthru
    _
  // Predicated region
  $region6: #{encoder_classifier_forward.2} parent=0 // pred_check
    _
  $region7: #{encoder_classifier_forward.2} parent=0 // pred_check_branch
    %14 = sbr.rel (0) target = $region9
  $region8: #{encoder_classifier_forward.2} parent=0 // pred_region
    _
  $region9: #{encoder_classifier_forward.2} parent=0 // pred_fallthru
    _
  // Predicated region
  $region10: #{encoder_classifier_forward.2} parent=0 // pred_check
    _
  $region11: #{encoder_classifier_forward.2} parent=0 // pred_check_branch
    %16 = sbr.rel (0) target = $region13
  $region12: #{encoder_classifier_forward.2} parent=0 // pred_region
    _
  $region13: #{encoder_classifier_forward.2} parent=0 // pred_fallthru
    _
  // Predicated region
  $region14: #{encoder_classifier_forward.2} parent=0 // pred_check
    _
  $region15: #{encoder_classifier_forward.2} parent=0 // pred_check_branch
    %18 = sbr.rel (0) target = $region17
  $region16: #{encoder_classifier_forward.2} parent=0 // pred_region
    _
  $region17: #{encoder_classifier_forward.2} parent=0 // pred_fallthru
    _
  // Predicated region
  $region18: #{encoder_classifier_forward.2} parent=0 // pred_check
    _
  $region19: #{encoder_classifier_forward.2} parent=0 // pred_check_branch
    %20 = sbr.rel (0) target = $region21
  $region20: #{encoder_classifier_forward.2} parent=0 // pred_region
    _
  $region21: #{encoder_classifier_forward.2} parent=0 // pred_fallthru
    _
  // Predicated region
  $region22: #{encoder_classifier_forward.2} parent=0 // pred_check
    _
  $region23: #{encoder_classifier_forward.2} parent=0 // pred_check_branch
    %22 = sbr.rel (0) target = $region25
  $region24: #{encoder_classifier_forward.2} parent=0 // pred_region
    _
  $region25: #{encoder_classifier_forward.2} parent=0 // pred_fallthru
    _
  %v23 = vld [vmem:[%s3] sm:$0x1]
  %v24 = vld [vmem:[%s1] sm:$0xff]
  %v25 = vld [vmem:[%s1 + $0x8] sm:$0xff]
  %v26 = vld [vmem:[%s1 + $0x10] sm:$0xff]
  %v27 = vld [vmem:[%s1 + $0x18] sm:$0xff]
  %v28 = vld [vmem:[%s1 + $0x20] sm:$0xff]
  %v29 = vld [vmem:[%s1 + $0x28] sm:$0xff]
  %v30 = vld [vmem:[%s1 + $0x30] sm:$0xff]
  %v31 = vld [vmem:[%s1 + $0x38] sm:$0xff]
  %v32 = vld [vmem:[%s1 + $0x40] sm:$0xff]
  %v33 = vld [vmem:[%s1 + $0x48] sm:$0xff]
  %v34 = vld [vmem:[%s1 + $0x50] sm:$0xff]
  %v35 = vld [vmem:[%s1 + $0x58] sm:$0xff]
  %v36 = vld [vmem:[%s1 + $0x60] sm:$0x3f]
  %v37 = vld [vmem:[%s0] sm:$0xff]
  %v38 = vld [vmem:[%s0 + $0x8] sm:$0xff]
  %v39 = vld [vmem:[%s0 + $0x10] sm:$0xff]
  %v40 = vld [vmem:[%s0 + $0x18] sm:$0xff]
  %v41 = vld [vmem:[%s0 + $0x20] sm:$0xff]
  %v42 = vld [vmem:[%s0 + $0x28] sm:$0xff]
  %v43 = vld [vmem:[%s0 + $0x30] sm:$0xff]
  %v44 = vld [vmem:[%s0 + $0x38] sm:$0xff]
  %v45 = vld [vmem:[%s0 + $0x40] sm:$0xff]
  %v46 = vld [vmem:[%s0 + $0x48] sm:$0xff]
  %v47 = vld [vmem:[%s0 + $0x50] sm:$0xff]
  %v48 = vld [vmem:[%s0 + $0x58] sm:$0xff]
  %v49 = vld [vmem:[%s0 + $0x60] sm:$0x3f]
  %v50 = vmul.f32 %v37, %v24
  %v51 = vmul.f32 %v38, %v25
  %v52 = vmul.f32 %v39, %v26
  %v53 = vmul.f32 %v40, %v27
  %v54 = vmul.f32 %v41, %v28
  %v55 = vmul.f32 %v42, %v29
  %v56 = vmul.f32 %v43, %v30
  %v57 = vmul.f32 %v44, %v31
  %v58 = vmul.f32 %v45, %v32
  %v59 = vmul.f32 %v46, %v33
  %v60 = vmul.f32 %v47, %v34
  %v61 = vmul.f32 %v48, %v35
  %v62 = vmul.f32 %v49, %v36
  %v63 = vld [vmem:[%s2] sm:$0x1]
  %65 = vset.pattern.permute.xlu0 0
  %66 = vperm.xlu0 %65, %v50
  %v67 = vpop.permute.xlu0 %66
  %70 = vset.pattern.permute.xlu0 0
  %71 = vperm.xlu0 %70, %v51
  %v72 = vpop.permute.xlu0 %71
  %75 = vset.pattern.permute.xlu0 0
  %76 = vperm.xlu0 %75, %v52
  %v77 = vpop.permute.xlu0 %76
  %80 = vset.pattern.permute.xlu0 0
  %81 = vperm.xlu0 %80, %v53
  %v82 = vpop.permute.xlu0 %81
  %85 = vset.pattern.permute.xlu0 0
  %86 = vperm.xlu0 %85, %v54
  %v87 = vpop.permute.xlu0 %86
  %90 = vset.pattern.permute.xlu0 0
  %91 = vperm.xlu0 %90, %v55
  %v92 = vpop.permute.xlu0 %91
  %95 = vset.pattern.permute.xlu0 0
  %96 = vperm.xlu0 %95, %v56
  %v97 = vpop.permute.xlu0 %96
  %100 = vset.pattern.permute.xlu0 0
  %101 = vperm.xlu0 %100, %v57
  %v102 = vpop.permute.xlu0 %101
  %105 = vset.pattern.permute.xlu0 0
  %106 = vperm.xlu0 %105, %v58
  %v107 = vpop.permute.xlu0 %106
  %110 = vset.pattern.permute.xlu0 0
  %111 = vperm.xlu0 %110, %v59
  %v112 = vpop.permute.xlu0 %111
  %115 = vset.pattern.permute.xlu0 0
  %116 = vperm.xlu0 %115, %v60
  %v117 = vpop.permute.xlu0 %116
  %120 = vset.pattern.permute.xlu0 0
  %121 = vperm.xlu0 %120, %v61
  %v122 = vpop.permute.xlu0 %121
  %125 = vset.pattern.permute.xlu0 0
  %126 = vperm.xlu0 %125, %v62
  %v127 = vpop.permute.xlu0 %126
  %v130 = vlaneseq
  %v131 = vshrl.u32 %v130, 7
  %v132 = vsub.s32 0, %v131
  %v133 = vrot.slane %v63, %v132
  %v135 = vmul.f32 %v67, %v133
  %v136 = vmul.f32 %v72, %v133
  %v137 = vmul.f32 %v77, %v133
  %v138 = vmul.f32 %v82, %v133
  %v139 = vmul.f32 %v87, %v133
  %v140 = vmul.f32 %v92, %v133
  %v141 = vmul.f32 %v97, %v133
  %v142 = vmul.f32 %v102, %v133
  %v143 = vmul.f32 %v107, %v133
  %v144 = vmul.f32 %v112, %v133
  %v145 = vmul.f32 %v117, %v133
  %v146 = vmul.f32 %v122, %v133
  %v147 = vmul.f32 %v127, %v133
  %v148 = vadd.f32 %v135, 0.0
  %v149 = vadd.f32 %v136, 0.0
  %v150 = vadd.f32 %v137, 0.0
  %v151 = vadd.f32 %v138, 0.0
  %v152 = vadd.f32 %v139, 0.0
  %v153 = vadd.f32 %v140, 0.0
  %v154 = vadd.f32 %v141, 0.0
  %v155 = vadd.f32 %v142, 0.0
  %v156 = vadd.f32 %v143, 0.0
  %v157 = vadd.f32 %v144, 0.0
  %v158 = vadd.f32 %v145, 0.0
  %v159 = vadd.f32 %v146, 0.0
  %v160 = vadd.f32 %v147, 0.0
  %v161 = vadd.f32 %v24, 0.0
  %v162 = vadd.f32 %v25, 0.0
  %v163 = vadd.f32 %v26, 0.0
  %v164 = vadd.f32 %v27, 0.0
  %v165 = vadd.f32 %v28, 0.0
  %v166 = vadd.f32 %v29, 0.0
  %v167 = vadd.f32 %v30, 0.0
  %v168 = vadd.f32 %v31, 0.0
  %v169 = vadd.f32 %v32, 0.0
  %v170 = vadd.f32 %v33, 0.0
  %v171 = vadd.f32 %v34, 0.0
  %v172 = vadd.f32 %v35, 0.0
  %v173 = vadd.f32 %v36, 0.0
  %s174 = scalar_lea.vmem %s1, 104
  %v175 = vld [vmem:[%s174] sm:$0xff]
  %v176 = vld [vmem:[%s174 + $0x8] sm:$0xff]
  %v177 = vld [vmem:[%s174 + $0x10] sm:$0xff]
  %v178 = vld [vmem:[%s174 + $0x18] sm:$0xff]
  %v179 = vld [vmem:[%s174 + $0x20] sm:$0xff]
  %v180 = vld [vmem:[%s174 + $0x28] sm:$0xff]
  %v181 = vld [vmem:[%s174 + $0x30] sm:$0xff]
  %v182 = vld [vmem:[%s174 + $0x38] sm:$0xff]
  %v183 = vld [vmem:[%s174 + $0x40] sm:$0xff]
  %v184 = vld [vmem:[%s174 + $0x48] sm:$0xff]
  %v185 = vld [vmem:[%s174 + $0x50] sm:$0xff]
  %v186 = vld [vmem:[%s174 + $0x58] sm:$0xff]
  %v187 = vld [vmem:[%s174 + $0x60] sm:$0x3f]
  %s188 = scalar_lea.vmem %s0, 104
  %v189 = vld [vmem:[%s188] sm:$0xff]
  %v190 = vld [vmem:[%s188 + $0x8] sm:$0xff]
  %v191 = vld [vmem:[%s188 + $0x10] sm:$0xff]
  %v192 = vld [vmem:[%s188 + $0x18] sm:$0xff]
  %v193 = vld [vmem:[%s188 + $0x20] sm:$0xff]
  %v194 = vld [vmem:[%s188 + $0x28] sm:$0xff]
  %v195 = vld [vmem:[%s188 + $0x30] sm:$0xff]
  %v196 = vld [vmem:[%s188 + $0x38] sm:$0xff]
  %v197 = vld [vmem:[%s188 + $0x40] sm:$0xff]
  %v198 = vld [vmem:[%s188 + $0x48] sm:$0xff]
  %v199 = vld [vmem:[%s188 + $0x50] sm:$0xff]
  %v200 = vld [vmem:[%s188 + $0x58] sm:$0xff]
  %v201 = vld [vmem:[%s188 + $0x60] sm:$0x3f]
  %v202 = vmul.f32 %v189, %v175
  %v203 = vmul.f32 %v190, %v176
  %v204 = vmul.f32 %v191, %v177
  %v205 = vmul.f32 %v192, %v178
  %v206 = vmul.f32 %v193, %v179
  %v207 = vmul.f32 %v194, %v180
  %v208 = vmul.f32 %v195, %v181
  %v209 = vmul.f32 %v196, %v182
  %v210 = vmul.f32 %v197, %v183
  %v211 = vmul.f32 %v198, %v184
  %v212 = vmul.f32 %v199, %v185
  %v213 = vmul.f32 %v200, %v186
  %v214 = vmul.f32 %v201, %v187
  %s215 = scalar_lea.vmem %s2, 1
  %v216 = vld [vmem:[%s215] sm:$0x1]
  %218 = vset.pattern.permute.xlu0 0
  %219 = vperm.xlu0 %218, %v202
  %v220 = vpop.permute.xlu0 %219
  %223 = vset.pattern.permute.xlu0 0
  %224 = vperm.xlu0 %223, %v203
  %v225 = vpop.permute.xlu0 %224
  %228 = vset.pattern.permute.xlu0 0
  %229 = vperm.xlu0 %228, %v204
  %v230 = vpop.permute.xlu0 %229
  %233 = vset.pattern.permute.xlu0 0
  %234 = vperm.xlu0 %233, %v205
  %v235 = vpop.permute.xlu0 %234
  %238 = vset.pattern.permute.xlu0 0
  %239 = vperm.xlu0 %238, %v206
  %v240 = vpop.permute.xlu0 %239
  %243 = vset.pattern.permute.xlu0 0
  %244 = vperm.xlu0 %243, %v207
  %v245 = vpop.permute.xlu0 %244
  %248 = vset.pattern.permute.xlu0 0
  %249 = vperm.xlu0 %248, %v208
  %v250 = vpop.permute.xlu0 %249
  %253 = vset.pattern.permute.xlu0 0
  %254 = vperm.xlu0 %253, %v209
  %v255 = vpop.permute.xlu0 %254
  %258 = vset.pattern.permute.xlu0 0
  %259 = vperm.xlu0 %258, %v210
  %v260 = vpop.permute.xlu0 %259
  %263 = vset.pattern.permute.xlu0 0
  %264 = vperm.xlu0 %263, %v211
  %v265 = vpop.permute.xlu0 %264
  %268 = vset.pattern.permute.xlu0 0
  %269 = vperm.xlu0 %268, %v212
  %v270 = vpop.permute.xlu0 %269
  %273 = vset.pattern.permute.xlu0 0
  %274 = vperm.xlu0 %273, %v213
  %v275 = vpop.permute.xlu0 %274
  %278 = vset.pattern.permute.xlu0 0
  %279 = vperm.xlu0 %278, %v214
  %v280 = vpop.permute.xlu0 %279
  %v283 = vlaneseq
  %v284 = vshrl.u32 %v283, 7
  %v285 = vsub.s32 0, %v284
  %v286 = vrot.slane %v216, %v285
  %v288 = vmul.f32 %v220, %v286
  %v289 = vmul.f32 %v225, %v286
  %v290 = vmul.f32 %v230, %v286
  %v291 = vmul.f32 %v235, %v286
  %v292 = vmul.f32 %v240, %v286
  %v293 = vmul.f32 %v245, %v286
  %v294 = vmul.f32 %v250, %v286
  %v295 = vmul.f32 %v255, %v286
  %v296 = vmul.f32 %v260, %v286
  %v297 = vmul.f32 %v265, %v286
  %v298 = vmul.f32 %v270, %v286
  %v299 = vmul.f32 %v275, %v286
  %v300 = vmul.f32 %v280, %v286
  %v301 = vadd.f32 %v148, %v288
  %v302 = vadd.f32 %v149, %v289
  %v303 = vadd.f32 %v150, %v290
  %v304 = vadd.f32 %v151, %v291
  %v305 = vadd.f32 %v152, %v292
  %v306 = vadd.f32 %v153, %v293
  %v307 = vadd.f32 %v154, %v294
  %v308 = vadd.f32 %v155, %v295
  %v309 = vadd.f32 %v156, %v296
  %v310 = vadd.f32 %v157, %v297
  %v311 = vadd.f32 %v158, %v298
  %v312 = vadd.f32 %v159, %v299
  %v313 = vadd.f32 %v160, %v300
  %v314 = vadd.f32 %v161, %v175
  %v315 = vadd.f32 %v162, %v176
  %v316 = vadd.f32 %v163, %v177
  %v317 = vadd.f32 %v164, %v178
  %v318 = vadd.f32 %v165, %v179
  %v319 = vadd.f32 %v166, %v180
  %v320 = vadd.f32 %v167, %v181
  %v321 = vadd.f32 %v168, %v182
  %v322 = vadd.f32 %v169, %v183
  %v323 = vadd.f32 %v170, %v184
  %v324 = vadd.f32 %v171, %v185
  %v325 = vadd.f32 %v172, %v186
  %v326 = vadd.f32 %v173, %v187
  %s327 = scalar_lea.vmem %s1, 208
  %v328 = vld [vmem:[%s327] sm:$0xff]
  %v329 = vld [vmem:[%s327 + $0x8] sm:$0xff]
  %v330 = vld [vmem:[%s327 + $0x10] sm:$0xff]
  %v331 = vld [vmem:[%s327 + $0x18] sm:$0xff]
  %v332 = vld [vmem:[%s327 + $0x20] sm:$0xff]
  %v333 = vld [vmem:[%s327 + $0x28] sm:$0xff]
  %v334 = vld [vmem:[%s327 + $0x30] sm:$0xff]
  %v335 = vld [vmem:[%s327 + $0x38] sm:$0xff]
  %v336 = vld [vmem:[%s327 + $0x40] sm:$0xff]
  %v337 = vld [vmem:[%s327 + $0x48] sm:$0xff]
  %v338 = vld [vmem:[%s327 + $0x50] sm:$0xff]
  %v339 = vld [vmem:[%s327 + $0x58] sm:$0xff]
  %v340 = vld [vmem:[%s327 + $0x60] sm:$0x3f]
  %s341 = scalar_lea.vmem %s0, 208
  %v342 = vld [vmem:[%s341] sm:$0xff]
  %v343 = vld [vmem:[%s341 + $0x8] sm:$0xff]
  %v344 = vld [vmem:[%s341 + $0x10] sm:$0xff]
  %v345 = vld [vmem:[%s341 + $0x18] sm:$0xff]
  %v346 = vld [vmem:[%s341 + $0x20] sm:$0xff]
  %v347 = vld [vmem:[%s341 + $0x28] sm:$0xff]
  %v348 = vld [vmem:[%s341 + $0x30] sm:$0xff]
  %v349 = vld [vmem:[%s341 + $0x38] sm:$0xff]
  %v350 = vld [vmem:[%s341 + $0x40] sm:$0xff]
  %v351 = vld [vmem:[%s341 + $0x48] sm:$0xff]
  %v352 = vld [vmem:[%s341 + $0x50] sm:$0xff]
  %v353 = vld [vmem:[%s341 + $0x58] sm:$0xff]
  %v354 = vld [vmem:[%s341 + $0x60] sm:$0x3f]
  %v355 = vmul.f32 %v342, %v328
  %v356 = vmul.f32 %v343, %v329
  %v357 = vmul.f32 %v344, %v330
  %v358 = vmul.f32 %v345, %v331
  %v359 = vmul.f32 %v346, %v332
  %v360 = vmul.f32 %v347, %v333
  %v361 = vmul.f32 %v348, %v334
  %v362 = vmul.f32 %v349, %v335
  %v363 = vmul.f32 %v350, %v336
  %v364 = vmul.f32 %v351, %v337
  %v365 = vmul.f32 %v352, %v338
  %v366 = vmul.f32 %v353, %v339
  %v367 = vmul.f32 %v354, %v340
  %s368 = scalar_lea.vmem %s2, 2
  %v369 = vld [vmem:[%s368] sm:$0x1]
  %371 = vset.pattern.permute.xlu0 0
  %372 = vperm.xlu0 %371, %v355
  %v373 = vpop.permute.xlu0 %372
  %376 = vset.pattern.permute.xlu0 0
  %377 = vperm.xlu0 %376, %v356
  %v378 = vpop.permute.xlu0 %377
  %381 = vset.pattern.permute.xlu0 0
  %382 = vperm.xlu0 %381, %v357
  %v383 = vpop.permute.xlu0 %382
  %386 = vset.pattern.permute.xlu0 0
  %387 = vperm.xlu0 %386, %v358
  %v388 = vpop.permute.xlu0 %387
  %391 = vset.pattern.permute.xlu0 0
  %392 = vperm.xlu0 %391, %v359
  %v393 = vpop.permute.xlu0 %392
  %396 = vset.pattern.permute.xlu0 0
  %397 = vperm.xlu0 %396, %v360
  %v398 = vpop.permute.xlu0 %397
  %401 = vset.pattern.permute.xlu0 0
  %402 = vperm.xlu0 %401, %v361
  %v403 = vpop.permute.xlu0 %402
  %406 = vset.pattern.permute.xlu0 0
  %407 = vperm.xlu0 %406, %v362
  %v408 = vpop.permute.xlu0 %407
  %411 = vset.pattern.permute.xlu0 0
  %412 = vperm.xlu0 %411, %v363
  %v413 = vpop.permute.xlu0 %412
  %416 = vset.pattern.permute.xlu0 0
  %417 = vperm.xlu0 %416, %v364
  %v418 = vpop.permute.xlu0 %417
  %421 = vset.pattern.permute.xlu0 0
  %422 = vperm.xlu0 %421, %v365
  %v423 = vpop.permute.xlu0 %422
  %426 = vset.pattern.permute.xlu0 0
  %427 = vperm.xlu0 %426, %v366
  %v428 = vpop.permute.xlu0 %427
  %431 = vset.pattern.permute.xlu0 0
  %432 = vperm.xlu0 %431, %v367
  %v433 = vpop.permute.xlu0 %432
  %v436 = vlaneseq
  %v437 = vshrl.u32 %v436, 7
  %v438 = vsub.s32 0, %v437
  %v439 = vrot.slane %v369, %v438
  %v441 = vmul.f32 %v373, %v439
  %v442 = vmul.f32 %v378, %v439
  %v443 = vmul.f32 %v383, %v439
  %v444 = vmul.f32 %v388, %v439
  %v445 = vmul.f32 %v393, %v439
  %v446 = vmul.f32 %v398, %v439
  %v447 = vmul.f32 %v403, %v439
  %v448 = vmul.f32 %v408, %v439
  %v449 = vmul.f32 %v413, %v439
  %v450 = vmul.f32 %v418, %v439
  %v451 = vmul.f32 %v423, %v439
  %v452 = vmul.f32 %v428, %v439
  %v453 = vmul.f32 %v433, %v439
  %v454 = vadd.f32 %v301, %v441
  %v455 = vadd.f32 %v302, %v442
  %v456 = vadd.f32 %v303, %v443
  %v457 = vadd.f32 %v304, %v444
  %v458 = vadd.f32 %v305, %v445
  %v459 = vadd.f32 %v306, %v446
  %v460 = vadd.f32 %v307, %v447
  %v461 = vadd.f32 %v308, %v448
  %v462 = vadd.f32 %v309, %v449
  %v463 = vadd.f32 %v310, %v450
  %v464 = vadd.f32 %v311, %v451
  %v465 = vadd.f32 %v312, %v452
  %v466 = vadd.f32 %v313, %v453
  %v467 = vadd.f32 %v314, %v328
  %v468 = vadd.f32 %v315, %v329
  %v469 = vadd.f32 %v316, %v330
  %v470 = vadd.f32 %v317, %v331
  %v471 = vadd.f32 %v318, %v332
  %v472 = vadd.f32 %v319, %v333
  %v473 = vadd.f32 %v320, %v334
  %v474 = vadd.f32 %v321, %v335
  %v475 = vadd.f32 %v322, %v336
  %v476 = vadd.f32 %v323, %v337
  %v477 = vadd.f32 %v324, %v338
  %v478 = vadd.f32 %v325, %v339
  %v479 = vadd.f32 %v326, %v340
  %vm480 = vcmp.gt.f32.partialorder %v467, 0.0
  %vm481 = vcmp.gt.f32.partialorder %v468, 0.0
  %vm482 = vcmp.gt.f32.partialorder %v469, 0.0
  %vm483 = vcmp.gt.f32.partialorder %v470, 0.0
  %vm484 = vcmp.gt.f32.partialorder %v471, 0.0
  %vm485 = vcmp.gt.f32.partialorder %v472, 0.0
  %vm486 = vcmp.gt.f32.partialorder %v473, 0.0
  %vm487 = vcmp.gt.f32.partialorder %v474, 0.0
  %vm488 = vcmp.gt.f32.partialorder %v475, 0.0
  %vm489 = vcmp.gt.f32.partialorder %v476, 0.0
  %vm490 = vcmp.gt.f32.partialorder %v477, 0.0
  %vm491 = vcmp.gt.f32.partialorder %v478, 0.0
  %vm492 = vcmp.gt.f32.partialorder %v479, 0.0
  %v493 = vsel %vm480, 1, 0
  %v494 = vsel %vm481, 1, 0
  %v495 = vsel %vm482, 1, 0
  %v496 = vsel %vm483, 1, 0
  %v497 = vsel %vm484, 1, 0
  %v498 = vsel %vm485, 1, 0
  %v499 = vsel %vm486, 1, 0
  %v500 = vsel %vm487, 1, 0
  %v501 = vsel %vm488, 1, 0
  %v502 = vsel %vm489, 1, 0
  %v503 = vsel %vm490, 1, 0
  %v504 = vsel %vm491, 1, 0
  %v505 = vsel %vm492, 1, 0
  %v506 = vcvt.s32.f32 %v493
  %v507 = vcvt.s32.f32 %v494
  %v508 = vcvt.s32.f32 %v495
  %v509 = vcvt.s32.f32 %v496
  %v510 = vcvt.s32.f32 %v497
  %v511 = vcvt.s32.f32 %v498
  %v512 = vcvt.s32.f32 %v499
  %v513 = vcvt.s32.f32 %v500
  %v514 = vcvt.s32.f32 %v501
  %v515 = vcvt.s32.f32 %v502
  %v516 = vcvt.s32.f32 %v503
  %v517 = vcvt.s32.f32 %v504
  %v518 = vcvt.s32.f32 %v505
  %v519 = vmul.f32 %v506, 3.0
  %v520 = vmul.f32 %v507, 3.0
  %v521 = vmul.f32 %v508, 3.0
  %v522 = vmul.f32 %v509, 3.0
  %v523 = vmul.f32 %v510, 3.0
  %v524 = vmul.f32 %v511, 3.0
  %v525 = vmul.f32 %v512, 3.0
  %v526 = vmul.f32 %v513, 3.0
  %v527 = vmul.f32 %v514, 3.0
  %v528 = vmul.f32 %v515, 3.0
  %v529 = vmul.f32 %v516, 3.0
  %v530 = vmul.f32 %v517, 3.0
  %v531 = vmul.f32 %v518, 3.0
  %v532 = vmax.f32 %v467, 1.0
  %v533 = vmax.f32 %v468, 1.0
  %v534 = vmax.f32 %v469, 1.0
  %v535 = vmax.f32 %v470, 1.0
  %v536 = vmax.f32 %v471, 1.0
  %v537 = vmax.f32 %v472, 1.0
  %v538 = vmax.f32 %v473, 1.0
  %v539 = vmax.f32 %v474, 1.0
  %v540 = vmax.f32 %v475, 1.0
  %v541 = vmax.f32 %v476, 1.0
  %v542 = vmax.f32 %v477, 1.0
  %v543 = vmax.f32 %v478, 1.0
  %v544 = vmax.f32 %v479, 1.0
  %v545 = vrcp.pop %v532
  %v546 = vmul.f32 %v519, %v545
  %v547 = vrcp.pop %v533
  %v548 = vmul.f32 %v520, %v547
  %v549 = vrcp.pop %v534
  %v550 = vmul.f32 %v521, %v549
  %v551 = vrcp.pop %v535
  %v552 = vmul.f32 %v522, %v551
  %v553 = vrcp.pop %v536
  %v554 = vmul.f32 %v523, %v553
  %v555 = vrcp.pop %v537
  %v556 = vmul.f32 %v524, %v555
  %v557 = vrcp.pop %v538
  %v558 = vmul.f32 %v525, %v557
  %v559 = vrcp.pop %v539
  %v560 = vmul.f32 %v526, %v559
  %v561 = vrcp.pop %v540
  %v562 = vmul.f32 %v527, %v561
  %v563 = vrcp.pop %v541
  %v564 = vmul.f32 %v528, %v563
  %v565 = vrcp.pop %v542
  %v566 = vmul.f32 %v529, %v565
  %v567 = vrcp.pop %v543
  %v568 = vmul.f32 %v530, %v567
  %v569 = vrcp.pop %v544
  %v570 = vmul.f32 %v531, %v569
  %572 = vset.pattern.permute.xlu0 0
  %573 = vperm.xlu0 %572, %v546
  %v574 = vpop.permute.xlu0 %573
  %577 = vset.pattern.permute.xlu0 0
  %578 = vperm.xlu0 %577, %v548
  %v579 = vpop.permute.xlu0 %578
  %582 = vset.pattern.permute.xlu0 0
  %583 = vperm.xlu0 %582, %v550
  %v584 = vpop.permute.xlu0 %583
  %587 = vset.pattern.permute.xlu0 0
  %588 = vperm.xlu0 %587, %v552
  %v589 = vpop.permute.xlu0 %588
  %592 = vset.pattern.permute.xlu0 0
  %593 = vperm.xlu0 %592, %v554
  %v594 = vpop.permute.xlu0 %593
  %597 = vset.pattern.permute.xlu0 0
  %598 = vperm.xlu0 %597, %v556
  %v599 = vpop.permute.xlu0 %598
  %602 = vset.pattern.permute.xlu0 0
  %603 = vperm.xlu0 %602, %v558
  %v604 = vpop.permute.xlu0 %603
  %607 = vset.pattern.permute.xlu0 0
  %608 = vperm.xlu0 %607, %v560
  %v609 = vpop.permute.xlu0 %608
  %612 = vset.pattern.permute.xlu0 0
  %613 = vperm.xlu0 %612, %v562
  %v614 = vpop.permute.xlu0 %613
  %617 = vset.pattern.permute.xlu0 0
  %618 = vperm.xlu0 %617, %v564
  %v619 = vpop.permute.xlu0 %618
  %622 = vset.pattern.permute.xlu0 0
  %623 = vperm.xlu0 %622, %v566
  %v624 = vpop.permute.xlu0 %623
  %627 = vset.pattern.permute.xlu0 0
  %628 = vperm.xlu0 %627, %v568
  %v629 = vpop.permute.xlu0 %628
  %632 = vset.pattern.permute.xlu0 0
  %633 = vperm.xlu0 %632, %v570
  %v634 = vpop.permute.xlu0 %633
  %v636 = vmul.f32 %v454, %v574
  %v637 = vmul.f32 %v455, %v579
  %v638 = vmul.f32 %v456, %v584
  %v639 = vmul.f32 %v457, %v589
  %v640 = vmul.f32 %v458, %v594
  %v641 = vmul.f32 %v459, %v599
  %v642 = vmul.f32 %v460, %v604
  %v643 = vmul.f32 %v461, %v609
  %v644 = vmul.f32 %v462, %v614
  %v645 = vmul.f32 %v463, %v619
  %v646 = vmul.f32 %v464, %v624
  %v647 = vmul.f32 %v465, %v629
  %v648 = vmul.f32 %v466, %v634
  %v650 = vlaneseq
  %v651 = vshrl.u32 %v650, 7
  %v652 = vsub.s32 0, %v651
  %v653 = vrot.slane %v23, %v652
  %v655 = vadd.f32 %v636, %v653
  %v656 = vadd.f32 %v637, %v653
  %v657 = vadd.f32 %v638, %v653
  %v658 = vadd.f32 %v639, %v653
  %v659 = vadd.f32 %v640, %v653
  %v660 = vadd.f32 %v641, %v653
  %v661 = vadd.f32 %v642, %v653
  %v662 = vadd.f32 %v643, %v653
  %v663 = vadd.f32 %v644, %v653
  %v664 = vadd.f32 %v645, %v653
  %v665 = vadd.f32 %v646, %v653
  %v666 = vadd.f32 %v647, %v653
  %v667 = vadd.f32 %v648, %v653
  %v668 = vmax.f32 %v655, 0.0
  %v669 = vmax.f32 %v656, 0.0
  %v670 = vmax.f32 %v657, 0.0
  %v671 = vmax.f32 %v658, 0.0
  %v672 = vmax.f32 %v659, 0.0
  %v673 = vmax.f32 %v660, 0.0
  %v674 = vmax.f32 %v661, 0.0
  %v675 = vmax.f32 %v662, 0.0
  %v676 = vmax.f32 %v663, 0.0
  %v677 = vmax.f32 %v664, 0.0
  %v678 = vmax.f32 %v665, 0.0
  %v679 = vmax.f32 %v666, 0.0
  %v680 = vmax.f32 %v667, 0.0
  %682 = vset.pattern.permute.xlu0 0
  %683 = vperm.xlu0 %682, %v506
  %v684 = vpop.permute.xlu0 %683
  %687 = vset.pattern.permute.xlu0 0
  %688 = vperm.xlu0 %687, %v507
  %v689 = vpop.permute.xlu0 %688
  %692 = vset.pattern.permute.xlu0 0
  %693 = vperm.xlu0 %692, %v508
  %v694 = vpop.permute.xlu0 %693
  %697 = vset.pattern.permute.xlu0 0
  %698 = vperm.xlu0 %697, %v509
  %v699 = vpop.permute.xlu0 %698
  %702 = vset.pattern.permute.xlu0 0
  %703 = vperm.xlu0 %702, %v510
  %v704 = vpop.permute.xlu0 %703
  %707 = vset.pattern.permute.xlu0 0
  %708 = vperm.xlu0 %707, %v511
  %v709 = vpop.permute.xlu0 %708
  %712 = vset.pattern.permute.xlu0 0
  %713 = vperm.xlu0 %712, %v512
  %v714 = vpop.permute.xlu0 %713
  %717 = vset.pattern.permute.xlu0 0
  %718 = vperm.xlu0 %717, %v513
  %v719 = vpop.permute.xlu0 %718
  %722 = vset.pattern.permute.xlu0 0
  %723 = vperm.xlu0 %722, %v514
  %v724 = vpop.permute.xlu0 %723
  %727 = vset.pattern.permute.xlu0 0
  %728 = vperm.xlu0 %727, %v515
  %v729 = vpop.permute.xlu0 %728
  %732 = vset.pattern.permute.xlu0 0
  %733 = vperm.xlu0 %732, %v516
  %v734 = vpop.permute.xlu0 %733
  %737 = vset.pattern.permute.xlu0 0
  %738 = vperm.xlu0 %737, %v517
  %v739 = vpop.permute.xlu0 %738
  %742 = vset.pattern.permute.xlu0 0
  %743 = vperm.xlu0 %742, %v518
  %v744 = vpop.permute.xlu0 %743
  %v746 = vmul.f32 %v668, %v684
  %v747 = vmul.f32 %v669, %v689
  %v748 = vmul.f32 %v670, %v694
  %v749 = vmul.f32 %v671, %v699
  %v750 = vmul.f32 %v672, %v704
  %v751 = vmul.f32 %v673, %v709
  %v752 = vmul.f32 %v674, %v714
  %v753 = vmul.f32 %v675, %v719
  %v754 = vmul.f32 %v676, %v724
  %v755 = vmul.f32 %v677, %v729
  %v756 = vmul.f32 %v678, %v734
  %v757 = vmul.f32 %v679, %v739
  %v758 = vmul.f32 %v680, %v744
  %v759 = vld [vmem:[%s4] sm:$0xff]
  %v760 = vld [vmem:[%s4 + $0x8] sm:$0xff]
  %v761 = vld [vmem:[%s4 + $0x10] sm:$0xff]
  %v762 = vld [vmem:[%s4 + $0x18] sm:$0xff]
  %v763 = vld [vmem:[%s4 + $0x20] sm:$0xff]
  %v764 = vld [vmem:[%s4 + $0x28] sm:$0xff]
  %v765 = vld [vmem:[%s4 + $0x30] sm:$0xff]
  %v766 = vld [vmem:[%s4 + $0x38] sm:$0xff]
  %v767 = vadd.f32 %v506, 0.0
  %v768 = vadd.f32 %v507, 0.0
  %v769 = vadd.f32 %v508, 0.0
  %v770 = vadd.f32 %v509, 0.0
  %v771 = vadd.f32 %v510, 0.0
  %v772 = vadd.f32 %v511, 0.0
  %v773 = vadd.f32 %v512, 0.0
  %v774 = vadd.f32 %v513, 0.0
  %v775 = vadd.f32 %v514, 0.0
  %v776 = vadd.f32 %v515, 0.0
  %v777 = vadd.f32 %v516, 0.0
  %v778 = vadd.f32 %v517, 0.0
  %v779 = vadd.f32 %v518, 0.0
  %s780 = scalar_lea.vmem %s1, 312
  %v781 = vld [vmem:[%s780] sm:$0xff]
  %v782 = vld [vmem:[%s780 + $0x8] sm:$0xff]
  %v783 = vld [vmem:[%s780 + $0x10] sm:$0xff]
  %v784 = vld [vmem:[%s780 + $0x18] sm:$0xff]
  %v785 = vld [vmem:[%s780 + $0x20] sm:$0xff]
  %v786 = vld [vmem:[%s780 + $0x28] sm:$0xff]
  %v787 = vld [vmem:[%s780 + $0x30] sm:$0xff]
  %v788 = vld [vmem:[%s780 + $0x38] sm:$0xff]
  %v789 = vld [vmem:[%s780 + $0x40] sm:$0xff]
  %v790 = vld [vmem:[%s780 + $0x48] sm:$0xff]
  %v791 = vld [vmem:[%s780 + $0x50] sm:$0xff]
  %v792 = vld [vmem:[%s780 + $0x58] sm:$0xff]
  %v793 = vld [vmem:[%s780 + $0x60] sm:$0x3f]
  %s794 = scalar_lea.vmem %s0, 312
  %v795 = vld [vmem:[%s794] sm:$0xff]
  %v796 = vld [vmem:[%s794 + $0x8] sm:$0xff]
  %v797 = vld [vmem:[%s794 + $0x10] sm:$0xff]
  %v798 = vld [vmem:[%s794 + $0x18] sm:$0xff]
  %v799 = vld [vmem:[%s794 + $0x20] sm:$0xff]
  %v800 = vld [vmem:[%s794 + $0x28] sm:$0xff]
  %v801 = vld [vmem:[%s794 + $0x30] sm:$0xff]
  %v802 = vld [vmem:[%s794 + $0x38] sm:$0xff]
  %v803 = vld [vmem:[%s794 + $0x40] sm:$0xff]
  %v804 = vld [vmem:[%s794 + $0x48] sm:$0xff]
  %v805 = vld [vmem:[%s794 + $0x50] sm:$0xff]
  %v806 = vld [vmem:[%s794 + $0x58] sm:$0xff]
  %v807 = vld [vmem:[%s794 + $0x60] sm:$0x3f]
  %v808 = vmul.f32 %v795, %v781
  %v809 = vmul.f32 %v796, %v782
  %v810 = vmul.f32 %v797, %v783
  %v811 = vmul.f32 %v798, %v784
  %v812 = vmul.f32 %v799, %v785
  %v813 = vmul.f32 %v800, %v786
  %v814 = vmul.f32 %v801, %v787
  %v815 = vmul.f32 %v802, %v788
  %v816 = vmul.f32 %v803, %v789
  %v817 = vmul.f32 %v804, %v790
  %v818 = vmul.f32 %v805, %v791
  %v819 = vmul.f32 %v806, %v792
  %v820 = vmul.f32 %v807, %v793
  %822 = vset.pattern.permute.xlu0 0
  %823 = vperm.xlu0 %822, %v808
  %v824 = vpop.permute.xlu0 %823
  %827 = vset.pattern.permute.xlu0 0
  %828 = vperm.xlu0 %827, %v809
  %v829 = vpop.permute.xlu0 %828
  %832 = vset.pattern.permute.xlu0 0
  %833 = vperm.xlu0 %832, %v810
  %v834 = vpop.permute.xlu0 %833
  %837 = vset.pattern.permute.xlu0 0
  %838 = vperm.xlu0 %837, %v811
  %v839 = vpop.permute.xlu0 %838
  %842 = vset.pattern.permute.xlu0 0
  %843 = vperm.xlu0 %842, %v812
  %v844 = vpop.permute.xlu0 %843
  %847 = vset.pattern.permute.xlu0 0
  %848 = vperm.xlu0 %847, %v813
  %v849 = vpop.permute.xlu0 %848
  %852 = vset.pattern.permute.xlu0 0
  %853 = vperm.xlu0 %852, %v814
  %v854 = vpop.permute.xlu0 %853
  %857 = vset.pattern.permute.xlu0 0
  %858 = vperm.xlu0 %857, %v815
  %v859 = vpop.permute.xlu0 %858
  %862 = vset.pattern.permute.xlu0 0
  %863 = vperm.xlu0 %862, %v816
  %v864 = vpop.permute.xlu0 %863
  %867 = vset.pattern.permute.xlu0 0
  %868 = vperm.xlu0 %867, %v817
  %v869 = vpop.permute.xlu0 %868
  %872 = vset.pattern.permute.xlu0 0
  %873 = vperm.xlu0 %872, %v818
  %v874 = vpop.permute.xlu0 %873
  %877 = vset.pattern.permute.xlu0 0
  %878 = vperm.xlu0 %877, %v819
  %v879 = vpop.permute.xlu0 %878
  %882 = vset.pattern.permute.xlu0 0
  %883 = vperm.xlu0 %882, %v820
  %v884 = vpop.permute.xlu0 %883
  %v886 = vmul.f32 %v824, %v133
  %v887 = vmul.f32 %v829, %v133
  %v888 = vmul.f32 %v834, %v133
  %v889 = vmul.f32 %v839, %v133
  %v890 = vmul.f32 %v844, %v133
  %v891 = vmul.f32 %v849, %v133
  %v892 = vmul.f32 %v854, %v133
  %v893 = vmul.f32 %v859, %v133
  %v894 = vmul.f32 %v864, %v133
  %v895 = vmul.f32 %v869, %v133
  %v896 = vmul.f32 %v874, %v133
  %v897 = vmul.f32 %v879, %v133
  %v898 = vmul.f32 %v884, %v133
  %v899 = vadd.f32 %v886, 0.0
  %v900 = vadd.f32 %v887, 0.0
  %v901 = vadd.f32 %v888, 0.0
  %v902 = vadd.f32 %v889, 0.0
  %v903 = vadd.f32 %v890, 0.0
  %v904 = vadd.f32 %v891, 0.0
  %v905 = vadd.f32 %v892, 0.0
  %v906 = vadd.f32 %v893, 0.0
  %v907 = vadd.f32 %v894, 0.0
  %v908 = vadd.f32 %v895, 0.0
  %v909 = vadd.f32 %v896, 0.0
  %v910 = vadd.f32 %v897, 0.0
  %v911 = vadd.f32 %v898, 0.0
  %v912 = vadd.f32 %v781, 0.0
  %v913 = vadd.f32 %v782, 0.0
  %v914 = vadd.f32 %v783, 0.0
  %v915 = vadd.f32 %v784, 0.0
  %v916 = vadd.f32 %v785, 0.0
  %v917 = vadd.f32 %v786, 0.0
  %v918 = vadd.f32 %v787, 0.0
  %v919 = vadd.f32 %v788, 0.0
  %v920 = vadd.f32 %v789, 0.0
  %v921 = vadd.f32 %v790, 0.0
  %v922 = vadd.f32 %v791, 0.0
  %v923 = vadd.f32 %v792, 0.0
  %v924 = vadd.f32 %v793, 0.0
  %s925 = scalar_lea.vmem %s1, 416
  %v926 = vld [vmem:[%s925] sm:$0xff]
  %v927 = vld [vmem:[%s925 + $0x8] sm:$0xff]
  %v928 = vld [vmem:[%s925 + $0x10] sm:$0xff]
  %v929 = vld [vmem:[%s925 + $0x18] sm:$0xff]
  %v930 = vld [vmem:[%s925 + $0x20] sm:$0xff]
  %v931 = vld [vmem:[%s925 + $0x28] sm:$0xff]
  %v932 = vld [vmem:[%s925 + $0x30] sm:$0xff]
  %v933 = vld [vmem:[%s925 + $0x38] sm:$0xff]
  %v934 = vld [vmem:[%s925 + $0x40] sm:$0xff]
  %v935 = vld [vmem:[%s925 + $0x48] sm:$0xff]
  %v936 = vld [vmem:[%s925 + $0x50] sm:$0xff]
  %v937 = vld [vmem:[%s925 + $0x58] sm:$0xff]
  %v938 = vld [vmem:[%s925 + $0x60] sm:$0x3f]
  %s939 = scalar_lea.vmem %s0, 416
  %v940 = vld [vmem:[%s939] sm:$0xff]
  %v941 = vld [vmem:[%s939 + $0x8] sm:$0xff]
  %v942 = vld [vmem:[%s939 + $0x10] sm:$0xff]
  %v943 = vld [vmem:[%s939 + $0x18] sm:$0xff]
  %v944 = vld [vmem:[%s939 + $0x20] sm:$0xff]
  %v945 = vld [vmem:[%s939 + $0x28] sm:$0xff]
  %v946 = vld [vmem:[%s939 + $0x30] sm:$0xff]
  %v947 = vld [vmem:[%s939 + $0x38] sm:$0xff]
  %v948 = vld [vmem:[%s939 + $0x40] sm:$0xff]
  %v949 = vld [vmem:[%s939 + $0x48] sm:$0xff]
  %v950 = vld [vmem:[%s939 + $0x50] sm:$0xff]
  %v951 = vld [vmem:[%s939 + $0x58] sm:$0xff]
  %v952 = vld [vmem:[%s939 + $0x60] sm:$0x3f]
  %v953 = vmul.f32 %v940, %v926
  %v954 = vmul.f32 %v941, %v927
  %v955 = vmul.f32 %v942, %v928
  %v956 = vmul.f32 %v943, %v929
  %v957 = vmul.f32 %v944, %v930
  %v958 = vmul.f32 %v945, %v931
  %v959 = vmul.f32 %v946, %v932
  %v960 = vmul.f32 %v947, %v933
  %v961 = vmul.f32 %v948, %v934
  %v962 = vmul.f32 %v949, %v935
  %v963 = vmul.f32 %v950, %v936
  %v964 = vmul.f32 %v951, %v937
  %v965 = vmul.f32 %v952, %v938
  %967 = vset.pattern.permute.xlu0 0
  %968 = vperm.xlu0 %967, %v953
  %v969 = vpop.permute.xlu0 %968
  %972 = vset.pattern.permute.xlu0 0
  %973 = vperm.xlu0 %972, %v954
  %v974 = vpop.permute.xlu0 %973
  %977 = vset.pattern.permute.xlu0 0
  %978 = vperm.xlu0 %977, %v955
  %v979 = vpop.permute.xlu0 %978
  %982 = vset.pattern.permute.xlu0 0
  %983 = vperm.xlu0 %982, %v956
  %v984 = vpop.permute.xlu0 %983
  %987 = vset.pattern.permute.xlu0 0
  %988 = vperm.xlu0 %987, %v957
  %v989 = vpop.permute.xlu0 %988
  %992 = vset.pattern.permute.xlu0 0
  %993 = vperm.xlu0 %992, %v958
  %v994 = vpop.permute.xlu0 %993
  %997 = vset.pattern.permute.xlu0 0
  %998 = vperm.xlu0 %997, %v959
  %v999 = vpop.permute.xlu0 %998
  %1002 = vset.pattern.permute.xlu0 0
  %1003 = vperm.xlu0 %1002, %v960
  %v1004 = vpop.permute.xlu0 %1003
  %1007 = vset.pattern.permute.xlu0 0
  %1008 = vperm.xlu0 %1007, %v961
  %v1009 = vpop.permute.xlu0 %1008
  %1012 = vset.pattern.permute.xlu0 0
  %1013 = vperm.xlu0 %1012, %v962
  %v1014 = vpop.permute.xlu0 %1013
  %1017 = vset.pattern.permute.xlu0 0
  %1018 = vperm.xlu0 %1017, %v963
  %v1019 = vpop.permute.xlu0 %1018
  %1022 = vset.pattern.permute.xlu0 0
  %1023 = vperm.xlu0 %1022, %v964
  %v1024 = vpop.permute.xlu0 %1023
  %1027 = vset.pattern.permute.xlu0 0
  %1028 = vperm.xlu0 %1027, %v965
  %v1029 = vpop.permute.xlu0 %1028
  %v1031 = vmul.f32 %v969, %v286
  %v1032 = vmul.f32 %v974, %v286
  %v1033 = vmul.f32 %v979, %v286
  %v1034 = vmul.f32 %v984, %v286
  %v1035 = vmul.f32 %v989, %v286
  %v1036 = vmul.f32 %v994, %v286
  %v1037 = vmul.f32 %v999, %v286
  %v1038 = vmul.f32 %v1004, %v286
  %v1039 = vmul.f32 %v1009, %v286
  %v1040 = vmul.f32 %v1014, %v286
  %v1041 = vmul.f32 %v1019, %v286
  %v1042 = vmul.f32 %v1024, %v286
  %v1043 = vmul.f32 %v1029, %v286
  %v1044 = vadd.f32 %v899, %v1031
  %v1045 = vadd.f32 %v900, %v1032
  %v1046 = vadd.f32 %v901, %v1033
  %v1047 = vadd.f32 %v902, %v1034
  %v1048 = vadd.f32 %v903, %v1035
  %v1049 = vadd.f32 %v904, %v1036
  %v1050 = vadd.f32 %v905, %v1037
  %v1051 = vadd.f32 %v906, %v1038
  %v1052 = vadd.f32 %v907, %v1039
  %v1053 = vadd.f32 %v908, %v1040
  %v1054 = vadd.f32 %v909, %v1041
  %v1055 = vadd.f32 %v910, %v1042
  %v1056 = vadd.f32 %v911, %v1043
  %v1057 = vadd.f32 %v912, %v926
  %v1058 = vadd.f32 %v913, %v927
  %v1059 = vadd.f32 %v914, %v928
  %v1060 = vadd.f32 %v915, %v929
  %v1061 = vadd.f32 %v916, %v930
  %v1062 = vadd.f32 %v917, %v931
  %v1063 = vadd.f32 %v918, %v932
  %v1064 = vadd.f32 %v919, %v933
  %v1065 = vadd.f32 %v920, %v934
  %v1066 = vadd.f32 %v921, %v935
  %v1067 = vadd.f32 %v922, %v936
  %v1068 = vadd.f32 %v923, %v937
  %v1069 = vadd.f32 %v924, %v938
  %s1070 = scalar_lea.vmem %s1, 520
  %v1071 = vld [vmem:[%s1070] sm:$0xff]
  %v1072 = vld [vmem:[%s1070 + $0x8] sm:$0xff]
  %v1073 = vld [vmem:[%s1070 + $0x10] sm:$0xff]
  %v1074 = vld [vmem:[%s1070 + $0x18] sm:$0xff]
  %v1075 = vld [vmem:[%s1070 + $0x20] sm:$0xff]
  %v1076 = vld [vmem:[%s1070 + $0x28] sm:$0xff]
  %v1077 = vld [vmem:[%s1070 + $0x30] sm:$0xff]
  %v1078 = vld [vmem:[%s1070 + $0x38] sm:$0xff]
  %v1079 = vld [vmem:[%s1070 + $0x40] sm:$0xff]
  %v1080 = vld [vmem:[%s1070 + $0x48] sm:$0xff]
  %v1081 = vld [vmem:[%s1070 + $0x50] sm:$0xff]
  %v1082 = vld [vmem:[%s1070 + $0x58] sm:$0xff]
  %v1083 = vld [vmem:[%s1070 + $0x60] sm:$0x3f]
  %s1084 = scalar_lea.vmem %s0, 520
  %v1085 = vld [vmem:[%s1084] sm:$0xff]
  %v1086 = vld [vmem:[%s1084 + $0x8] sm:$0xff]
  %v1087 = vld [vmem:[%s1084 + $0x10] sm:$0xff]
  %v1088 = vld [vmem:[%s1084 + $0x18] sm:$0xff]
  %v1089 = vld [vmem:[%s1084 + $0x20] sm:$0xff]
  %v1090 = vld [vmem:[%s1084 + $0x28] sm:$0xff]
  %v1091 = vld [vmem:[%s1084 + $0x30] sm:$0xff]
  %v1092 = vld [vmem:[%s1084 + $0x38] sm:$0xff]
  %v1093 = vld [vmem:[%s1084 + $0x40] sm:$0xff]
  %v1094 = vld [vmem:[%s1084 + $0x48] sm:$0xff]
  %v1095 = vld [vmem:[%s1084 + $0x50] sm:$0xff]
  %v1096 = vld [vmem:[%s1084 + $0x58] sm:$0xff]
  %v1097 = vld [vmem:[%s1084 + $0x60] sm:$0x3f]
  %v1098 = vmul.f32 %v1085, %v1071
  %v1099 = vmul.f32 %v1086, %v1072
  %v1100 = vmul.f32 %v1087, %v1073
  %v1101 = vmul.f32 %v1088, %v1074
  %v1102 = vmul.f32 %v1089, %v1075
  %v1103 = vmul.f32 %v1090, %v1076
  %v1104 = vmul.f32 %v1091, %v1077
  %v1105 = vmul.f32 %v1092, %v1078
  %v1106 = vmul.f32 %v1093, %v1079
  %v1107 = vmul.f32 %v1094, %v1080
  %v1108 = vmul.f32 %v1095, %v1081
  %v1109 = vmul.f32 %v1096, %v1082
  %v1110 = vmul.f32 %v1097, %v1083
  %1112 = vset.pattern.permute.xlu0 0
  %1113 = vperm.xlu0 %1112, %v1098
  %v1114 = vpop.permute.xlu0 %1113
  %1117 = vset.pattern.permute.xlu0 0
  %1118 = vperm.xlu0 %1117, %v1099
  %v1119 = vpop.permute.xlu0 %1118
  %1122 = vset.pattern.permute.xlu0 0
  %1123 = vperm.xlu0 %1122, %v1100
  %v1124 = vpop.permute.xlu0 %1123
  %1127 = vset.pattern.permute.xlu0 0
  %1128 = vperm.xlu0 %1127, %v1101
  %v1129 = vpop.permute.xlu0 %1128
  %1132 = vset.pattern.permute.xlu0 0
  %1133 = vperm.xlu0 %1132, %v1102
  %v1134 = vpop.permute.xlu0 %1133
  %1137 = vset.pattern.permute.xlu0 0
  %1138 = vperm.xlu0 %1137, %v1103
  %v1139 = vpop.permute.xlu0 %1138
  %1142 = vset.pattern.permute.xlu0 0
  %1143 = vperm.xlu0 %1142, %v1104
  %v1144 = vpop.permute.xlu0 %1143
  %1147 = vset.pattern.permute.xlu0 0
  %1148 = vperm.xlu0 %1147, %v1105
  %v1149 = vpop.permute.xlu0 %1148
  %1152 = vset.pattern.permute.xlu0 0
  %1153 = vperm.xlu0 %1152, %v1106
  %v1154 = vpop.permute.xlu0 %1153
  %1157 = vset.pattern.permute.xlu0 0
  %1158 = vperm.xlu0 %1157, %v1107
  %v1159 = vpop.permute.xlu0 %1158
  %1162 = vset.pattern.permute.xlu0 0
  %1163 = vperm.xlu0 %1162, %v1108
  %v1164 = vpop.permute.xlu0 %1163
  %1167 = vset.pattern.permute.xlu0 0
  %1168 = vperm.xlu0 %1167, %v1109
  %v1169 = vpop.permute.xlu0 %1168
  %1172 = vset.pattern.permute.xlu0 0
  %1173 = vperm.xlu0 %1172, %v1110
  %v1174 = vpop.permute.xlu0 %1173
  %v1176 = vmul.f32 %v1114, %v439
  %v1177 = vmul.f32 %v1119, %v439
  %v1178 = vmul.f32 %v1124, %v439
  %v1179 = vmul.f32 %v1129, %v439
  %v1180 = vmul.f32 %v1134, %v439
  %v1181 = vmul.f32 %v1139, %v439
  %v1182 = vmul.f32 %v1144, %v439
  %v1183 = vmul.f32 %v1149, %v439
  %v1184 = vmul.f32 %v1154, %v439
  %v1185 = vmul.f32 %v1159, %v439
  %v1186 = vmul.f32 %v1164, %v439
  %v1187 = vmul.f32 %v1169, %v439
  %v1188 = vmul.f32 %v1174, %v439
  %v1189 = vadd.f32 %v1044, %v1176
  %v1190 = vadd.f32 %v1045, %v1177
  %v1191 = vadd.f32 %v1046, %v1178
  %v1192 = vadd.f32 %v1047, %v1179
  %v1193 = vadd.f32 %v1048, %v1180
  %v1194 = vadd.f32 %v1049, %v1181
  %v1195 = vadd.f32 %v1050, %v1182
  %v1196 = vadd.f32 %v1051, %v1183
  %v1197 = vadd.f32 %v1052, %v1184
  %v1198 = vadd.f32 %v1053, %v1185
  %v1199 = vadd.f32 %v1054, %v1186
  %v1200 = vadd.f32 %v1055, %v1187
  %v1201 = vadd.f32 %v1056, %v1188
  %v1202 = vadd.f32 %v1057, %v1071
  %v1203 = vadd.f32 %v1058, %v1072
  %v1204 = vadd.f32 %v1059, %v1073
  %v1205 = vadd.f32 %v1060, %v1074
  %v1206 = vadd.f32 %v1061, %v1075
  %v1207 = vadd.f32 %v1062, %v1076
  %v1208 = vadd.f32 %v1063, %v1077
  %v1209 = vadd.f32 %v1064, %v1078
  %v1210 = vadd.f32 %v1065, %v1079
  %v1211 = vadd.f32 %v1066, %v1080
  %v1212 = vadd.f32 %v1067, %v1081
  %v1213 = vadd.f32 %v1068, %v1082
  %v1214 = vadd.f32 %v1069, %v1083
  %vm1215 = vcmp.gt.f32.partialorder %v1202, 0.0
  %vm1216 = vcmp.gt.f32.partialorder %v1203, 0.0
  %vm1217 = vcmp.gt.f32.partialorder %v1204, 0.0
  %vm1218 = vcmp.gt.f32.partialorder %v1205, 0.0
  %vm1219 = vcmp.gt.f32.partialorder %v1206, 0.0
  %vm1220 = vcmp.gt.f32.partialorder %v1207, 0.0
  %vm1221 = vcmp.gt.f32.partialorder %v1208, 0.0
  %vm1222 = vcmp.gt.f32.partialorder %v1209, 0.0
  %vm1223 = vcmp.gt.f32.partialorder %v1210, 0.0
  %vm1224 = vcmp.gt.f32.partialorder %v1211, 0.0
  %vm1225 = vcmp.gt.f32.partialorder %v1212, 0.0
  %vm1226 = vcmp.gt.f32.partialorder %v1213, 0.0
  %vm1227 = vcmp.gt.f32.partialorder %v1214, 0.0
  %v1228 = vsel %vm1215, 1, 0
  %v1229 = vsel %vm1216, 1, 0
  %v1230 = vsel %vm1217, 1, 0
  %v1231 = vsel %vm1218, 1, 0
  %v1232 = vsel %vm1219, 1, 0
  %v1233 = vsel %vm1220, 1, 0
  %v1234 = vsel %vm1221, 1, 0
  %v1235 = vsel %vm1222, 1, 0
  %v1236 = vsel %vm1223, 1, 0
  %v1237 = vsel %vm1224, 1, 0
  %v1238 = vsel %vm1225, 1, 0
  %v1239 = vsel %vm1226, 1, 0
  %v1240 = vsel %vm1227, 1, 0
  %v1241 = vcvt.s32.f32 %v1228
  %v1242 = vcvt.s32.f32 %v1229
  %v1243 = vcvt.s32.f32 %v1230
  %v1244 = vcvt.s32.f32 %v1231
  %v1245 = vcvt.s32.f32 %v1232
  %v1246 = vcvt.s32.f32 %v1233
  %v1247 = vcvt.s32.f32 %v1234
  %v1248 = vcvt.s32.f32 %v1235
  %v1249 = vcvt.s32.f32 %v1236
  %v1250 = vcvt.s32.f32 %v1237
  %v1251 = vcvt.s32.f32 %v1238
  %v1252 = vcvt.s32.f32 %v1239
  %v1253 = vcvt.s32.f32 %v1240
  %v1254 = vmul.f32 %v1241, 3.0
  %v1255 = vmul.f32 %v1242, 3.0
  %v1256 = vmul.f32 %v1243, 3.0
  %v1257 = vmul.f32 %v1244, 3.0
  %v1258 = vmul.f32 %v1245, 3.0
  %v1259 = vmul.f32 %v1246, 3.0
  %v1260 = vmul.f32 %v1247, 3.0
  %v1261 = vmul.f32 %v1248, 3.0
  %v1262 = vmul.f32 %v1249, 3.0
  %v1263 = vmul.f32 %v1250, 3.0
  %v1264 = vmul.f32 %v1251, 3.0
  %v1265 = vmul.f32 %v1252, 3.0
  %v1266 = vmul.f32 %v1253, 3.0
  %v1267 = vmax.f32 %v1202, 1.0
  %v1268 = vmax.f32 %v1203, 1.0
  %v1269 = vmax.f32 %v1204, 1.0
  %v1270 = vmax.f32 %v1205, 1.0
  %v1271 = vmax.f32 %v1206, 1.0
  %v1272 = vmax.f32 %v1207, 1.0
  %v1273 = vmax.f32 %v1208, 1.0
  %v1274 = vmax.f32 %v1209, 1.0
  %v1275 = vmax.f32 %v1210, 1.0
  %v1276 = vmax.f32 %v1211, 1.0
  %v1277 = vmax.f32 %v1212, 1.0
  %v1278 = vmax.f32 %v1213, 1.0
  %v1279 = vmax.f32 %v1214, 1.0
  %v1280 = vrcp.pop %v1267
  %v1281 = vmul.f32 %v1254, %v1280
  %v1282 = vrcp.pop %v1268
  %v1283 = vmul.f32 %v1255, %v1282
  %v1284 = vrcp.pop %v1269
  %v1285 = vmul.f32 %v1256, %v1284
  %v1286 = vrcp.pop %v1270
  %v1287 = vmul.f32 %v1257, %v1286
  %v1288 = vrcp.pop %v1271
  %v1289 = vmul.f32 %v1258, %v1288
  %v1290 = vrcp.pop %v1272
  %v1291 = vmul.f32 %v1259, %v1290
  %v1292 = vrcp.pop %v1273
  %v1293 = vmul.f32 %v1260, %v1292
  %v1294 = vrcp.pop %v1274
  %v1295 = vmul.f32 %v1261, %v1294
  %v1296 = vrcp.pop %v1275
  %v1297 = vmul.f32 %v1262, %v1296
  %v1298 = vrcp.pop %v1276
  %v1299 = vmul.f32 %v1263, %v1298
  %v1300 = vrcp.pop %v1277
  %v1301 = vmul.f32 %v1264, %v1300
  %v1302 = vrcp.pop %v1278
  %v1303 = vmul.f32 %v1265, %v1302
  %v1304 = vrcp.pop %v1279
  %v1305 = vmul.f32 %v1266, %v1304
  %1307 = vset.pattern.permute.xlu0 0
  %1308 = vperm.xlu0 %1307, %v1281
  %v1309 = vpop.permute.xlu0 %1308
  %1312 = vset.pattern.permute.xlu0 0
  %1313 = vperm.xlu0 %1312, %v1283
  %v1314 = vpop.permute.xlu0 %1313
  %1317 = vset.pattern.permute.xlu0 0
  %1318 = vperm.xlu0 %1317, %v1285
  %v1319 = vpop.permute.xlu0 %1318
  %1322 = vset.pattern.permute.xlu0 0
  %1323 = vperm.xlu0 %1322, %v1287
  %v1324 = vpop.permute.xlu0 %1323
  %1327 = vset.pattern.permute.xlu0 0
  %1328 = vperm.xlu0 %1327, %v1289
  %v1329 = vpop.permute.xlu0 %1328
  %1332 = vset.pattern.permute.xlu0 0
  %1333 = vperm.xlu0 %1332, %v1291
  %v1334 = vpop.permute.xlu0 %1333
  %1337 = vset.pattern.permute.xlu0 0
  %1338 = vperm.xlu0 %1337, %v1293
  %v1339 = vpop.permute.xlu0 %1338
  %1342 = vset.pattern.permute.xlu0 0
  %1343 = vperm.xlu0 %1342, %v1295
  %v1344 = vpop.permute.xlu0 %1343
  %1347 = vset.pattern.permute.xlu0 0
  %1348 = vperm.xlu0 %1347, %v1297
  %v1349 = vpop.permute.xlu0 %1348
  %1352 = vset.pattern.permute.xlu0 0
  %1353 = vperm.xlu0 %1352, %v1299
  %v1354 = vpop.permute.xlu0 %1353
  %1357 = vset.pattern.permute.xlu0 0
  %1358 = vperm.xlu0 %1357, %v1301
  %v1359 = vpop.permute.xlu0 %1358
  %1362 = vset.pattern.permute.xlu0 0
  %1363 = vperm.xlu0 %1362, %v1303
  %v1364 = vpop.permute.xlu0 %1363
  %1367 = vset.pattern.permute.xlu0 0
  %1368 = vperm.xlu0 %1367, %v1305
  %v1369 = vpop.permute.xlu0 %1368
  %v1371 = vmul.f32 %v1189, %v1309
  %v1372 = vmul.f32 %v1190, %v1314
  %v1373 = vmul.f32 %v1191, %v1319
  %v1374 = vmul.f32 %v1192, %v1324
  %v1375 = vmul.f32 %v1193, %v1329
  %v1376 = vmul.f32 %v1194, %v1334
  %v1377 = vmul.f32 %v1195, %v1339
  %v1378 = vmul.f32 %v1196, %v1344
  %v1379 = vmul.f32 %v1197, %v1349
  %v1380 = vmul.f32 %v1198, %v1354
  %v1381 = vmul.f32 %v1199, %v1359
  %v1382 = vmul.f32 %v1200, %v1364
  %v1383 = vmul.f32 %v1201, %v1369
  %v1384 = vadd.f32 %v1371, %v653
  %v1385 = vadd.f32 %v1372, %v653
  %v1386 = vadd.f32 %v1373, %v653
  %v1387 = vadd.f32 %v1374, %v653
  %v1388 = vadd.f32 %v1375, %v653
  %v1389 = vadd.f32 %v1376, %v653
  %v1390 = vadd.f32 %v1377, %v653
  %v1391 = vadd.f32 %v1378, %v653
  %v1392 = vadd.f32 %v1379, %v653
  %v1393 = vadd.f32 %v1380, %v653
  %v1394 = vadd.f32 %v1381, %v653
  %v1395 = vadd.f32 %v1382, %v653
  %v1396 = vadd.f32 %v1383, %v653
  %v1397 = vmax.f32 %v1384, 0.0
  %v1398 = vmax.f32 %v1385, 0.0
  %v1399 = vmax.f32 %v1386, 0.0
  %v1400 = vmax.f32 %v1387, 0.0
  %v1401 = vmax.f32 %v1388, 0.0
  %v1402 = vmax.f32 %v1389, 0.0
  %v1403 = vmax.f32 %v1390, 0.0
  %v1404 = vmax.f32 %v1391, 0.0
  %v1405 = vmax.f32 %v1392, 0.0
  %v1406 = vmax.f32 %v1393, 0.0
  %v1407 = vmax.f32 %v1394, 0.0
  %v1408 = vmax.f32 %v1395, 0.0
  %v1409 = vmax.f32 %v1396, 0.0
  %1411 = vset.pattern.permute.xlu0 0
  %1412 = vperm.xlu0 %1411, %v1241
  %v1413 = vpop.permute.xlu0 %1412
  %1416 = vset.pattern.permute.xlu0 0
  %1417 = vperm.xlu0 %1416, %v1242
  %v1418 = vpop.permute.xlu0 %1417
  %1421 = vset.pattern.permute.xlu0 0
  %1422 = vperm.xlu0 %1421, %v1243
  %v1423 = vpop.permute.xlu0 %1422
  %1426 = vset.pattern.permute.xlu0 0
  %1427 = vperm.xlu0 %1426, %v1244
  %v1428 = vpop.permute.xlu0 %1427
  %1431 = vset.pattern.permute.xlu0 0
  %1432 = vperm.xlu0 %1431, %v1245
  %v1433 = vpop.permute.xlu0 %1432
  %1436 = vset.pattern.permute.xlu0 0
  %1437 = vperm.xlu0 %1436, %v1246
  %v1438 = vpop.permute.xlu0 %1437
  %1441 = vset.pattern.permute.xlu0 0
  %1442 = vperm.xlu0 %1441, %v1247
  %v1443 = vpop.permute.xlu0 %1442
  %1446 = vset.pattern.permute.xlu0 0
  %1447 = vperm.xlu0 %1446, %v1248
  %v1448 = vpop.permute.xlu0 %1447
  %1451 = vset.pattern.permute.xlu0 0
  %1452 = vperm.xlu0 %1451, %v1249
  %v1453 = vpop.permute.xlu0 %1452
  %1456 = vset.pattern.permute.xlu0 0
  %1457 = vperm.xlu0 %1456, %v1250
  %v1458 = vpop.permute.xlu0 %1457
  %1461 = vset.pattern.permute.xlu0 0
  %1462 = vperm.xlu0 %1461, %v1251
  %v1463 = vpop.permute.xlu0 %1462
  %1466 = vset.pattern.permute.xlu0 0
  %1467 = vperm.xlu0 %1466, %v1252
  %v1468 = vpop.permute.xlu0 %1467
  %1471 = vset.pattern.permute.xlu0 0
  %1472 = vperm.xlu0 %1471, %v1253
  %v1473 = vpop.permute.xlu0 %1472
  %v1475 = vmul.f32 %v1397, %v1413
  %v1476 = vmul.f32 %v1398, %v1418
  %v1477 = vmul.f32 %v1399, %v1423
  %v1478 = vmul.f32 %v1400, %v1428
  %v1479 = vmul.f32 %v1401, %v1433
  %v1480 = vmul.f32 %v1402, %v1438
  %v1481 = vmul.f32 %v1403, %v1443
  %v1482 = vmul.f32 %v1404, %v1448
  %v1483 = vmul.f32 %v1405, %v1453
  %v1484 = vmul.f32 %v1406, %v1458
  %v1485 = vmul.f32 %v1407, %v1463
  %v1486 = vmul.f32 %v1408, %v1468
  %v1487 = vmul.f32 %v1409, %v1473
  %s1488 = scalar_lea.vmem %s4, 64
  %v1489 = vld [vmem:[%s1488] sm:$0xff]
  %v1490 = vld [vmem:[%s1488 + $0x8] sm:$0xff]
  %v1491 = vld [vmem:[%s1488 + $0x10] sm:$0xff]
  %v1492 = vld [vmem:[%s1488 + $0x18] sm:$0xff]
  %v1493 = vld [vmem:[%s1488 + $0x20] sm:$0xff]
  %v1494 = vld [vmem:[%s1488 + $0x28] sm:$0xff]
  %v1495 = vld [vmem:[%s1488 + $0x30] sm:$0xff]
  %v1496 = vld [vmem:[%s1488 + $0x38] sm:$0xff]
  %vm1497 = vcmask 523264
  %v1499 = vsel %vm1497, %v1475, 0
  %v1502 = vsel %vm1497, %v1476, 0
  %v1505 = vsel %vm1497, %v1477, 0
  %v1508 = vsel %vm1497, %v1478, 0
  %v1511 = vsel %vm1497, %v1479, 0
  %v1514 = vsel %vm1497, %v1480, 0
  %v1517 = vsel %vm1497, %v1481, 0
  %v1520 = vsel %vm1497, %v1482, 0
  %v1523 = vsel %vm1497, %v1483, 0
  %v1526 = vsel %vm1497, %v1484, 0
  %v1529 = vsel %vm1497, %v1485, 0
  %v1532 = vsel %vm1497, %v1486, 0
  %v1535 = vsel %vm1497, %v1487, 0
  %1537 = vmatprep.subr.mxu0 0.0
  %1538 = vmatpush1.msra.mxu0 %v1489
  %1539 = vmatprep.subr.mxu0 0.0
  %1540 = vmatpush1.msra.mxu0 %v1490
  %1541 = vmatprep.subr.mxu0 0.0
  %1542 = vmatpush1.msra.mxu0 %v1491
  %1543 = vmatprep.subr.mxu0 0.0
  %1544 = vmatpush1.msra.mxu0 %v1492
  %1545 = vmatprep.subr.mxu0 0.0
  %1546 = vmatpush1.msra.mxu0 %v1493
  %1547 = vmatprep.subr.mxu0 0.0
  %1548 = vmatpush1.msra.mxu0 %v1494
  %1549 = vmatprep.subr.mxu0 0.0
  %1550 = vmatpush1.msra.mxu0 %v1495
  %1551 = vmatprep.subr.mxu0 0.0
  %1552 = vmatpush1.msra.mxu0 %v1496
  %1553 = vmatprep.subr.mxu0 0.0
  %1554 = vmatpush1.msra.mxu0 0.0
  %1555 = vmatprep.subr.mxu0 0.0
  %1556 = vmatpush1.msra.mxu0 0.0
  %1557 = vmatprep.subr.mxu0 0.0
  %1558 = vmatpush1.msra.mxu0 0.0
  %1559 = vmatprep.subr.mxu0 0.0
  %1560 = vmatpush1.msra.mxu0 0.0
  %1561 = vmatprep.subr.mxu0 0.0
  %1562 = vmatpush1.msra.mxu0 0.0
  %1563 = vmatprep.subr.mxu0 0.0
  %1564 = vmatpush1.msra.mxu0 0.0
  %1565 = vmatprep.subr.mxu0 0.0
  %1566 = vmatpush1.msra.mxu0 0.0
  %1567 = vmatprep.subr.mxu0 0.0
  %1568 = vmatpush1.msra.mxu0 0.0
  %1569 = vmatprep.subr.mxu0 0.0
  %1570 = vmatpush1.msra.mxu0 0.0
  %1571 = vmatprep.subr.mxu0 0.0
  %1572 = vmatpush1.msra.mxu0 0.0
  %1573 = vmatprep.subr.mxu0 0.0
  %1574 = vmatpush1.msra.mxu0 0.0
  %1575 = vmatprep.subr.mxu0 0.0
  %1576 = vmatpush1.msra.mxu0 0.0
  %1577 = vmatprep.subr.mxu0 0.0
  %1578 = vmatpush1.msra.mxu0 0.0
  %1579 = vmatprep.subr.mxu0 0.0
  %1580 = vmatpush1.msra.mxu0 0.0
  %1581 = vmatprep.subr.mxu0 0.0
  %1582 = vmatpush1.msra.mxu0 0.0
  %1583 = vmatprep.subr.mxu0 0.0
  %1584 = vmatpush1.msra.mxu0 0.0
  %1585 = vmatprep.subr.mxu0 0.0
  %1586 = vmatpush1.msra.mxu0 0.0
  %1587 = vmatprep.subr.mxu0 0.0
  %1588 = vmatpush1.msra.mxu0 0.0
  %1589 = vmatprep.subr.mxu0 0.0
  %1590 = vmatpush1.msra.mxu0 0.0
  %1591 = vmatprep.subr.mxu0 0.0
  %1592 = vmatpush1.msra.mxu0 0.0
  %1593 = vmatprep.subr.mxu0 0.0
  %1594 = vmatpush1.msra.mxu0 0.0
  %1595 = vmatprep.subr.mxu0 0.0
  %1596 = vmatpush1.msra.mxu0 0.0
  %1597 = vmatprep.subr.mxu0 0.0
  %1598 = vmatpush1.msra.mxu0 0.0
  %1599 = vmatprep.subr.mxu0 0.0
  %1600 = vmatpush1.msra.mxu0 0.0
  %1601 = vmatprep.mubr.f32.mxu0 0.0
  %1602 = vmatmul.mubr.f32.gmra.mrb[0].mxu0 %v1499
  %v1603 = vpop.f32.mrb[0].mxu0
  %v1604 = vadd.f32 0.0, %v1603
  %v1605 = vpop.f32.mrb[0].mxu0
  %1606 = vmatprep.mubr.f32.mxu0 0.0
  %1607 = vmatmul.mubr.f32.gmra.mrb[0].mxu0 %v1502
  %v1608 = vpop.f32.mrb[0].mxu0
  %v1609 = vadd.f32 0.0, %v1608
  %v1610 = vpop.f32.mrb[0].mxu0
  %1611 = vmatprep.mubr.f32.mxu0 0.0
  %1612 = vmatmul.mubr.f32.gmra.mrb[0].mxu0 %v1505
  %v1613 = vpop.f32.mrb[0].mxu0
  %v1614 = vadd.f32 0.0, %v1613
  %v1615 = vpop.f32.mrb[0].mxu0
  %1616 = vmatprep.mubr.f32.mxu0 0.0
  %1617 = vmatmul.mubr.f32.gmra.mrb[0].mxu0 %v1508
  %v1618 = vpop.f32.mrb[0].mxu0
  %v1619 = vadd.f32 0.0, %v1618
  %v1620 = vpop.f32.mrb[0].mxu0
  %1621 = vmatprep.mubr.f32.mxu0 0.0
  %1622 = vmatmul.mubr.f32.gmra.mrb[0].mxu0 %v1511
  %v1623 = vpop.f32.mrb[0].mxu0
  %v1624 = vadd.f32 0.0, %v1623
  %v1625 = vpop.f32.mrb[0].mxu0
  %1626 = vmatprep.mubr.f32.mxu0 0.0
  %1627 = vmatmul.mubr.f32.gmra.mrb[0].mxu0 %v1514
  %v1628 = vpop.f32.mrb[0].mxu0
  %v1629 = vadd.f32 0.0, %v1628
  %v1630 = vpop.f32.mrb[0].mxu0
  %1631 = vmatprep.mubr.f32.mxu0 0.0
  %1632 = vmatmul.mubr.f32.gmra.mrb[0].mxu0 %v1517
  %v1633 = vpop.f32.mrb[0].mxu0
  %v1634 = vadd.f32 0.0, %v1633
  %v1635 = vpop.f32.mrb[0].mxu0
  %1636 = vmatprep.mubr.f32.mxu0 0.0
  %1637 = vmatmul.mubr.f32.gmra.mrb[0].mxu0 %v1520
  %v1638 = vpop.f32.mrb[0].mxu0
  %v1639 = vadd.f32 0.0, %v1638
  %v1640 = vpop.f32.mrb[0].mxu0
  %1641 = vmatprep.mubr.f32.mxu0 0.0
  %1642 = vmatmul.mubr.f32.gmra.mrb[0].mxu0 %v1523
  %v1643 = vpop.f32.mrb[0].mxu0
  %v1644 = vadd.f32 0.0, %v1643
  %v1645 = vpop.f32.mrb[0].mxu0
  %1646 = vmatprep.mubr.f32.mxu0 0.0
  %1647 = vmatmul.mubr.f32.gmra.mrb[0].mxu0 %v1526
  %v1648 = vpop.f32.mrb[0].mxu0
  %v1649 = vadd.f32 0.0, %v1648
  %v1650 = vpop.f32.mrb[0].mxu0
  %1651 = vmatprep.mubr.f32.mxu0 0.0
  %1652 = vmatmul.mubr.f32.gmra.mrb[0].mxu0 %v1529
  %v1653 = vpop.f32.mrb[0].mxu0
  %v1654 = vadd.f32 0.0, %v1653
  %v1655 = vpop.f32.mrb[0].mxu0
  %1656 = vmatprep.mubr.f32.mxu0 0.0
  %1657 = vmatmul.mubr.f32.gmra.mrb[0].mxu0 %v1532
  %v1658 = vpop.f32.mrb[0].mxu0
  %v1659 = vadd.f32 0.0, %v1658
  %v1660 = vpop.f32.mrb[0].mxu0
  %1661 = vmatprep.mubr.f32.mxu0 0.0
  %1662 = vmatmul.mubr.f32.gmra.mrb[0].mxu0 %v1535
  %v1663 = vpop.f32.mrb[0].mxu0
  %v1664 = vadd.f32 0.0, %v1663
  %v1665 = vpop.f32.mrb[0].mxu0
  %1666 = vdwg.mxu0
  %v1668 = vsel %vm1497, %v746, 0
  %v1671 = vsel %vm1497, %v747, 0
  %v1674 = vsel %vm1497, %v748, 0
  %v1677 = vsel %vm1497, %v749, 0
  %v1680 = vsel %vm1497, %v750, 0
  %v1683 = vsel %vm1497, %v751, 0
  %v1686 = vsel %vm1497, %v752, 0
  %v1689 = vsel %vm1497, %v753, 0
  %v1692 = vsel %vm1497, %v754, 0
  %v1695 = vsel %vm1497, %v755, 0
  %v1698 = vsel %vm1497, %v756, 0
  %v1701 = vsel %vm1497, %v757, 0
  %v1704 = vsel %vm1497, %v758, 0
  %1706 = vmatprep.subr.mxu0 0.0
  %1707 = vmatpush1.msra.mxu0 %v759
  %1708 = vmatprep.subr.mxu0 0.0
  %1709 = vmatpush1.msra.mxu0 %v760
  %1710 = vmatprep.subr.mxu0 0.0
  %1711 = vmatpush1.msra.mxu0 %v761
  %1712 = vmatprep.subr.mxu0 0.0
  %1713 = vmatpush1.msra.mxu0 %v762
  %1714 = vmatprep.subr.mxu0 0.0
  %1715 = vmatpush1.msra.mxu0 %v763
  %1716 = vmatprep.subr.mxu0 0.0
  %1717 = vmatpush1.msra.mxu0 %v764
  %1718 = vmatprep.subr.mxu0 0.0
  %1719 = vmatpush1.msra.mxu0 %v765
  %1720 = vmatprep.subr.mxu0 0.0
  %1721 = vmatpush1.msra.mxu0 %v766
  %1722 = vmatprep.subr.mxu0 0.0
  %1723 = vmatpush1.msra.mxu0 0.0
  %1724 = vmatprep.subr.mxu0 0.0
  %1725 = vmatpush1.msra.mxu0 0.0
  %1726 = vmatprep.subr.mxu0 0.0
  %1727 = vmatpush1.msra.mxu0 0.0
  %1728 = vmatprep.subr.mxu0 0.0
  %1729 = vmatpush1.msra.mxu0 0.0
  %1730 = vmatprep.subr.mxu0 0.0
  %1731 = vmatpush1.msra.mxu0 0.0
  %1732 = vmatprep.subr.mxu0 0.0
  %1733 = vmatpush1.msra.mxu0 0.0
  %1734 = vmatprep.subr.mxu0 0.0
  %1735 = vmatpush1.msra.mxu0 0.0
  %1736 = vmatprep.subr.mxu0 0.0
  %1737 = vmatpush1.msra.mxu0 0.0
  %1738 = vmatprep.subr.mxu0 0.0
  %1739 = vmatpush1.msra.mxu0 0.0
  %1740 = vmatprep.subr.mxu0 0.0
  %1741 = vmatpush1.msra.mxu0 0.0
  %1742 = vmatprep.subr.mxu0 0.0
  %1743 = vmatpush1.msra.mxu0 0.0
  %1744 = vmatprep.subr.mxu0 0.0
  %1745 = vmatpush1.msra.mxu0 0.0
  %1746 = vmatprep.subr.mxu0 0.0
  %1747 = vmatpush1.msra.mxu0 0.0
  %1748 = vmatprep.subr.mxu0 0.0
  %1749 = vmatpush1.msra.mxu0 0.0
  %1750 = vmatprep.subr.mxu0 0.0
  %1751 = vmatpush1.msra.mxu0 0.0
  %1752 = vmatprep.subr.mxu0 0.0
  %1753 = vmatpush1.msra.mxu0 0.0
  %1754 = vmatprep.subr.mxu0 0.0
  %1755 = vmatpush1.msra.mxu0 0.0
  %1756 = vmatprep.subr.mxu0 0.0
  %1757 = vmatpush1.msra.mxu0 0.0
  %1758 = vmatprep.subr.mxu0 0.0
  %1759 = vmatpush1.msra.mxu0 0.0
  %1760 = vmatprep.subr.mxu0 0.0
  %1761 = vmatpush1.msra.mxu0 0.0
  %1762 = vmatprep.subr.mxu0 0.0
  %1763 = vmatpush1.msra.mxu0 0.0
  %1764 = vmatprep.subr.mxu0 0.0
  %1765 = vmatpush1.msra.mxu0 0.0
  %1766 = vmatprep.subr.mxu0 0.0
  %1767 = vmatpush1.msra.mxu0 0.0
  %1768 = vmatprep.subr.mxu0 0.0
  %1769 = vmatpush1.msra.mxu0 0.0
  %1770 = vmatprep.mubr.f32.mxu0 0.0
  %1771 = vmatmul.mubr.f32.gmra.mrb[0].mxu0 %v1668
  %v1772 = vpop.f32.mrb[0].mxu0
  %v1773 = vadd.f32 %v1604, %v1772
  %v1774 = vpop.f32.mrb[0].mxu0
  %1775 = vmatprep.mubr.f32.mxu0 0.0
  %1776 = vmatmul.mubr.f32.gmra.mrb[0].mxu0 %v1671
  %v1777 = vpop.f32.mrb[0].mxu0
  %v1778 = vadd.f32 %v1609, %v1777
  %v1779 = vpop.f32.mrb[0].mxu0
  %1780 = vmatprep.mubr.f32.mxu0 0.0
  %1781 = vmatmul.mubr.f32.gmra.mrb[0].mxu0 %v1674
  %v1782 = vpop.f32.mrb[0].mxu0
  %v1783 = vadd.f32 %v1614, %v1782
  %v1784 = vpop.f32.mrb[0].mxu0
  %1785 = vmatprep.mubr.f32.mxu0 0.0
  %1786 = vmatmul.mubr.f32.gmra.mrb[0].mxu0 %v1677
  %v1787 = vpop.f32.mrb[0].mxu0
  %v1788 = vadd.f32 %v1619, %v1787
  %v1789 = vpop.f32.mrb[0].mxu0
  %1790 = vmatprep.mubr.f32.mxu0 0.0
  %1791 = vmatmul.mubr.f32.gmra.mrb[0].mxu0 %v1680
  %v1792 = vpop.f32.mrb[0].mxu0
  %v1793 = vadd.f32 %v1624, %v1792
  %v1794 = vpop.f32.mrb[0].mxu0
  %1795 = vmatprep.mubr.f32.mxu0 0.0
  %1796 = vmatmul.mubr.f32.gmra.mrb[0].mxu0 %v1683
  %v1797 = vpop.f32.mrb[0].mxu0
  %v1798 = vadd.f32 %v1629, %v1797
  %v1799 = vpop.f32.mrb[0].mxu0
  %1800 = vmatprep.mubr.f32.mxu0 0.0
  %1801 = vmatmul.mubr.f32.gmra.mrb[0].mxu0 %v1686
  %v1802 = vpop.f32.mrb[0].mxu0
  %v1803 = vadd.f32 %v1634, %v1802
  %v1804 = vpop.f32.mrb[0].mxu0
  %1805 = vmatprep.mubr.f32.mxu0 0.0
  %1806 = vmatmul.mubr.f32.gmra.mrb[0].mxu0 %v1689
  %v1807 = vpop.f32.mrb[0].mxu0
  %v1808 = vadd.f32 %v1639, %v1807
  %v1809 = vpop.f32.mrb[0].mxu0
  %1810 = vmatprep.mubr.f32.mxu0 0.0
  %1811 = vmatmul.mubr.f32.gmra.mrb[0].mxu0 %v1692
  %v1812 = vpop.f32.mrb[0].mxu0
  %v1813 = vadd.f32 %v1644, %v1812
  %v1814 = vpop.f32.mrb[0].mxu0
  %1815 = vmatprep.mubr.f32.mxu0 0.0
  %1816 = vmatmul.mubr.f32.gmra.mrb[0].mxu0 %v1695
  %v1817 = vpop.f32.mrb[0].mxu0
  %v1818 = vadd.f32 %v1649, %v1817
  %v1819 = vpop.f32.mrb[0].mxu0
  %1820 = vmatprep.mubr.f32.mxu0 0.0
  %1821 = vmatmul.mubr.f32.gmra.mrb[0].mxu0 %v1698
  %v1822 = vpop.f32.mrb[0].mxu0
  %v1823 = vadd.f32 %v1654, %v1822
  %v1824 = vpop.f32.mrb[0].mxu0
  %1825 = vmatprep.mubr.f32.mxu0 0.0
  %1826 = vmatmul.mubr.f32.gmra.mrb[0].mxu0 %v1701
  %v1827 = vpop.f32.mrb[0].mxu0
  %v1828 = vadd.f32 %v1659, %v1827
  %v1829 = vpop.f32.mrb[0].mxu0
  %1830 = vmatprep.mubr.f32.mxu0 0.0
  %1831 = vmatmul.mubr.f32.gmra.mrb[0].mxu0 %v1704
  %v1832 = vpop.f32.mrb[0].mxu0
  %v1833 = vadd.f32 %v1664, %v1832
  %v1834 = vpop.f32.mrb[0].mxu0
  %1835 = vdwg.mxu0
  %v1836 = vadd.f32 %v767, %v1241
  %v1837 = vadd.f32 %v768, %v1242
  %v1838 = vadd.f32 %v769, %v1243
  %v1839 = vadd.f32 %v770, %v1244
  %v1840 = vadd.f32 %v771, %v1245
  %v1841 = vadd.f32 %v772, %v1246
  %v1842 = vadd.f32 %v773, %v1247
  %v1843 = vadd.f32 %v774, %v1248
  %v1844 = vadd.f32 %v775, %v1249
  %v1845 = vadd.f32 %v776, %v1250
  %v1846 = vadd.f32 %v777, %v1251
  %v1847 = vadd.f32 %v778, %v1252
  %v1848 = vadd.f32 %v779, %v1253
  %s1849 = scalar_lea.vmem %s1, 624
  %v1850 = vld [vmem:[%s1849] sm:$0xff]
  %v1851 = vld [vmem:[%s1849 + $0x8] sm:$0xff]
  %v1852 = vld [vmem:[%s1849 + $0x10] sm:$0xff]
  %v1853 = vld [vmem:[%s1849 + $0x18] sm:$0xff]
  %v1854 = vld [vmem:[%s1849 + $0x20] sm:$0xff]
  %v1855 = vld [vmem:[%s1849 + $0x28] sm:$0xff]
  %v1856 = vld [vmem:[%s1849 + $0x30] sm:$0xff]
  %v1857 = vld [vmem:[%s1849 + $0x38] sm:$0xff]
  %v1858 = vld [vmem:[%s1849 + $0x40] sm:$0xff]
  %v1859 = vld [vmem:[%s1849 + $0x48] sm:$0xff]
  %v1860 = vld [vmem:[%s1849 + $0x50] sm:$0xff]
  %v1861 = vld [vmem:[%s1849 + $0x58] sm:$0xff]
  %v1862 = vld [vmem:[%s1849 + $0x60] sm:$0x3f]
  %s1863 = scalar_lea.vmem %s0, 624
  %v1864 = vld [vmem:[%s1863] sm:$0xff]
  %v1865 = vld [vmem:[%s1863 + $0x8] sm:$0xff]
  %v1866 = vld [vmem:[%s1863 + $0x10] sm:$0xff]
  %v1867 = vld [vmem:[%s1863 + $0x18] sm:$0xff]
  %v1868 = vld [vmem:[%s1863 + $0x20] sm:$0xff]
  %v1869 = vld [vmem:[%s1863 + $0x28] sm:$0xff]
  %v1870 = vld [vmem:[%s1863 + $0x30] sm:$0xff]
  %v1871 = vld [vmem:[%s1863 + $0x38] sm:$0xff]
  %v1872 = vld [vmem:[%s1863 + $0x40] sm:$0xff]
  %v1873 = vld [vmem:[%s1863 + $0x48] sm:$0xff]
  %v1874 = vld [vmem:[%s1863 + $0x50] sm:$0xff]
  %v1875 = vld [vmem:[%s1863 + $0x58] sm:$0xff]
  %v1876 = vld [vmem:[%s1863 + $0x60] sm:$0x3f]
  %v1877 = vmul.f32 %v1864, %v1850
  %v1878 = vmul.f32 %v1865, %v1851
  %v1879 = vmul.f32 %v1866, %v1852
  %v1880 = vmul.f32 %v1867, %v1853
  %v1881 = vmul.f32 %v1868, %v1854
  %v1882 = vmul.f32 %v1869, %v1855
  %v1883 = vmul.f32 %v1870, %v1856
  %v1884 = vmul.f32 %v1871, %v1857
  %v1885 = vmul.f32 %v1872, %v1858
  %v1886 = vmul.f32 %v1873, %v1859
  %v1887 = vmul.f32 %v1874, %v1860
  %v1888 = vmul.f32 %v1875, %v1861
  %v1889 = vmul.f32 %v1876, %v1862
  %1891 = vset.pattern.permute.xlu0 0
  %1892 = vperm.xlu0 %1891, %v1877
  %v1893 = vpop.permute.xlu0 %1892
  %1896 = vset.pattern.permute.xlu0 0
  %1897 = vperm.xlu0 %1896, %v1878
  %v1898 = vpop.permute.xlu0 %1897
  %1901 = vset.pattern.permute.xlu0 0
  %1902 = vperm.xlu0 %1901, %v1879
  %v1903 = vpop.permute.xlu0 %1902
  %1906 = vset.pattern.permute.xlu0 0
  %1907 = vperm.xlu0 %1906, %v1880
  %v1908 = vpop.permute.xlu0 %1907
  %1911 = vset.pattern.permute.xlu0 0
  %1912 = vperm.xlu0 %1911, %v1881
  %v1913 = vpop.permute.xlu0 %1912
  %1916 = vset.pattern.permute.xlu0 0
  %1917 = vperm.xlu0 %1916, %v1882
  %v1918 = vpop.permute.xlu0 %1917
  %1921 = vset.pattern.permute.xlu0 0
  %1922 = vperm.xlu0 %1921, %v1883
  %v1923 = vpop.permute.xlu0 %1922
  %1926 = vset.pattern.permute.xlu0 0
  %1927 = vperm.xlu0 %1926, %v1884
  %v1928 = vpop.permute.xlu0 %1927
  %1931 = vset.pattern.permute.xlu0 0
  %1932 = vperm.xlu0 %1931, %v1885
  %v1933 = vpop.permute.xlu0 %1932
  %1936 = vset.pattern.permute.xlu0 0
  %1937 = vperm.xlu0 %1936, %v1886
  %v1938 = vpop.permute.xlu0 %1937
  %1941 = vset.pattern.permute.xlu0 0
  %1942 = vperm.xlu0 %1941, %v1887
  %v1943 = vpop.permute.xlu0 %1942
  %1946 = vset.pattern.permute.xlu0 0
  %1947 = vperm.xlu0 %1946, %v1888
  %v1948 = vpop.permute.xlu0 %1947
  %1951 = vset.pattern.permute.xlu0 0
  %1952 = vperm.xlu0 %1951, %v1889
  %v1953 = vpop.permute.xlu0 %1952
  %v1955 = vmul.f32 %v1893, %v133
  %v1956 = vmul.f32 %v1898, %v133
  %v1957 = vmul.f32 %v1903, %v133
  %v1958 = vmul.f32 %v1908, %v133
  %v1959 = vmul.f32 %v1913, %v133
  %v1960 = vmul.f32 %v1918, %v133
  %v1961 = vmul.f32 %v1923, %v133
  %v1962 = vmul.f32 %v1928, %v133
  %v1963 = vmul.f32 %v1933, %v133
  %v1964 = vmul.f32 %v1938, %v133
  %v1965 = vmul.f32 %v1943, %v133
  %v1966 = vmul.f32 %v1948, %v133
  %v1967 = vmul.f32 %v1953, %v133
  %v1968 = vadd.f32 %v1955, 0.0
  %v1969 = vadd.f32 %v1956, 0.0
  %v1970 = vadd.f32 %v1957, 0.0
  %v1971 = vadd.f32 %v1958, 0.0
  %v1972 = vadd.f32 %v1959, 0.0
  %v1973 = vadd.f32 %v1960, 0.0
  %v1974 = vadd.f32 %v1961, 0.0
  %v1975 = vadd.f32 %v1962, 0.0
  %v1976 = vadd.f32 %v1963, 0.0
  %v1977 = vadd.f32 %v1964, 0.0
  %v1978 = vadd.f32 %v1965, 0.0
  %v1979 = vadd.f32 %v1966, 0.0
  %v1980 = vadd.f32 %v1967, 0.0
  %v1981 = vadd.f32 %v1850, 0.0
  %v1982 = vadd.f32 %v1851, 0.0
  %v1983 = vadd.f32 %v1852, 0.0
  %v1984 = vadd.f32 %v1853, 0.0
  %v1985 = vadd.f32 %v1854, 0.0
  %v1986 = vadd.f32 %v1855, 0.0
  %v1987 = vadd.f32 %v1856, 0.0
  %v1988 = vadd.f32 %v1857, 0.0
  %v1989 = vadd.f32 %v1858, 0.0
  %v1990 = vadd.f32 %v1859, 0.0
  %v1991 = vadd.f32 %v1860, 0.0
  %v1992 = vadd.f32 %v1861, 0.0
  %v1993 = vadd.f32 %v1862, 0.0
  %s1994 = scalar_lea.vmem %s1, 728
  %v1995 = vld [vmem:[%s1994] sm:$0xff]
  %v1996 = vld [vmem:[%s1994 + $0x8] sm:$0xff]
  %v1997 = vld [vmem:[%s1994 + $0x10] sm:$0xff]
  %v1998 = vld [vmem:[%s1994 + $0x18] sm:$0xff]
  %v1999 = vld [vmem:[%s1994 + $0x20] sm:$0xff]
  %v2000 = vld [vmem:[%s1994 + $0x28] sm:$0xff]
  %v2001 = vld [vmem:[%s1994 + $0x30] sm:$0xff]
  %v2002 = vld [vmem:[%s1994 + $0x38] sm:$0xff]
  %v2003 = vld [vmem:[%s1994 + $0x40] sm:$0xff]
  %v2004 = vld [vmem:[%s1994 + $0x48] sm:$0xff]
  %v2005 = vld [vmem:[%s1994 + $0x50] sm:$0xff]
  %v2006 = vld [vmem:[%s1994 + $0x58] sm:$0xff]
  %v2007 = vld [vmem:[%s1994 + $0x60] sm:$0x3f]
  %s2008 = scalar_lea.vmem %s0, 728
  %v2009 = vld [vmem:[%s2008] sm:$0xff]
  %v2010 = vld [vmem:[%s2008 + $0x8] sm:$0xff]
  %v2011 = vld [vmem:[%s2008 + $0x10] sm:$0xff]
  %v2012 = vld [vmem:[%s2008 + $0x18] sm:$0xff]
  %v2013 = vld [vmem:[%s2008 + $0x20] sm:$0xff]
  %v2014 = vld [vmem:[%s2008 + $0x28] sm:$0xff]
  %v2015 = vld [vmem:[%s2008 + $0x30] sm:$0xff]
  %v2016 = vld [vmem:[%s2008 + $0x38] sm:$0xff]
  %v2017 = vld [vmem:[%s2008 + $0x40] sm:$0xff]
  %v2018 = vld [vmem:[%s2008 + $0x48] sm:$0xff]
  %v2019 = vld [vmem:[%s2008 + $0x50] sm:$0xff]
  %v2020 = vld [vmem:[%s2008 + $0x58] sm:$0xff]
  %v2021 = vld [vmem:[%s2008 + $0x60] sm:$0x3f]
  %v2022 = vmul.f32 %v2009, %v1995
  %v2023 = vmul.f32 %v2010, %v1996
  %v2024 = vmul.f32 %v2011, %v1997
  %v2025 = vmul.f32 %v2012, %v1998
  %v2026 = vmul.f32 %v2013, %v1999
  %v2027 = vmul.f32 %v2014, %v2000
  %v2028 = vmul.f32 %v2015, %v2001
  %v2029 = vmul.f32 %v2016, %v2002
  %v2030 = vmul.f32 %v2017, %v2003
  %v2031 = vmul.f32 %v2018, %v2004
  %v2032 = vmul.f32 %v2019, %v2005
  %v2033 = vmul.f32 %v2020, %v2006
  %v2034 = vmul.f32 %v2021, %v2007
  %2036 = vset.pattern.permute.xlu0 0
  %2037 = vperm.xlu0 %2036, %v2022
  %v2038 = vpop.permute.xlu0 %2037
  %2041 = vset.pattern.permute.xlu0 0
  %2042 = vperm.xlu0 %2041, %v2023
  %v2043 = vpop.permute.xlu0 %2042
  %2046 = vset.pattern.permute.xlu0 0
  %2047 = vperm.xlu0 %2046, %v2024
  %v2048 = vpop.permute.xlu0 %2047
  %2051 = vset.pattern.permute.xlu0 0
  %2052 = vperm.xlu0 %2051, %v2025
  %v2053 = vpop.permute.xlu0 %2052
  %2056 = vset.pattern.permute.xlu0 0
  %2057 = vperm.xlu0 %2056, %v2026
  %v2058 = vpop.permute.xlu0 %2057
  %2061 = vset.pattern.permute.xlu0 0
  %2062 = vperm.xlu0 %2061, %v2027
  %v2063 = vpop.permute.xlu0 %2062
  %2066 = vset.pattern.permute.xlu0 0
  %2067 = vperm.xlu0 %2066, %v2028
  %v2068 = vpop.permute.xlu0 %2067
  %2071 = vset.pattern.permute.xlu0 0
  %2072 = vperm.xlu0 %2071, %v2029
  %v2073 = vpop.permute.xlu0 %2072
  %2076 = vset.pattern.permute.xlu0 0
  %2077 = vperm.xlu0 %2076, %v2030
  %v2078 = vpop.permute.xlu0 %2077
  %2081 = vset.pattern.permute.xlu0 0
  %2082 = vperm.xlu0 %2081, %v2031
  %v2083 = vpop.permute.xlu0 %2082
  %2086 = vset.pattern.permute.xlu0 0
  %2087 = vperm.xlu0 %2086, %v2032
  %v2088 = vpop.permute.xlu0 %2087
  %2091 = vset.pattern.permute.xlu0 0
  %2092 = vperm.xlu0 %2091, %v2033
  %v2093 = vpop.permute.xlu0 %2092
  %2096 = vset.pattern.permute.xlu0 0
  %2097 = vperm.xlu0 %2096, %v2034
  %v2098 = vpop.permute.xlu0 %2097
  %v2100 = vmul.f32 %v2038, %v286
  %v2101 = vmul.f32 %v2043, %v286
  %v2102 = vmul.f32 %v2048, %v286
  %v2103 = vmul.f32 %v2053, %v286
  %v2104 = vmul.f32 %v2058, %v286
  %v2105 = vmul.f32 %v2063, %v286
  %v2106 = vmul.f32 %v2068, %v286
  %v2107 = vmul.f32 %v2073, %v286
  %v2108 = vmul.f32 %v2078, %v286
  %v2109 = vmul.f32 %v2083, %v286
  %v2110 = vmul.f32 %v2088, %v286
  %v2111 = vmul.f32 %v2093, %v286
  %v2112 = vmul.f32 %v2098, %v286
  %v2113 = vadd.f32 %v1968, %v2100
  %v2114 = vadd.f32 %v1969, %v2101
  %v2115 = vadd.f32 %v1970, %v2102
  %v2116 = vadd.f32 %v1971, %v2103
  %v2117 = vadd.f32 %v1972, %v2104
  %v2118 = vadd.f32 %v1973, %v2105
  %v2119 = vadd.f32 %v1974, %v2106
  %v2120 = vadd.f32 %v1975, %v2107
  %v2121 = vadd.f32 %v1976, %v2108
  %v2122 = vadd.f32 %v1977, %v2109
  %v2123 = vadd.f32 %v1978, %v2110
  %v2124 = vadd.f32 %v1979, %v2111
  %v2125 = vadd.f32 %v1980, %v2112
  %v2126 = vadd.f32 %v1981, %v1995
  %v2127 = vadd.f32 %v1982, %v1996
  %v2128 = vadd.f32 %v1983, %v1997
  %v2129 = vadd.f32 %v1984, %v1998
  %v2130 = vadd.f32 %v1985, %v1999
  %v2131 = vadd.f32 %v1986, %v2000
  %v2132 = vadd.f32 %v1987, %v2001
  %v2133 = vadd.f32 %v1988, %v2002
  %v2134 = vadd.f32 %v1989, %v2003
  %v2135 = vadd.f32 %v1990, %v2004
  %v2136 = vadd.f32 %v1991, %v2005
  %v2137 = vadd.f32 %v1992, %v2006
  %v2138 = vadd.f32 %v1993, %v2007
  %s2139 = scalar_lea.vmem %s1, 832
  %v2140 = vld [vmem:[%s2139] sm:$0xff]
  %v2141 = vld [vmem:[%s2139 + $0x8] sm:$0xff]
  %v2142 = vld [vmem:[%s2139 + $0x10] sm:$0xff]
  %v2143 = vld [vmem:[%s2139 + $0x18] sm:$0xff]
  %v2144 = vld [vmem:[%s2139 + $0x20] sm:$0xff]
  %v2145 = vld [vmem:[%s2139 + $0x28] sm:$0xff]
  %v2146 = vld [vmem:[%s2139 + $0x30] sm:$0xff]
  %v2147 = vld [vmem:[%s2139 + $0x38] sm:$0xff]
  %v2148 = vld [vmem:[%s2139 + $0x40] sm:$0xff]
  %v2149 = vld [vmem:[%s2139 + $0x48] sm:$0xff]
  %v2150 = vld [vmem:[%s2139 + $0x50] sm:$0xff]
  %v2151 = vld [vmem:[%s2139 + $0x58] sm:$0xff]
  %v2152 = vld [vmem:[%s2139 + $0x60] sm:$0x3f]
  %s2153 = scalar_lea.vmem %s0, 832
  %v2154 = vld [vmem:[%s2153] sm:$0xff]
  %v2155 = vld [vmem:[%s2153 + $0x8] sm:$0xff]
  %v2156 = vld [vmem:[%s2153 + $0x10] sm:$0xff]
  %v2157 = vld [vmem:[%s2153 + $0x18] sm:$0xff]
  %v2158 = vld [vmem:[%s2153 + $0x20] sm:$0xff]
  %v2159 = vld [vmem:[%s2153 + $0x28] sm:$0xff]
  %v2160 = vld [vmem:[%s2153 + $0x30] sm:$0xff]
  %v2161 = vld [vmem:[%s2153 + $0x38] sm:$0xff]
  %v2162 = vld [vmem:[%s2153 + $0x40] sm:$0xff]
  %v2163 = vld [vmem:[%s2153 + $0x48] sm:$0xff]
  %v2164 = vld [vmem:[%s2153 + $0x50] sm:$0xff]
  %v2165 = vld [vmem:[%s2153 + $0x58] sm:$0xff]
  %v2166 = vld [vmem:[%s2153 + $0x60] sm:$0x3f]
  %v2167 = vmul.f32 %v2154, %v2140
  %v2168 = vmul.f32 %v2155, %v2141
  %v2169 = vmul.f32 %v2156, %v2142
  %v2170 = vmul.f32 %v2157, %v2143
  %v2171 = vmul.f32 %v2158, %v2144
  %v2172 = vmul.f32 %v2159, %v2145
  %v2173 = vmul.f32 %v2160, %v2146
  %v2174 = vmul.f32 %v2161, %v2147
  %v2175 = vmul.f32 %v2162, %v2148
  %v2176 = vmul.f32 %v2163, %v2149
  %v2177 = vmul.f32 %v2164, %v2150
  %v2178 = vmul.f32 %v2165, %v2151
  %v2179 = vmul.f32 %v2166, %v2152
  %2181 = vset.pattern.permute.xlu0 0
  %2182 = vperm.xlu0 %2181, %v2167
  %v2183 = vpop.permute.xlu0 %2182
  %2186 = vset.pattern.permute.xlu0 0
  %2187 = vperm.xlu0 %2186, %v2168
  %v2188 = vpop.permute.xlu0 %2187
  %2191 = vset.pattern.permute.xlu0 0
  %2192 = vperm.xlu0 %2191, %v2169
  %v2193 = vpop.permute.xlu0 %2192
  %2196 = vset.pattern.permute.xlu0 0
  %2197 = vperm.xlu0 %2196, %v2170
  %v2198 = vpop.permute.xlu0 %2197
  %2201 = vset.pattern.permute.xlu0 0
  %2202 = vperm.xlu0 %2201, %v2171
  %v2203 = vpop.permute.xlu0 %2202
  %2206 = vset.pattern.permute.xlu0 0
  %2207 = vperm.xlu0 %2206, %v2172
  %v2208 = vpop.permute.xlu0 %2207
  %2211 = vset.pattern.permute.xlu0 0
  %2212 = vperm.xlu0 %2211, %v2173
  %v2213 = vpop.permute.xlu0 %2212
  %2216 = vset.pattern.permute.xlu0 0
  %2217 = vperm.xlu0 %2216, %v2174
  %v2218 = vpop.permute.xlu0 %2217
  %2221 = vset.pattern.permute.xlu0 0
  %2222 = vperm.xlu0 %2221, %v2175
  %v2223 = vpop.permute.xlu0 %2222
  %2226 = vset.pattern.permute.xlu0 0
  %2227 = vperm.xlu0 %2226, %v2176
  %v2228 = vpop.permute.xlu0 %2227
  %2231 = vset.pattern.permute.xlu0 0
  %2232 = vperm.xlu0 %2231, %v2177
  %v2233 = vpop.permute.xlu0 %2232
  %2236 = vset.pattern.permute.xlu0 0
  %2237 = vperm.xlu0 %2236, %v2178
  %v2238 = vpop.permute.xlu0 %2237
  %2241 = vset.pattern.permute.xlu0 0
  %2242 = vperm.xlu0 %2241, %v2179
  %v2243 = vpop.permute.xlu0 %2242
  %v2245 = vmul.f32 %v2183, %v439
  %v2246 = vmul.f32 %v2188, %v439
  %v2247 = vmul.f32 %v2193, %v439
  %v2248 = vmul.f32 %v2198, %v439
  %v2249 = vmul.f32 %v2203, %v439
  %v2250 = vmul.f32 %v2208, %v439
  %v2251 = vmul.f32 %v2213, %v439
  %v2252 = vmul.f32 %v2218, %v439
  %v2253 = vmul.f32 %v2223, %v439
  %v2254 = vmul.f32 %v2228, %v439
  %v2255 = vmul.f32 %v2233, %v439
  %v2256 = vmul.f32 %v2238, %v439
  %v2257 = vmul.f32 %v2243, %v439
  %v2258 = vadd.f32 %v2113, %v2245
  %v2259 = vadd.f32 %v2114, %v2246
  %v2260 = vadd.f32 %v2115, %v2247
  %v2261 = vadd.f32 %v2116, %v2248
  %v2262 = vadd.f32 %v2117, %v2249
  %v2263 = vadd.f32 %v2118, %v2250
  %v2264 = vadd.f32 %v2119, %v2251
  %v2265 = vadd.f32 %v2120, %v2252
  %v2266 = vadd.f32 %v2121, %v2253
  %v2267 = vadd.f32 %v2122, %v2254
  %v2268 = vadd.f32 %v2123, %v2255
  %v2269 = vadd.f32 %v2124, %v2256
  %v2270 = vadd.f32 %v2125, %v2257
  %v2271 = vadd.f32 %v2126, %v2140
  %v2272 = vadd.f32 %v2127, %v2141
  %v2273 = vadd.f32 %v2128, %v2142
  %v2274 = vadd.f32 %v2129, %v2143
  %v2275 = vadd.f32 %v2130, %v2144
  %v2276 = vadd.f32 %v2131, %v2145
  %v2277 = vadd.f32 %v2132, %v2146
  %v2278 = vadd.f32 %v2133, %v2147
  %v2279 = vadd.f32 %v2134, %v2148
  %v2280 = vadd.f32 %v2135, %v2149
  %v2281 = vadd.f32 %v2136, %v2150
  %v2282 = vadd.f32 %v2137, %v2151
  %v2283 = vadd.f32 %v2138, %v2152
  %vm2284 = vcmp.gt.f32.partialorder %v2271, 0.0
  %vm2285 = vcmp.gt.f32.partialorder %v2272, 0.0
  %vm2286 = vcmp.gt.f32.partialorder %v2273, 0.0
  %vm2287 = vcmp.gt.f32.partialorder %v2274, 0.0
  %vm2288 = vcmp.gt.f32.partialorder %v2275, 0.0
  %vm2289 = vcmp.gt.f32.partialorder %v2276, 0.0
  %vm2290 = vcmp.gt.f32.partialorder %v2277, 0.0
  %vm2291 = vcmp.gt.f32.partialorder %v2278, 0.0
  %vm2292 = vcmp.gt.f32.partialorder %v2279, 0.0
  %vm2293 = vcmp.gt.f32.partialorder %v2280, 0.0
  %vm2294 = vcmp.gt.f32.partialorder %v2281, 0.0
  %vm2295 = vcmp.gt.f32.partialorder %v2282, 0.0
  %vm2296 = vcmp.gt.f32.partialorder %v2283, 0.0
  %v2297 = vsel %vm2284, 1, 0
  %v2298 = vsel %vm2285, 1, 0
  %v2299 = vsel %vm2286, 1, 0
  %v2300 = vsel %vm2287, 1, 0
  %v2301 = vsel %vm2288, 1, 0
  %v2302 = vsel %vm2289, 1, 0
  %v2303 = vsel %vm2290, 1, 0
  %v2304 = vsel %vm2291, 1, 0
  %v2305 = vsel %vm2292, 1, 0
  %v2306 = vsel %vm2293, 1, 0
  %v2307 = vsel %vm2294, 1, 0
  %v2308 = vsel %vm2295, 1, 0
  %v2309 = vsel %vm2296, 1, 0
  %v2310 = vcvt.s32.f32 %v2297
  %v2311 = vcvt.s32.f32 %v2298
  %v2312 = vcvt.s32.f32 %v2299
  %v2313 = vcvt.s32.f32 %v2300
  %v2314 = vcvt.s32.f32 %v2301
  %v2315 = vcvt.s32.f32 %v2302
  %v2316 = vcvt.s32.f32 %v2303
  %v2317 = vcvt.s32.f32 %v2304
  %v2318 = vcvt.s32.f32 %v2305
  %v2319 = vcvt.s32.f32 %v2306
  %v2320 = vcvt.s32.f32 %v2307
  %v2321 = vcvt.s32.f32 %v2308
  %v2322 = vcvt.s32.f32 %v2309
  %v2323 = vmul.f32 %v2310, 3.0
  %v2324 = vmul.f32 %v2311, 3.0
  %v2325 = vmul.f32 %v2312, 3.0
  %v2326 = vmul.f32 %v2313, 3.0
  %v2327 = vmul.f32 %v2314, 3.0
  %v2328 = vmul.f32 %v2315, 3.0
  %v2329 = vmul.f32 %v2316, 3.0
  %v2330 = vmul.f32 %v2317, 3.0
  %v2331 = vmul.f32 %v2318, 3.0
  %v2332 = vmul.f32 %v2319, 3.0
  %v2333 = vmul.f32 %v2320, 3.0
  %v2334 = vmul.f32 %v2321, 3.0
  %v2335 = vmul.f32 %v2322, 3.0
  %v2336 = vmax.f32 %v2271, 1.0
  %v2337 = vmax.f32 %v2272, 1.0
  %v2338 = vmax.f32 %v2273, 1.0
  %v2339 = vmax.f32 %v2274, 1.0
  %v2340 = vmax.f32 %v2275, 1.0
  %v2341 = vmax.f32 %v2276, 1.0
  %v2342 = vmax.f32 %v2277, 1.0
  %v2343 = vmax.f32 %v2278, 1.0
  %v2344 = vmax.f32 %v2279, 1.0
  %v2345 = vmax.f32 %v2280, 1.0
  %v2346 = vmax.f32 %v2281, 1.0
  %v2347 = vmax.f32 %v2282, 1.0
  %v2348 = vmax.f32 %v2283, 1.0
  %v2349 = vrcp.pop %v2336
  %v2350 = vmul.f32 %v2323, %v2349
  %v2351 = vrcp.pop %v2337
  %v2352 = vmul.f32 %v2324, %v2351
  %v2353 = vrcp.pop %v2338
  %v2354 = vmul.f32 %v2325, %v2353
  %v2355 = vrcp.pop %v2339
  %v2356 = vmul.f32 %v2326, %v2355
  %v2357 = vrcp.pop %v2340
  %v2358 = vmul.f32 %v2327, %v2357
  %v2359 = vrcp.pop %v2341
  %v2360 = vmul.f32 %v2328, %v2359
  %v2361 = vrcp.pop %v2342
  %v2362 = vmul.f32 %v2329, %v2361
  %v2363 = vrcp.pop %v2343
  %v2364 = vmul.f32 %v2330, %v2363
  %v2365 = vrcp.pop %v2344
  %v2366 = vmul.f32 %v2331, %v2365
  %v2367 = vrcp.pop %v2345
  %v2368 = vmul.f32 %v2332, %v2367
  %v2369 = vrcp.pop %v2346
  %v2370 = vmul.f32 %v2333, %v2369
  %v2371 = vrcp.pop %v2347
  %v2372 = vmul.f32 %v2334, %v2371
  %v2373 = vrcp.pop %v2348
  %v2374 = vmul.f32 %v2335, %v2373
  %2376 = vset.pattern.permute.xlu0 0
  %2377 = vperm.xlu0 %2376, %v2350
  %v2378 = vpop.permute.xlu0 %2377
  %2381 = vset.pattern.permute.xlu0 0
  %2382 = vperm.xlu0 %2381, %v2352
  %v2383 = vpop.permute.xlu0 %2382
  %2386 = vset.pattern.permute.xlu0 0
  %2387 = vperm.xlu0 %2386, %v2354
  %v2388 = vpop.permute.xlu0 %2387
  %2391 = vset.pattern.permute.xlu0 0
  %2392 = vperm.xlu0 %2391, %v2356
  %v2393 = vpop.permute.xlu0 %2392
  %2396 = vset.pattern.permute.xlu0 0
  %2397 = vperm.xlu0 %2396, %v2358
  %v2398 = vpop.permute.xlu0 %2397
  %2401 = vset.pattern.permute.xlu0 0
  %2402 = vperm.xlu0 %2401, %v2360
  %v2403 = vpop.permute.xlu0 %2402
  %2406 = vset.pattern.permute.xlu0 0
  %2407 = vperm.xlu0 %2406, %v2362
  %v2408 = vpop.permute.xlu0 %2407
  %2411 = vset.pattern.permute.xlu0 0
  %2412 = vperm.xlu0 %2411, %v2364
  %v2413 = vpop.permute.xlu0 %2412
  %2416 = vset.pattern.permute.xlu0 0
  %2417 = vperm.xlu0 %2416, %v2366
  %v2418 = vpop.permute.xlu0 %2417
  %2421 = vset.pattern.permute.xlu0 0
  %2422 = vperm.xlu0 %2421, %v2368
  %v2423 = vpop.permute.xlu0 %2422
  %2426 = vset.pattern.permute.xlu0 0
  %2427 = vperm.xlu0 %2426, %v2370
  %v2428 = vpop.permute.xlu0 %2427
  %2431 = vset.pattern.permute.xlu0 0
  %2432 = vperm.xlu0 %2431, %v2372
  %v2433 = vpop.permute.xlu0 %2432
  %2436 = vset.pattern.permute.xlu0 0
  %2437 = vperm.xlu0 %2436, %v2374
  %v2438 = vpop.permute.xlu0 %2437
  %v2440 = vmul.f32 %v2258, %v2378
  %v2441 = vmul.f32 %v2259, %v2383
  %v2442 = vmul.f32 %v2260, %v2388
  %v2443 = vmul.f32 %v2261, %v2393
  %v2444 = vmul.f32 %v2262, %v2398
  %v2445 = vmul.f32 %v2263, %v2403
  %v2446 = vmul.f32 %v2264, %v2408
  %v2447 = vmul.f32 %v2265, %v2413
  %v2448 = vmul.f32 %v2266, %v2418
  %v2449 = vmul.f32 %v2267, %v2423
  %v2450 = vmul.f32 %v2268, %v2428
  %v2451 = vmul.f32 %v2269, %v2433
  %v2452 = vmul.f32 %v2270, %v2438
  %v2453 = vadd.f32 %v2440, %v653
  %v2454 = vadd.f32 %v2441, %v653
  %v2455 = vadd.f32 %v2442, %v653
  %v2456 = vadd.f32 %v2443, %v653
  %v2457 = vadd.f32 %v2444, %v653
  %v2458 = vadd.f32 %v2445, %v653
  %v2459 = vadd.f32 %v2446, %v653
  %v2460 = vadd.f32 %v2447, %v653
  %v2461 = vadd.f32 %v2448, %v653
  %v2462 = vadd.f32 %v2449, %v653
  %v2463 = vadd.f32 %v2450, %v653
  %v2464 = vadd.f32 %v2451, %v653
  %v2465 = vadd.f32 %v2452, %v653
  %v2466 = vmax.f32 %v2453, 0.0
  %v2467 = vmax.f32 %v2454, 0.0
  %v2468 = vmax.f32 %v2455, 0.0
  %v2469 = vmax.f32 %v2456, 0.0
  %v2470 = vmax.f32 %v2457, 0.0
  %v2471 = vmax.f32 %v2458, 0.0
  %v2472 = vmax.f32 %v2459, 0.0
  %v2473 = vmax.f32 %v2460, 0.0
  %v2474 = vmax.f32 %v2461, 0.0
  %v2475 = vmax.f32 %v2462, 0.0
  %v2476 = vmax.f32 %v2463, 0.0
  %v2477 = vmax.f32 %v2464, 0.0
  %v2478 = vmax.f32 %v2465, 0.0
  %2480 = vset.pattern.permute.xlu0 0
  %2481 = vperm.xlu0 %2480, %v2310
  %v2482 = vpop.permute.xlu0 %2481
  %2485 = vset.pattern.permute.xlu0 0
  %2486 = vperm.xlu0 %2485, %v2311
  %v2487 = vpop.permute.xlu0 %2486
  %2490 = vset.pattern.permute.xlu0 0
  %2491 = vperm.xlu0 %2490, %v2312
  %v2492 = vpop.permute.xlu0 %2491
  %2495 = vset.pattern.permute.xlu0 0
  %2496 = vperm.xlu0 %2495, %v2313
  %v2497 = vpop.permute.xlu0 %2496
  %2500 = vset.pattern.permute.xlu0 0
  %2501 = vperm.xlu0 %2500, %v2314
  %v2502 = vpop.permute.xlu0 %2501
  %2505 = vset.pattern.permute.xlu0 0
  %2506 = vperm.xlu0 %2505, %v2315
  %v2507 = vpop.permute.xlu0 %2506
  %2510 = vset.pattern.permute.xlu0 0
  %2511 = vperm.xlu0 %2510, %v2316
  %v2512 = vpop.permute.xlu0 %2511
  %2515 = vset.pattern.permute.xlu0 0
  %2516 = vperm.xlu0 %2515, %v2317
  %v2517 = vpop.permute.xlu0 %2516
  %2520 = vset.pattern.permute.xlu0 0
  %2521 = vperm.xlu0 %2520, %v2318
  %v2522 = vpop.permute.xlu0 %2521
  %2525 = vset.pattern.permute.xlu0 0
  %2526 = vperm.xlu0 %2525, %v2319
  %v2527 = vpop.permute.xlu0 %2526
  %2530 = vset.pattern.permute.xlu0 0
  %2531 = vperm.xlu0 %2530, %v2320
  %v2532 = vpop.permute.xlu0 %2531
  %2535 = vset.pattern.permute.xlu0 0
  %2536 = vperm.xlu0 %2535, %v2321
  %v2537 = vpop.permute.xlu0 %2536
  %2540 = vset.pattern.permute.xlu0 0
  %2541 = vperm.xlu0 %2540, %v2322
  %v2542 = vpop.permute.xlu0 %2541
  %v2544 = vmul.f32 %v2466, %v2482
  %v2545 = vmul.f32 %v2467, %v2487
  %v2546 = vmul.f32 %v2468, %v2492
  %v2547 = vmul.f32 %v2469, %v2497
  %v2548 = vmul.f32 %v2470, %v2502
  %v2549 = vmul.f32 %v2471, %v2507
  %v2550 = vmul.f32 %v2472, %v2512
  %v2551 = vmul.f32 %v2473, %v2517
  %v2552 = vmul.f32 %v2474, %v2522
  %v2553 = vmul.f32 %v2475, %v2527
  %v2554 = vmul.f32 %v2476, %v2532
  %v2555 = vmul.f32 %v2477, %v2537
  %v2556 = vmul.f32 %v2478, %v2542
  %s2557 = scalar_lea.vmem %s4, 128
  %v2558 = vld [vmem:[%s2557] sm:$0xff]
  %v2559 = vld [vmem:[%s2557 + $0x8] sm:$0xff]
  %v2560 = vld [vmem:[%s2557 + $0x10] sm:$0xff]
  %v2561 = vld [vmem:[%s2557 + $0x18] sm:$0xff]
  %v2562 = vld [vmem:[%s2557 + $0x20] sm:$0xff]
  %v2563 = vld [vmem:[%s2557 + $0x28] sm:$0xff]
  %v2564 = vld [vmem:[%s2557 + $0x30] sm:$0xff]
  %v2565 = vld [vmem:[%s2557 + $0x38] sm:$0xff]
  %v2567 = vsel %vm1497, %v2544, 0
  %v2570 = vsel %vm1497, %v2545, 0
  %v2573 = vsel %vm1497, %v2546, 0
  %v2576 = vsel %vm1497, %v2547, 0
  %v2579 = vsel %vm1497, %v2548, 0
  %v2582 = vsel %vm1497, %v2549, 0
  %v2585 = vsel %vm1497, %v2550, 0
  %v2588 = vsel %vm1497, %v2551, 0
  %v2591 = vsel %vm1497, %v2552, 0
  %v2594 = vsel %vm1497, %v2553, 0
  %v2597 = vsel %vm1497, %v2554, 0
  %v2600 = vsel %vm1497, %v2555, 0
  %v2603 = vsel %vm1497, %v2556, 0
  %2605 = vmatprep.subr.mxu0 0.0
  %2606 = vmatpush1.msra.mxu0 %v2558
  %2607 = vmatprep.subr.mxu0 0.0
  %2608 = vmatpush1.msra.mxu0 %v2559
  %2609 = vmatprep.subr.mxu0 0.0
  %2610 = vmatpush1.msra.mxu0 %v2560
  %2611 = vmatprep.subr.mxu0 0.0
  %2612 = vmatpush1.msra.mxu0 %v2561
  %2613 = vmatprep.subr.mxu0 0.0
  %2614 = vmatpush1.msra.mxu0 %v2562
  %2615 = vmatprep.subr.mxu0 0.0
  %2616 = vmatpush1.msra.mxu0 %v2563
  %2617 = vmatprep.subr.mxu0 0.0
  %2618 = vmatpush1.msra.mxu0 %v2564
  %2619 = vmatprep.subr.mxu0 0.0
  %2620 = vmatpush1.msra.mxu0 %v2565
  %2621 = vmatprep.subr.mxu0 0.0
  %2622 = vmatpush1.msra.mxu0 0.0
  %2623 = vmatprep.subr.mxu0 0.0
  %2624 = vmatpush1.msra.mxu0 0.0
  %2625 = vmatprep.subr.mxu0 0.0
  %2626 = vmatpush1.msra.mxu0 0.0
  %2627 = vmatprep.subr.mxu0 0.0
  %2628 = vmatpush1.msra.mxu0 0.0
  %2629 = vmatprep.subr.mxu0 0.0
  %2630 = vmatpush1.msra.mxu0 0.0
  %2631 = vmatprep.subr.mxu0 0.0
  %2632 = vmatpush1.msra.mxu0 0.0
  %2633 = vmatprep.subr.mxu0 0.0
  %2634 = vmatpush1.msra.mxu0 0.0
  %2635 = vmatprep.subr.mxu0 0.0
  %2636 = vmatpush1.msra.mxu0 0.0
  %2637 = vmatprep.subr.mxu0 0.0
  %2638 = vmatpush1.msra.mxu0 0.0
  %2639 = vmatprep.subr.mxu0 0.0
  %2640 = vmatpush1.msra.mxu0 0.0
  %2641 = vmatprep.subr.mxu0 0.0
  %2642 = vmatpush1.msra.mxu0 0.0
  %2643 = vmatprep.subr.mxu0 0.0
  %2644 = vmatpush1.msra.mxu0 0.0
  %2645 = vmatprep.subr.mxu0 0.0
  %2646 = vmatpush1.msra.mxu0 0.0
  %2647 = vmatprep.subr.mxu0 0.0
  %2648 = vmatpush1.msra.mxu0 0.0
  %2649 = vmatprep.subr.mxu0 0.0
  %2650 = vmatpush1.msra.mxu0 0.0
  %2651 = vmatprep.subr.mxu0 0.0
  %2652 = vmatpush1.msra.mxu0 0.0
  %2653 = vmatprep.subr.mxu0 0.0
  %2654 = vmatpush1.msra.mxu0 0.0
  %2655 = vmatprep.subr.mxu0 0.0
  %2656 = vmatpush1.msra.mxu0 0.0
  %2657 = vmatprep.subr.mxu0 0.0
  %2658 = vmatpush1.msra.mxu0 0.0
  %2659 = vmatprep.subr.mxu0 0.0
  %2660 = vmatpush1.msra.mxu0 0.0
  %2661 = vmatprep.subr.mxu0 0.0
  %2662 = vmatpush1.msra.mxu0 0.0
  %2663 = vmatprep.subr.mxu0 0.0
  %2664 = vmatpush1.msra.mxu0 0.0
  %2665 = vmatprep.subr.mxu0 0.0
  %2666 = vmatpush1.msra.mxu0 0.0
  %2667 = vmatprep.subr.mxu0 0.0
  %2668 = vmatpush1.msra.mxu0 0.0
  %2669 = vmatprep.mubr.f32.mxu0 0.0
  %2670 = vmatmul.mubr.f32.gmra.mrb[0].mxu0 %v2567
  %v2671 = vpop.f32.mrb[0].mxu0
  %v2672 = vadd.f32 0.0, %v2671
  %v2673 = vpop.f32.mrb[0].mxu0
  %2674 = vmatprep.mubr.f32.mxu0 0.0
  %2675 = vmatmul.mubr.f32.gmra.mrb[0].mxu0 %v2570
  %v2676 = vpop.f32.mrb[0].mxu0
  %v2677 = vadd.f32 0.0, %v2676
  %v2678 = vpop.f32.mrb[0].mxu0
  %2679 = vmatprep.mubr.f32.mxu0 0.0
  %2680 = vmatmul.mubr.f32.gmra.mrb[0].mxu0 %v2573
  %v2681 = vpop.f32.mrb[0].mxu0
  %v2682 = vadd.f32 0.0, %v2681
  %v2683 = vpop.f32.mrb[0].mxu0
  %2684 = vmatprep.mubr.f32.mxu0 0.0
  %2685 = vmatmul.mubr.f32.gmra.mrb[0].mxu0 %v2576
  %v2686 = vpop.f32.mrb[0].mxu0
  %v2687 = vadd.f32 0.0, %v2686
  %v2688 = vpop.f32.mrb[0].mxu0
  %2689 = vmatprep.mubr.f32.mxu0 0.0
  %2690 = vmatmul.mubr.f32.gmra.mrb[0].mxu0 %v2579
  %v2691 = vpop.f32.mrb[0].mxu0
  %v2692 = vadd.f32 0.0, %v2691
  %v2693 = vpop.f32.mrb[0].mxu0
  %2694 = vmatprep.mubr.f32.mxu0 0.0
  %2695 = vmatmul.mubr.f32.gmra.mrb[0].mxu0 %v2582
  %v2696 = vpop.f32.mrb[0].mxu0
  %v2697 = vadd.f32 0.0, %v2696
  %v2698 = vpop.f32.mrb[0].mxu0
  %2699 = vmatprep.mubr.f32.mxu0 0.0
  %2700 = vmatmul.mubr.f32.gmra.mrb[0].mxu0 %v2585
  %v2701 = vpop.f32.mrb[0].mxu0
  %v2702 = vadd.f32 0.0, %v2701
  %v2703 = vpop.f32.mrb[0].mxu0
  %2704 = vmatprep.mubr.f32.mxu0 0.0
  %2705 = vmatmul.mubr.f32.gmra.mrb[0].mxu0 %v2588
  %v2706 = vpop.f32.mrb[0].mxu0
  %v2707 = vadd.f32 0.0, %v2706
  %v2708 = vpop.f32.mrb[0].mxu0
  %2709 = vmatprep.mubr.f32.mxu0 0.0
  %2710 = vmatmul.mubr.f32.gmra.mrb[0].mxu0 %v2591
  %v2711 = vpop.f32.mrb[0].mxu0
  %v2712 = vadd.f32 0.0, %v2711
  %v2713 = vpop.f32.mrb[0].mxu0
  %2714 = vmatprep.mubr.f32.mxu0 0.0
  %2715 = vmatmul.mubr.f32.gmra.mrb[0].mxu0 %v2594
  %v2716 = vpop.f32.mrb[0].mxu0
  %v2717 = vadd.f32 0.0, %v2716
  %v2718 = vpop.f32.mrb[0].mxu0
  %2719 = vmatprep.mubr.f32.mxu0 0.0
  %2720 = vmatmul.mubr.f32.gmra.mrb[0].mxu0 %v2597
  %v2721 = vpop.f32.mrb[0].mxu0
  %v2722 = vadd.f32 0.0, %v2721
  %v2723 = vpop.f32.mrb[0].mxu0
  %2724 = vmatprep.mubr.f32.mxu0 0.0
  %2725 = vmatmul.mubr.f32.gmra.mrb[0].mxu0 %v2600
  %v2726 = vpop.f32.mrb[0].mxu0
  %v2727 = vadd.f32 0.0, %v2726
  %v2728 = vpop.f32.mrb[0].mxu0
  %2729 = vmatprep.mubr.f32.mxu0 0.0
  %2730 = vmatmul.mubr.f32.gmra.mrb[0].mxu0 %v2603
  %v2731 = vpop.f32.mrb[0].mxu0
  %v2732 = vadd.f32 0.0, %v2731
  %v2733 = vpop.f32.mrb[0].mxu0
  %2734 = vdwg.mxu0
  %v2735 = vadd.f32 %v1773, %v2672
  %v2736 = vadd.f32 %v1778, %v2677
  %v2737 = vadd.f32 %v1783, %v2682
  %v2738 = vadd.f32 %v1788, %v2687
  %v2739 = vadd.f32 %v1793, %v2692
  %v2740 = vadd.f32 %v1798, %v2697
  %v2741 = vadd.f32 %v1803, %v2702
  %v2742 = vadd.f32 %v1808, %v2707
  %v2743 = vadd.f32 %v1813, %v2712
  %v2744 = vadd.f32 %v1818, %v2717
  %v2745 = vadd.f32 %v1823, %v2722
  %v2746 = vadd.f32 %v1828, %v2727
  %v2747 = vadd.f32 %v1833, %v2732
  %v2748 = vadd.f32 %v1836, %v2310
  %v2749 = vadd.f32 %v1837, %v2311
  %v2750 = vadd.f32 %v1838, %v2312
  %v2751 = vadd.f32 %v1839, %v2313
  %v2752 = vadd.f32 %v1840, %v2314
  %v2753 = vadd.f32 %v1841, %v2315
  %v2754 = vadd.f32 %v1842, %v2316
  %v2755 = vadd.f32 %v1843, %v2317
  %v2756 = vadd.f32 %v1844, %v2318
  %v2757 = vadd.f32 %v1845, %v2319
  %v2758 = vadd.f32 %v1846, %v2320
  %v2759 = vadd.f32 %v1847, %v2321
  %v2760 = vadd.f32 %v1848, %v2322
  %vm2761 = vcmp.gt.f32.partialorder %v2748, 0.0
  %vm2762 = vcmp.gt.f32.partialorder %v2749, 0.0
  %vm2763 = vcmp.gt.f32.partialorder %v2750, 0.0
  %vm2764 = vcmp.gt.f32.partialorder %v2751, 0.0
  %vm2765 = vcmp.gt.f32.partialorder %v2752, 0.0
  %vm2766 = vcmp.gt.f32.partialorder %v2753, 0.0
  %vm2767 = vcmp.gt.f32.partialorder %v2754, 0.0
  %vm2768 = vcmp.gt.f32.partialorder %v2755, 0.0
  %vm2769 = vcmp.gt.f32.partialorder %v2756, 0.0
  %vm2770 = vcmp.gt.f32.partialorder %v2757, 0.0
  %vm2771 = vcmp.gt.f32.partialorder %v2758, 0.0
  %vm2772 = vcmp.gt.f32.partialorder %v2759, 0.0
  %vm2773 = vcmp.gt.f32.partialorder %v2760, 0.0
  %v2774 = vsel %vm2761, 1, 0
  %v2775 = vsel %vm2762, 1, 0
  %v2776 = vsel %vm2763, 1, 0
  %v2777 = vsel %vm2764, 1, 0
  %v2778 = vsel %vm2765, 1, 0
  %v2779 = vsel %vm2766, 1, 0
  %v2780 = vsel %vm2767, 1, 0
  %v2781 = vsel %vm2768, 1, 0
  %v2782 = vsel %vm2769, 1, 0
  %v2783 = vsel %vm2770, 1, 0
  %v2784 = vsel %vm2771, 1, 0
  %v2785 = vsel %vm2772, 1, 0
  %v2786 = vsel %vm2773, 1, 0
  %v2787 = vcvt.s32.f32 %v2774
  %v2788 = vcvt.s32.f32 %v2775
  %v2789 = vcvt.s32.f32 %v2776
  %v2790 = vcvt.s32.f32 %v2777
  %v2791 = vcvt.s32.f32 %v2778
  %v2792 = vcvt.s32.f32 %v2779
  %v2793 = vcvt.s32.f32 %v2780
  %v2794 = vcvt.s32.f32 %v2781
  %v2795 = vcvt.s32.f32 %v2782
  %v2796 = vcvt.s32.f32 %v2783
  %v2797 = vcvt.s32.f32 %v2784
  %v2798 = vcvt.s32.f32 %v2785
  %v2799 = vcvt.s32.f32 %v2786
  %v2800 = vmul.f32 %v2787, 3.0
  %v2801 = vmul.f32 %v2788, 3.0
  %v2802 = vmul.f32 %v2789, 3.0
  %v2803 = vmul.f32 %v2790, 3.0
  %v2804 = vmul.f32 %v2791, 3.0
  %v2805 = vmul.f32 %v2792, 3.0
  %v2806 = vmul.f32 %v2793, 3.0
  %v2807 = vmul.f32 %v2794, 3.0
  %v2808 = vmul.f32 %v2795, 3.0
  %v2809 = vmul.f32 %v2796, 3.0
  %v2810 = vmul.f32 %v2797, 3.0
  %v2811 = vmul.f32 %v2798, 3.0
  %v2812 = vmul.f32 %v2799, 3.0
  %v2813 = vmax.f32 %v2748, 1.0
  %v2814 = vmax.f32 %v2749, 1.0
  %v2815 = vmax.f32 %v2750, 1.0
  %v2816 = vmax.f32 %v2751, 1.0
  %v2817 = vmax.f32 %v2752, 1.0
  %v2818 = vmax.f32 %v2753, 1.0
  %v2819 = vmax.f32 %v2754, 1.0
  %v2820 = vmax.f32 %v2755, 1.0
  %v2821 = vmax.f32 %v2756, 1.0
  %v2822 = vmax.f32 %v2757, 1.0
  %v2823 = vmax.f32 %v2758, 1.0
  %v2824 = vmax.f32 %v2759, 1.0
  %v2825 = vmax.f32 %v2760, 1.0
  %v2826 = vrcp.pop %v2813
  %v2827 = vmul.f32 %v2800, %v2826
  %v2828 = vrcp.pop %v2814
  %v2829 = vmul.f32 %v2801, %v2828
  %v2830 = vrcp.pop %v2815
  %v2831 = vmul.f32 %v2802, %v2830
  %v2832 = vrcp.pop %v2816
  %v2833 = vmul.f32 %v2803, %v2832
  %v2834 = vrcp.pop %v2817
  %v2835 = vmul.f32 %v2804, %v2834
  %v2836 = vrcp.pop %v2818
  %v2837 = vmul.f32 %v2805, %v2836
  %v2838 = vrcp.pop %v2819
  %v2839 = vmul.f32 %v2806, %v2838
  %v2840 = vrcp.pop %v2820
  %v2841 = vmul.f32 %v2807, %v2840
  %v2842 = vrcp.pop %v2821
  %v2843 = vmul.f32 %v2808, %v2842
  %v2844 = vrcp.pop %v2822
  %v2845 = vmul.f32 %v2809, %v2844
  %v2846 = vrcp.pop %v2823
  %v2847 = vmul.f32 %v2810, %v2846
  %v2848 = vrcp.pop %v2824
  %v2849 = vmul.f32 %v2811, %v2848
  %v2850 = vrcp.pop %v2825
  %v2851 = vmul.f32 %v2812, %v2850
  %2853 = vset.pattern.permute.xlu0 0
  %2854 = vperm.xlu0 %2853, %v2827
  %v2855 = vpop.permute.xlu0 %2854
  %2858 = vset.pattern.permute.xlu0 0
  %2859 = vperm.xlu0 %2858, %v2829
  %v2860 = vpop.permute.xlu0 %2859
  %2863 = vset.pattern.permute.xlu0 0
  %2864 = vperm.xlu0 %2863, %v2831
  %v2865 = vpop.permute.xlu0 %2864
  %2868 = vset.pattern.permute.xlu0 0
  %2869 = vperm.xlu0 %2868, %v2833
  %v2870 = vpop.permute.xlu0 %2869
  %2873 = vset.pattern.permute.xlu0 0
  %2874 = vperm.xlu0 %2873, %v2835
  %v2875 = vpop.permute.xlu0 %2874
  %2878 = vset.pattern.permute.xlu0 0
  %2879 = vperm.xlu0 %2878, %v2837
  %v2880 = vpop.permute.xlu0 %2879
  %2883 = vset.pattern.permute.xlu0 0
  %2884 = vperm.xlu0 %2883, %v2839
  %v2885 = vpop.permute.xlu0 %2884
  %2888 = vset.pattern.permute.xlu0 0
  %2889 = vperm.xlu0 %2888, %v2841
  %v2890 = vpop.permute.xlu0 %2889
  %2893 = vset.pattern.permute.xlu0 0
  %2894 = vperm.xlu0 %2893, %v2843
  %v2895 = vpop.permute.xlu0 %2894
  %2898 = vset.pattern.permute.xlu0 0
  %2899 = vperm.xlu0 %2898, %v2845
  %v2900 = vpop.permute.xlu0 %2899
  %2903 = vset.pattern.permute.xlu0 0
  %2904 = vperm.xlu0 %2903, %v2847
  %v2905 = vpop.permute.xlu0 %2904
  %2908 = vset.pattern.permute.xlu0 0
  %2909 = vperm.xlu0 %2908, %v2849
  %v2910 = vpop.permute.xlu0 %2909
  %2913 = vset.pattern.permute.xlu0 0
  %2914 = vperm.xlu0 %2913, %v2851
  %v2915 = vpop.permute.xlu0 %2914
  %v2917 = vmul.f32 %v2735, %v2855
  %v2918 = vmul.f32 %v2736, %v2860
  %v2919 = vmul.f32 %v2737, %v2865
  %v2920 = vmul.f32 %v2738, %v2870
  %v2921 = vmul.f32 %v2739, %v2875
  %v2922 = vmul.f32 %v2740, %v2880
  %v2923 = vmul.f32 %v2741, %v2885
  %v2924 = vmul.f32 %v2742, %v2890
  %v2925 = vmul.f32 %v2743, %v2895
  %v2926 = vmul.f32 %v2744, %v2900
  %v2927 = vmul.f32 %v2745, %v2905
  %v2928 = vmul.f32 %v2746, %v2910
  %v2929 = vmul.f32 %v2747, %v2915
  %v2930 = vld [vmem:[%s5] sm:$0x1]
  %v2932 = vlaneseq
  %v2933 = vshrl.u32 %v2932, 7
  %v2934 = vsub.s32 0, %v2933
  %v2935 = vrot.slane %v2930, %v2934
  %v2937 = vadd.f32 %v2917, %v2935
  %v2938 = vadd.f32 %v2918, %v2935
  %v2939 = vadd.f32 %v2919, %v2935
  %v2940 = vadd.f32 %v2920, %v2935
  %v2941 = vadd.f32 %v2921, %v2935
  %v2942 = vadd.f32 %v2922, %v2935
  %v2943 = vadd.f32 %v2923, %v2935
  %v2944 = vadd.f32 %v2924, %v2935
  %v2945 = vadd.f32 %v2925, %v2935
  %v2946 = vadd.f32 %v2926, %v2935
  %v2947 = vadd.f32 %v2927, %v2935
  %v2948 = vadd.f32 %v2928, %v2935
  %v2949 = vadd.f32 %v2929, %v2935
  %v2950 = vmax.f32 %v2937, 0.0
  %v2951 = vmax.f32 %v2938, 0.0
  %v2952 = vmax.f32 %v2939, 0.0
  %v2953 = vmax.f32 %v2940, 0.0
  %v2954 = vmax.f32 %v2941, 0.0
  %v2955 = vmax.f32 %v2942, 0.0
  %v2956 = vmax.f32 %v2943, 0.0
  %v2957 = vmax.f32 %v2944, 0.0
  %v2958 = vmax.f32 %v2945, 0.0
  %v2959 = vmax.f32 %v2946, 0.0
  %v2960 = vmax.f32 %v2947, 0.0
  %v2961 = vmax.f32 %v2948, 0.0
  %v2962 = vmax.f32 %v2949, 0.0
  %2964 = vset.pattern.permute.xlu0 0
  %2965 = vperm.xlu0 %2964, %v2787
  %v2966 = vpop.permute.xlu0 %2965
  %2969 = vset.pattern.permute.xlu0 0
  %2970 = vperm.xlu0 %2969, %v2788
  %v2971 = vpop.permute.xlu0 %2970
  %2974 = vset.pattern.permute.xlu0 0
  %2975 = vperm.xlu0 %2974, %v2789
  %v2976 = vpop.permute.xlu0 %2975
  %2979 = vset.pattern.permute.xlu0 0
  %2980 = vperm.xlu0 %2979, %v2790
  %v2981 = vpop.permute.xlu0 %2980
  %2984 = vset.pattern.permute.xlu0 0
  %2985 = vperm.xlu0 %2984, %v2791
  %v2986 = vpop.permute.xlu0 %2985
  %2989 = vset.pattern.permute.xlu0 0
  %2990 = vperm.xlu0 %2989, %v2792
  %v2991 = vpop.permute.xlu0 %2990
  %2994 = vset.pattern.permute.xlu0 0
  %2995 = vperm.xlu0 %2994, %v2793
  %v2996 = vpop.permute.xlu0 %2995
  %2999 = vset.pattern.permute.xlu0 0
  %3000 = vperm.xlu0 %2999, %v2794
  %v3001 = vpop.permute.xlu0 %3000
  %3004 = vset.pattern.permute.xlu0 0
  %3005 = vperm.xlu0 %3004, %v2795
  %v3006 = vpop.permute.xlu0 %3005
  %3009 = vset.pattern.permute.xlu0 0
  %3010 = vperm.xlu0 %3009, %v2796
  %v3011 = vpop.permute.xlu0 %3010
  %3014 = vset.pattern.permute.xlu0 0
  %3015 = vperm.xlu0 %3014, %v2797
  %v3016 = vpop.permute.xlu0 %3015
  %3019 = vset.pattern.permute.xlu0 0
  %3020 = vperm.xlu0 %3019, %v2798
  %v3021 = vpop.permute.xlu0 %3020
  %3024 = vset.pattern.permute.xlu0 0
  %3025 = vperm.xlu0 %3024, %v2799
  %v3026 = vpop.permute.xlu0 %3025
  %v3028 = vmul.f32 %v2950, %v2966
  %v3029 = vmul.f32 %v2951, %v2971
  %v3030 = vmul.f32 %v2952, %v2976
  %v3031 = vmul.f32 %v2953, %v2981
  %v3032 = vmul.f32 %v2954, %v2986
  %v3033 = vmul.f32 %v2955, %v2991
  %v3034 = vmul.f32 %v2956, %v2996
  %v3035 = vmul.f32 %v2957, %v3001
  %v3036 = vmul.f32 %v2958, %v3006
  %v3037 = vmul.f32 %v2959, %v3011
  %v3038 = vmul.f32 %v2960, %v3016
  %v3039 = vmul.f32 %v2961, %v3021
  %v3040 = vmul.f32 %v2962, %v3026
  %vm3041 = vcmask 261120
  %3042 = vst.msk [vmem:[%s6] sm:$0xff] %vm3041, %v3028
  %3043 = vst.msk [vmem:[%s6 + $0x8] sm:$0xff] %vm3041, %v3029
  %3044 = vst.msk [vmem:[%s6 + $0x10] sm:$0xff] %vm3041, %v3030
  %3045 = vst.msk [vmem:[%s6 + $0x18] sm:$0xff] %vm3041, %v3031
  %3046 = vst.msk [vmem:[%s6 + $0x20] sm:$0xff] %vm3041, %v3032
  %3047 = vst.msk [vmem:[%s6 + $0x28] sm:$0xff] %vm3041, %v3033
  %3048 = vst.msk [vmem:[%s6 + $0x30] sm:$0xff] %vm3041, %v3034
  %3049 = vst.msk [vmem:[%s6 + $0x38] sm:$0xff] %vm3041, %v3035
  %3050 = vst.msk [vmem:[%s6 + $0x40] sm:$0xff] %vm3041, %v3036
  %3051 = vst.msk [vmem:[%s6 + $0x48] sm:$0xff] %vm3041, %v3037
  %3052 = vst.msk [vmem:[%s6 + $0x50] sm:$0xff] %vm3041, %v3038
  %3053 = vst.msk [vmem:[%s6 + $0x58] sm:$0xff] %vm3041, %v3039
  %vm3054 = vcmask 259072
  %3055 = vst.msk [vmem:[%s6 + $0x60] sm:$0x3f] %vm3054, %v3040
  // Predicated region
  $region26: #{encoder_classifier_forward.2} parent=0 // pred_check
    _
  $region27: #{encoder_classifier_forward.2} parent=0 // pred_check_branch
    %3057 = sbr.rel (0) target = $region29
  $region28: #{encoder_classifier_forward.2} parent=0 // pred_region
    _
  $region29: #{encoder_classifier_forward.2} parent=0 // pred_fallthru
    _
  // Predicated region
  $region30: #{encoder_classifier_forward.2} parent=0 // pred_check
    _
  $region31: #{encoder_classifier_forward.2} parent=0 // pred_check_branch
    %3059 = sbr.rel (0) target = $region33
  $region32: #{encoder_classifier_forward.2} parent=0 // pred_region
    _
  $region33: #{encoder_classifier_forward.2} parent=0 // pred_fallthru
    _

</llo_original>
